<compile_context>
chip_gen: v6e
topology: v6e:2x2x1
jax: 0.10.0
libtpu: 0.0.40
codegen_flags: <defaults>
</compile_context>

<pallas_src>
import functools

import numpy as np
import jax
import jax.numpy as jnp
from jax.experimental import pallas as pl
from jax.experimental.pallas import tpu as pltpu


# ----------------------------------------------------------------------------
# NTU-25 hierarchical groups (HD-GCN style) and the derived `layers` lists.
# ----------------------------------------------------------------------------
def get_groups(dataset="NTU", CoM=21):
    # 1-based joint ids (decremented below, exactly like the PyTorch module).
    # TODO(synk): joint lists follow the HD-GCN hierarchy layout; swap in the
    #             exact published tables if bit-exact group membership matters.
    assert dataset == "NTU" and CoM == 21
    return [
        [21],
        [2, 3, 5, 9],
        [4, 6, 10, 1],
        [7, 11, 13, 17],
        [8, 12, 14, 18],
        [22, 23, 24, 25, 15, 19],
        [16, 20],
    ]


def build_layers(CoM=21):
    groups = [[j - 1 for j in g] for g in get_groups("NTU", CoM)]
    return [groups[i] + groups[i + 1] for i in range(len(groups) - 1)]


# ----------------------------------------------------------------------------
# Pallas kernel: one grid step == one block of B batch samples (fused forward).
# ----------------------------------------------------------------------------
def _aha_kernel(x_ref, xt_ref, same_ref, w1_ref, off1_ref, asel_ref,
                pw_ref, qw_ref, oe_ref, wa_ref, ba_ref, out_ref, *, B, L, k):
    neg = jnp.float32(-jnp.inf)

    # ---- conv_down (1x1) + folded BN + ReLU: one matmul for the whole block ----
    h = jnp.dot(w1_ref[...], xt_ref[0], preferred_element_type=jnp.float32)
    h = jnp.maximum(h + off1_ref[...], 0.0)               # (Ci, B*L*V)

    # ---- hierarchical group means via one block-diagonal selection matmul ----
    xs = jnp.dot(h, asel_ref[...], preferred_element_type=jnp.float32)  # (Ci, B*L)

    # ---- EdgeConv over the L level descriptors, vectorized over the block ----
    # knn ranking: pd[v, j] = -||x_v - x_j||^2; dropping the per-row constant
    # gives S[v, j] = 2<x_v, x_j> - ||x_j||^2 with the same ranking over j.
    sq = jnp.sum(xs * xs, axis=0, keepdims=True)           # (1, BL)
    G = jnp.sum(xs[:, :, None] * xs[:, None, :], axis=0)   # (BL, BL) Gram (Ci small)
    S = 2.0 * G - sq                                       # (BL, BL)
    same = same_ref[...] > 0.5                             # within-sample mask

    # k-th largest per row via k iterated maxes.
    # TODO(synk): exact ties at the k-th distance select all tied levels;
    #             torch.topk breaks such ties by index.
    rem = jnp.where(same, S, neg)
    thr = jnp.max(rem, axis=-1, keepdims=True)
    for _ in range(k - 1):
        rem = jnp.where(rem >= thr, neg, rem)
        thr = jnp.max(rem, axis=-1, keepdims=True)
    sel = same & (S >= thr)                                # (BL, BL): j is a k-nn of v

    # bn(conv([x_j - x_v ; x_v])) = P[:, j] + Q[:, v] + oe   (BN folded in wrapper)
    P = jnp.dot(pw_ref[...], xs, preferred_element_type=jnp.float32)   # (Ci, BL)
    Q = jnp.dot(qw_ref[...], xs, preferred_element_type=jnp.float32)   # (Ci, BL)
    # max over selected neighbours folded through the monotone LeakyReLU.
    pmax = jnp.max(jnp.where(sel[None, :, :], P[:, None, :], neg), axis=-1)  # (Ci, BL)
    e = Q + pmax + oe_ref[...]
    att = jnp.where(e > 0.0, e, 0.2 * e)                   # LeakyReLU(0.2)

    # ---- aggregate (1x1 conv1d) + sigmoid gate ----
    agg = jnp.dot(wa_ref[...], att, preferred_element_type=jnp.float32) + ba_ref[...]
    sig = jax.nn.sigmoid(agg)                              # (C, B*L)

    # ---- gated sum over hierarchy levels; one dense (C, T*V) store per sample ----
    for b in range(B):
        acc = x_ref[0, b, 0] * sig[:, b * L:b * L + 1]
        for l in range(1, L):
            acc = acc + x_ref[0, b, l] * sig[:, b * L + l:b * L + l + 1]
        out_ref[0, b] = acc


def _pick_block(N, max_b=8):
    # Largest divisor of N that is <= max_b while keeping grid >= 2 steps
    # (so both v7x TensorCores get work); fall back to 1.
    upper = min(max_b, max(N // 2, 1))
    for b in range(upper, 0, -1):
        if N % b == 0:
            return b
    return 1


# ----------------------------------------------------------------------------
# Wrapper: parameter folding / layout plumbing in plain JAX, compute in Pallas.
# ----------------------------------------------------------------------------
def aha_forward(x, params, layers, *, k=3, max_block=8):
    N, C, L, T, V = x.shape
    assert len(layers) == L, "num_layers must equal the L axis of x"
    Ci = params["w_down"].shape[0]
    TV = T * V

    B = _pick_block(N, max_block)
    Gn = N // B
    BL = B * L

    # conv_down + eval-mode BN folded into one (Ci, C) matmul + offset.
    w1f = (params["w_down"] * params["s_down"][:, None]).astype(jnp.float32)
    off1 = (params["b_down"] * params["s_down"] + params["o_down"])[:, None].astype(jnp.float32)

    # averaging/selection matrix for the hierarchical group means, block-diagonal
    # over the B samples of a grid step.
    asel_np = np.zeros((L * V, L), np.float32)
    for i, g in enumerate(layers):
        asel_np[i * V + np.asarray(g, np.int64), i] = 1.0 / len(g)
    asel_big = jnp.asarray(np.kron(np.eye(B, dtype=np.float32), asel_np))  # (B*L*V, B*L)

    # within-sample mask for the kNN over the stacked B*L level descriptors.
    same = jnp.asarray(np.kron(np.eye(B, dtype=np.float32),
                               np.ones((L, L), np.float32)))               # (BL, BL)

    # EdgeConv conv (2Ci -> Ci, no bias) + BN folded:
    #   bn(conv([x_j - x_v ; x_v])) = Pw @ x_j + Qw @ x_v + oe
    w_d = params["w_edge"][:, :Ci]
    w_x = params["w_edge"][:, Ci:]
    pw = (params["s_edge"][:, None] * w_d).astype(jnp.float32)
    qw = (params["s_edge"][:, None] * (w_x - w_d)).astype(jnp.float32)
    oe = params["o_edge"][:, None].astype(jnp.float32)
    wa = params["w_agg"].astype(jnp.float32)
    ba = params["b_agg"][:, None].astype(jnp.float32)

    xf = x.astype(jnp.float32)

    # max over T done in the wrapper (tiny), laid out lane-dense per block:
    # (N, C, L, V) -> (Gn, C, B*L*V)
    x_t = xf.max(axis=3)
    xt_blk = (x_t.reshape(Gn, B, C, L * V)
                  .transpose(0, 2, 1, 3)
                  .reshape(Gn, C, B * L * V))

    # (N, C, L, T, V) -> (Gn, B, L, C, T*V): level-major, lane axis dense (T*V).
    x_blk = (xf.transpose(0, 2, 1, 3, 4)
               .reshape(N, L, C, TV)
               .reshape(Gn, B, L, C, TV))

    kernel = functools.partial(_aha_kernel, B=B, L=L, k=k)

    def full_spec(a):
        nd = a.ndim
        return pl.BlockSpec(a.shape, lambda n, _nd=nd: (0,) * _nd)

    out = pl.pallas_call(
        kernel,
        out_shape=jax.ShapeDtypeStruct((Gn, B, C, TV), jnp.float32),
        grid_spec=pltpu.PrefetchScalarGridSpec(
            num_scalar_prefetch=0,
            grid=(Gn,),
            in_specs=[pl.BlockSpec((1, B, L, C, TV), lambda n: (n, 0, 0, 0, 0)),
                      pl.BlockSpec((1, C, B * L * V), lambda n: (n, 0, 0)),
                      full_spec(same), full_spec(w1f), full_spec(off1),
                      full_spec(asel_big), full_spec(pw), full_spec(qw),
                      full_spec(oe), full_spec(wa), full_spec(ba)],
            out_specs=pl.BlockSpec((1, B, C, TV), lambda n: (n, 0, 0, 0))),
        compiler_params=pltpu.CompilerParams(dimension_semantics=("parallel",)),
    )(x_blk, xt_blk, same, w1f, off1, asel_big, pw, qw, oe, wa, ba)
    return out.reshape(N, C, T, V)


# ----------------------------------------------------------------------------
# Deterministic parameter init (raw, unfolded params; folding happens in wrapper).
# ----------------------------------------------------------------------------
def init_params(key, in_channels):
    Ci = in_channels // 4
    eps = 1e-5
    ks = jax.random.split(key, 13)

    def bn_fold(kg, kb, km, kv, n):
        gamma = 1.0 + 0.02 * jax.random.normal(kg, (n,))
        beta = 0.1 * jax.random.normal(kb, (n,))
        mean = 0.1 * jax.random.normal(km, (n,))
        var = jax.random.uniform(kv, (n,), minval=0.5, maxval=1.5)
        scale = gamma / jnp.sqrt(var + eps)
        offset = beta - mean * scale
        return scale.astype(jnp.float32), offset.astype(jnp.float32)

    w_down = jax.random.normal(ks[0], (Ci, in_channels)) * np.sqrt(2.0 / in_channels)
    b_down = 0.1 * jax.random.normal(ks[1], (Ci,))
    s_down, o_down = bn_fold(ks[2], ks[3], ks[4], ks[5], Ci)
    w_edge = jax.random.normal(ks[6], (Ci, 2 * Ci)) * np.sqrt(2.0 / (2 * Ci))
    s_edge, o_edge = bn_fold(ks[7], ks[8], ks[9], ks[10], Ci)
    w_agg = jax.random.normal(ks[11], (in_channels, Ci)) * np.sqrt(2.0 / Ci)
    b_agg = 0.1 * jax.random.normal(ks[12], (in_channels,))
    return dict(w_down=w_down.astype(jnp.float32), b_down=b_down.astype(jnp.float32),
                s_down=s_down, o_down=o_down,
                w_edge=w_edge.astype(jnp.float32), s_edge=s_edge, o_edge=o_edge,
                w_agg=w_agg.astype(jnp.float32), b_agg=b_agg.astype(jnp.float32))


# ----------------------------------------------------------------------------
# Pure-JAX reference mirroring the PyTorch module (topk + gather form).
# ----------------------------------------------------------------------------
def reference_forward(x, p, layers, *, k=3):
    N, C, L, T, V = x.shape
    x_t = x.max(axis=3)                                              # (N, C, L, V)
    y = jnp.einsum("oc,nclv->nolv", p["w_down"], x_t) + p["b_down"][None, :, None, None]
    y = y * p["s_down"][None, :, None, None] + p["o_down"][None, :, None, None]
    y = jnp.maximum(y, 0.0)                                          # (N, Ci, L, V)
    cols = [y[:, :, i, :][:, :, jnp.asarray(g)].mean(axis=-1, keepdims=True)
            for i, g in enumerate(layers)]
    xs = jnp.concatenate(cols, axis=2)                               # (N, Ci, L)

    # EdgeConv (dim=3): knn, graph feature, 1x1 conv + BN + LeakyReLU, max over k.
    inner = -2.0 * jnp.einsum("ncl,ncm->nlm", xs, xs)
    xx = jnp.sum(xs ** 2, axis=1, keepdims=True)
    pdist = -xx - inner - jnp.swapaxes(xx, 1, 2)                     # (N, L, L)
    idx = jax.lax.top_k(pdist, k)[1]                                 # (N, L, k)
    xsT = jnp.swapaxes(xs, 1, 2)                                     # (N, L, Ci)
    feat = xsT[jnp.arange(N)[:, None, None], idx]                    # (N, L, k, Ci)
    center = xsT[:, :, None, :]
    feature = jnp.concatenate([feat - center,
                               jnp.broadcast_to(center, feat.shape)], axis=-1)
    e = jnp.einsum("oc,nvkc->novk", p["w_edge"], feature)            # (N, Ci, L, k)
    e = e * p["s_edge"][None, :, None, None] + p["o_edge"][None, :, None, None]
    e = jnp.where(e > 0.0, e, 0.2 * e)
    att = e.max(axis=-1)                                             # (N, Ci, L)

    agg = jnp.einsum("oc,ncl->nol", p["w_agg"], att) + p["b_agg"][None, :, None]
    sig = jax.nn.sigmoid(agg)                                        # (N, C, L)
    return (x * sig[:, :, :, None, None]).sum(axis=2)                # (N, C, T, V)


if __name__ == "__main__":
    key = jax.random.PRNGKey(0)
    kx, kp = jax.random.split(key)
    layers = build_layers(CoM=21)
    L = len(layers)                       # 6 hierarchy levels (num_layers)
    N, C, T, V = 2, 16, 16, 25            # in_channels=16 -> inter_channels=4, NTU V=25
    x = jax.random.normal(kx, (N, C, L, T, V), jnp.float32)
    params = init_params(kp, C)

    # Precision context is scoped here (kernel trace + reference) instead of a
    # process-wide config override.
    with jax.default_matmul_precision("highest"):
        out = jax.block_until_ready(aha_forward(x, params, layers, k=3))
        ref = jax.block_until_ready(reference_forward(x, params, layers, k=3))
    np.testing.assert_allclose(np.asarray(out), np.asarray(ref), rtol=1e-3, atol=1e-3)
    print("KERNEL_OK")
</pallas_src>

<mosaic_0001>
module attributes {stable_mosaic.version = 11 : i64} {
  func.func @_aha_kernel(%arg0: i32, %arg1: memref<1x1x6x16x400xf32, #tpu.memory_space<vmem>>, %arg2: memref<1x16x150xf32, #tpu.memory_space<vmem>>, %arg3: memref<6x6xf32, #tpu.memory_space<vmem>>, %arg4: memref<4x16xf32, #tpu.memory_space<vmem>>, %arg5: memref<4x1xf32, #tpu.memory_space<vmem>>, %arg6: memref<150x6xf32, #tpu.memory_space<vmem>>, %arg7: memref<4x4xf32, #tpu.memory_space<vmem>>, %arg8: memref<4x4xf32, #tpu.memory_space<vmem>>, %arg9: memref<4x1xf32, #tpu.memory_space<vmem>>, %arg10: memref<16x4xf32, #tpu.memory_space<vmem>>, %arg11: memref<16x1xf32, #tpu.memory_space<vmem>>, %arg12: memref<1x1x16x400xf32, #tpu.memory_space<vmem>>) attributes {dimension_semantics = [#tpu.dimension_semantics<parallel>], iteration_bounds = array<i64: 2>, scalar_prefetch = 0 : i64, scratch_operands = 0 : i64, tpu.core_type = #tpu.core_type<tc>, window_params = [{transform_indices = @transform_0, window_bounds = array<i64: 1, 1, 6, 16, 400>}, {transform_indices = @transform_1, window_bounds = array<i64: 1, 16, 150>}, {pipeline_mode = #tpu.pipeline_mode<synchronous>, transform_indices = @transform_2, window_bounds = array<i64: 6, 6>}, {pipeline_mode = #tpu.pipeline_mode<synchronous>, transform_indices = @transform_3, window_bounds = array<i64: 4, 16>}, {pipeline_mode = #tpu.pipeline_mode<synchronous>, transform_indices = @transform_4, window_bounds = array<i64: 4, 1>}, {pipeline_mode = #tpu.pipeline_mode<synchronous>, transform_indices = @transform_5, window_bounds = array<i64: 150, 6>}, {pipeline_mode = #tpu.pipeline_mode<synchronous>, transform_indices = @transform_6, window_bounds = array<i64: 4, 4>}, {pipeline_mode = #tpu.pipeline_mode<synchronous>, transform_indices = @transform_7, window_bounds = array<i64: 4, 4>}, {pipeline_mode = #tpu.pipeline_mode<synchronous>, transform_indices = @transform_8, window_bounds = array<i64: 4, 1>}, {pipeline_mode = #tpu.pipeline_mode<synchronous>, transform_indices = @transform_9, window_bounds = array<i64: 16, 4>}, {pipeline_mode = #tpu.pipeline_mode<synchronous>, transform_indices = @transform_10, window_bounds = array<i64: 16, 1>}, {transform_indices = @transform_11, window_bounds = array<i64: 1, 1, 16, 400>}]} {
    %c0 = arith.constant 0 : index
    %c0_0 = arith.constant 0 : index
    %0 = vector.load %arg4[%c0, %c0_0] : memref<4x16xf32, #tpu.memory_space<vmem>>, vector<4x16xf32>
    %c0_1 = arith.constant 0 : index
    %c0_2 = arith.constant 0 : index
    %c0_3 = arith.constant 0 : index
    %1 = vector.load %arg2[%c0_1, %c0_2, %c0_3] : memref<1x16x150xf32, #tpu.memory_space<vmem>>, vector<1x16x150xf32>
    %2 = vector.shape_cast %1 : vector<1x16x150xf32> to vector<16x150xf32>
    %cst = arith.constant dense<0.000000e+00> : vector<4x150xf32>
    %3 = tpu.matmul %0, %2, %cst {dimension_numbers = #tpu.dot_dimension_numbers<[1], [0], [0], [1], [0, 0, 1, 1], [], []>, precision = #tpu.contract_precision<fp32>} : vector<4x16xf32>, vector<16x150xf32>, vector<4x150xf32> -> vector<4x150xf32>
    %c0_4 = arith.constant 0 : index
    %c0_5 = arith.constant 0 : index
    %4 = vector.load %arg5[%c0_4, %c0_5] : memref<4x1xf32, #tpu.memory_space<vmem>>, vector<4x1xf32>
    %5 = vector.broadcast %4 : vector<4x1xf32> to vector<4x150xf32>
    %6 = arith.addf %3, %5 : vector<4x150xf32>
    %cst_6 = arith.constant 0.000000e+00 : f32
    %7 = vector.broadcast %cst_6 : f32 to vector<4x150xf32>
    %8 = arith.maximumf %6, %7 : vector<4x150xf32>
    %c0_7 = arith.constant 0 : index
    %c0_8 = arith.constant 0 : index
    %9 = vector.load %arg6[%c0_7, %c0_8] : memref<150x6xf32, #tpu.memory_space<vmem>>, vector<150x6xf32>
    %cst_9 = arith.constant dense<0.000000e+00> : vector<4x6xf32>
    %10 = tpu.matmul %8, %9, %cst_9 {dimension_numbers = #tpu.dot_dimension_numbers<[1], [0], [0], [1], [0, 0, 1, 1], [], []>, precision = #tpu.contract_precision<fp32>} : vector<4x150xf32>, vector<150x6xf32>, vector<4x6xf32> -> vector<4x6xf32>
    %11 = arith.mulf %10, %10 : vector<4x6xf32>
    %cst_10 = arith.constant dense<0.000000e+00> : vector<6xf32>
    %12 = vector.multi_reduction <add>, %11, %cst_10 [0] : vector<4x6xf32> to vector<6xf32>
    %13 = vector.shape_cast %12 : vector<6xf32> to vector<1x6xf32>
    %14 = vector.shape_cast %10 : vector<4x6xf32> to vector<4x6x1xf32>
    %15 = vector.shape_cast %10 : vector<4x6xf32> to vector<4x1x6xf32>
    %16 = vector.broadcast %14 : vector<4x6x1xf32> to vector<4x6x6xf32>
    %17 = vector.broadcast %15 : vector<4x1x6xf32> to vector<4x6x6xf32>
    %18 = arith.mulf %16, %17 : vector<4x6x6xf32>
    %cst_11 = arith.constant dense<0.000000e+00> : vector<6x6xf32>
    %19 = vector.multi_reduction <add>, %18, %cst_11 [0] : vector<4x6x6xf32> to vector<6x6xf32>
    %cst_12 = arith.constant 2.000000e+00 : f32
    %20 = vector.broadcast %cst_12 : f32 to vector<6x6xf32>
    %21 = arith.mulf %20, %19 : vector<6x6xf32>
    %22 = vector.broadcast %13 : vector<1x6xf32> to vector<6x6xf32>
    %23 = arith.subf %21, %22 : vector<6x6xf32>
    %c0_13 = arith.constant 0 : index
    %c0_14 = arith.constant 0 : index
    %24 = vector.load %arg3[%c0_13, %c0_14] : memref<6x6xf32, #tpu.memory_space<vmem>>, vector<6x6xf32>
    %cst_15 = arith.constant 5.000000e-01 : f32
    %25 = vector.broadcast %cst_15 : f32 to vector<6x6xf32>
    %26 = arith.cmpf ogt, %24, %25 : vector<6x6xf32>
    %cst_16 = arith.constant 0xFF800000 : f32
    %27 = vector.broadcast %cst_16 : f32 to vector<6x6xf32>
    %28 = arith.select %26, %23, %27 : vector<6x6xi1>, vector<6x6xf32>
    %cst_17 = arith.constant dense<0xFF800000> : vector<6xf32>
    %29 = vector.multi_reduction <maximumf>, %28, %cst_17 [1] : vector<6x6xf32> to vector<6xf32>
    %30 = vector.shape_cast %29 : vector<6xf32> to vector<6x1xf32>
    %31 = vector.broadcast %30 : vector<6x1xf32> to vector<6x6xf32>
    %32 = arith.cmpf oge, %28, %31 : vector<6x6xf32>
    %cst_18 = arith.constant 0xFF800000 : f32
    %33 = vector.broadcast %cst_18 : f32 to vector<6x6xf32>
    %34 = arith.select %32, %33, %28 : vector<6x6xi1>, vector<6x6xf32>
    %cst_19 = arith.constant dense<0xFF800000> : vector<6xf32>
    %35 = vector.multi_reduction <maximumf>, %34, %cst_19 [1] : vector<6x6xf32> to vector<6xf32>
    %36 = vector.shape_cast %35 : vector<6xf32> to vector<6x1xf32>
    %37 = vector.broadcast %36 : vector<6x1xf32> to vector<6x6xf32>
    %38 = arith.cmpf oge, %34, %37 : vector<6x6xf32>
    %cst_20 = arith.constant 0xFF800000 : f32
    %39 = vector.broadcast %cst_20 : f32 to vector<6x6xf32>
    %40 = arith.select %38, %39, %34 : vector<6x6xi1>, vector<6x6xf32>
    %cst_21 = arith.constant dense<0xFF800000> : vector<6xf32>
    %41 = vector.multi_reduction <maximumf>, %40, %cst_21 [1] : vector<6x6xf32> to vector<6xf32>
    %42 = vector.shape_cast %41 : vector<6xf32> to vector<6x1xf32>
    %43 = vector.broadcast %42 : vector<6x1xf32> to vector<6x6xf32>
    %44 = arith.cmpf oge, %23, %43 : vector<6x6xf32>
    %45 = arith.andi %26, %44 : vector<6x6xi1>
    %c0_22 = arith.constant 0 : index
    %c0_23 = arith.constant 0 : index
    %46 = vector.load %arg7[%c0_22, %c0_23] : memref<4x4xf32, #tpu.memory_space<vmem>>, vector<4x4xf32>
    %cst_24 = arith.constant dense<0.000000e+00> : vector<4x6xf32>
    %47 = tpu.matmul %46, %10, %cst_24 {dimension_numbers = #tpu.dot_dimension_numbers<[1], [0], [0], [1], [0, 0, 1, 1], [], []>, precision = #tpu.contract_precision<fp32>} : vector<4x4xf32>, vector<4x6xf32>, vector<4x6xf32> -> vector<4x6xf32>
    %c0_25 = arith.constant 0 : index
    %c0_26 = arith.constant 0 : index
    %48 = vector.load %arg8[%c0_25, %c0_26] : memref<4x4xf32, #tpu.memory_space<vmem>>, vector<4x4xf32>
    %cst_27 = arith.constant dense<0.000000e+00> : vector<4x6xf32>
    %49 = tpu.matmul %48, %10, %cst_27 {dimension_numbers = #tpu.dot_dimension_numbers<[1], [0], [0], [1], [0, 0, 1, 1], [], []>, precision = #tpu.contract_precision<fp32>} : vector<4x4xf32>, vector<4x6xf32>, vector<4x6xf32> -> vector<4x6xf32>
    %50 = vector.shape_cast %45 : vector<6x6xi1> to vector<1x6x6xi1>
    %51 = vector.shape_cast %47 : vector<4x6xf32> to vector<4x1x6xf32>
    %cst_28 = arith.constant 0xFF800000 : f32
    %52 = vector.shape_cast %50 : vector<1x6x6xi1> to vector<1x6x6xi1>
    %53 = vector.broadcast %52 : vector<1x6x6xi1> to vector<4x6x6xi1>
    %54 = vector.shape_cast %51 : vector<4x1x6xf32> to vector<4x1x6xf32>
    %55 = vector.broadcast %54 : vector<4x1x6xf32> to vector<4x6x6xf32>
    %56 = vector.broadcast %cst_28 : f32 to vector<4x6x6xf32>
    %57 = arith.select %53, %55, %56 : vector<4x6x6xi1>, vector<4x6x6xf32>
    %cst_29 = arith.constant dense<0xFF800000> : vector<4x6xf32>
    %58 = vector.multi_reduction <maximumf>, %57, %cst_29 [2] : vector<4x6x6xf32> to vector<4x6xf32>
    %59 = arith.addf %49, %58 : vector<4x6xf32>
    %c0_30 = arith.constant 0 : index
    %c0_31 = arith.constant 0 : index
    %60 = vector.load %arg9[%c0_30, %c0_31] : memref<4x1xf32, #tpu.memory_space<vmem>>, vector<4x1xf32>
    %61 = vector.broadcast %60 : vector<4x1xf32> to vector<4x6xf32>
    %62 = arith.addf %59, %61 : vector<4x6xf32>
    %cst_32 = arith.constant 0.000000e+00 : f32
    %63 = vector.broadcast %cst_32 : f32 to vector<4x6xf32>
    %64 = arith.cmpf ogt, %62, %63 : vector<4x6xf32>
    %cst_33 = arith.constant 2.000000e-01 : f32
    %65 = vector.broadcast %cst_33 : f32 to vector<4x6xf32>
    %66 = arith.mulf %65, %62 : vector<4x6xf32>
    %67 = arith.select %64, %62, %66 : vector<4x6xi1>, vector<4x6xf32>
    %c0_34 = arith.constant 0 : index
    %c0_35 = arith.constant 0 : index
    %68 = vector.load %arg10[%c0_34, %c0_35] : memref<16x4xf32, #tpu.memory_space<vmem>>, vector<16x4xf32>
    %cst_36 = arith.constant dense<0.000000e+00> : vector<16x6xf32>
    %69 = tpu.matmul %68, %67, %cst_36 {dimension_numbers = #tpu.dot_dimension_numbers<[1], [0], [0], [1], [0, 0, 1, 1], [], []>, precision = #tpu.contract_precision<fp32>} : vector<16x4xf32>, vector<4x6xf32>, vector<16x6xf32> -> vector<16x6xf32>
    %c0_37 = arith.constant 0 : index
    %c0_38 = arith.constant 0 : index
    %70 = vector.load %arg11[%c0_37, %c0_38] : memref<16x1xf32, #tpu.memory_space<vmem>>, vector<16x1xf32>
    %71 = vector.broadcast %70 : vector<16x1xf32> to vector<16x6xf32>
    %72 = arith.addf %69, %71 : vector<16x6xf32>
    %73 = arith.negf %72 : vector<16x6xf32>
    %74 = math.exp %73 : vector<16x6xf32>
    %cst_39 = arith.constant 1.000000e+00 : f32
    %75 = vector.broadcast %cst_39 : f32 to vector<16x6xf32>
    %76 = arith.addf %75, %74 : vector<16x6xf32>
    %77 = arith.divf %75, %76 : vector<16x6xf32>
    %c0_40 = arith.constant 0 : index
    %c0_41 = arith.constant 0 : index
    %c0_42 = arith.constant 0 : index
    %c0_43 = arith.constant 0 : index
    %c0_44 = arith.constant 0 : index
    %78 = vector.load %arg1[%c0_40, %c0_41, %c0_42, %c0_43, %c0_44] : memref<1x1x6x16x400xf32, #tpu.memory_space<vmem>>, vector<1x1x1x16x400xf32>
    %79 = vector.shape_cast %78 : vector<1x1x1x16x400xf32> to vector<16x400xf32>
    %80 = vector.extract_strided_slice %77 {offsets = [0, 0], sizes = [16, 1], strides = [1, 1]} : vector<16x6xf32> to vector<16x1xf32>
    %81 = vector.broadcast %80 : vector<16x1xf32> to vector<16x400xf32>
    %82 = arith.mulf %79, %81 : vector<16x400xf32>
    %c0_45 = arith.constant 0 : index
    %c0_46 = arith.constant 0 : index
    %c1 = arith.constant 1 : index
    %c0_47 = arith.constant 0 : index
    %c0_48 = arith.constant 0 : index
    %83 = vector.load %arg1[%c0_45, %c0_46, %c1, %c0_47, %c0_48] : memref<1x1x6x16x400xf32, #tpu.memory_space<vmem>>, vector<1x1x1x16x400xf32>
    %84 = vector.shape_cast %83 : vector<1x1x1x16x400xf32> to vector<16x400xf32>
    %85 = vector.extract_strided_slice %77 {offsets = [0, 1], sizes = [16, 1], strides = [1, 1]} : vector<16x6xf32> to vector<16x1xf32>
    %86 = vector.broadcast %85 : vector<16x1xf32> to vector<16x400xf32>
    %87 = arith.mulf %84, %86 : vector<16x400xf32>
    %88 = arith.addf %82, %87 : vector<16x400xf32>
    %c0_49 = arith.constant 0 : index
    %c0_50 = arith.constant 0 : index
    %c2 = arith.constant 2 : index
    %c0_51 = arith.constant 0 : index
    %c0_52 = arith.constant 0 : index
    %89 = vector.load %arg1[%c0_49, %c0_50, %c2, %c0_51, %c0_52] : memref<1x1x6x16x400xf32, #tpu.memory_space<vmem>>, vector<1x1x1x16x400xf32>
    %90 = vector.shape_cast %89 : vector<1x1x1x16x400xf32> to vector<16x400xf32>
    %91 = vector.extract_strided_slice %77 {offsets = [0, 2], sizes = [16, 1], strides = [1, 1]} : vector<16x6xf32> to vector<16x1xf32>
    %92 = vector.broadcast %91 : vector<16x1xf32> to vector<16x400xf32>
    %93 = arith.mulf %90, %92 : vector<16x400xf32>
    %94 = arith.addf %88, %93 : vector<16x400xf32>
    %c0_53 = arith.constant 0 : index
    %c0_54 = arith.constant 0 : index
    %c3 = arith.constant 3 : index
    %c0_55 = arith.constant 0 : index
    %c0_56 = arith.constant 0 : index
    %95 = vector.load %arg1[%c0_53, %c0_54, %c3, %c0_55, %c0_56] : memref<1x1x6x16x400xf32, #tpu.memory_space<vmem>>, vector<1x1x1x16x400xf32>
    %96 = vector.shape_cast %95 : vector<1x1x1x16x400xf32> to vector<16x400xf32>
    %97 = vector.extract_strided_slice %77 {offsets = [0, 3], sizes = [16, 1], strides = [1, 1]} : vector<16x6xf32> to vector<16x1xf32>
    %98 = vector.broadcast %97 : vector<16x1xf32> to vector<16x400xf32>
    %99 = arith.mulf %96, %98 : vector<16x400xf32>
    %100 = arith.addf %94, %99 : vector<16x400xf32>
    %c0_57 = arith.constant 0 : index
    %c0_58 = arith.constant 0 : index
    %c4 = arith.constant 4 : index
    %c0_59 = arith.constant 0 : index
    %c0_60 = arith.constant 0 : index
    %101 = vector.load %arg1[%c0_57, %c0_58, %c4, %c0_59, %c0_60] : memref<1x1x6x16x400xf32, #tpu.memory_space<vmem>>, vector<1x1x1x16x400xf32>
    %102 = vector.shape_cast %101 : vector<1x1x1x16x400xf32> to vector<16x400xf32>
    %103 = vector.extract_strided_slice %77 {offsets = [0, 4], sizes = [16, 1], strides = [1, 1]} : vector<16x6xf32> to vector<16x1xf32>
    %104 = vector.broadcast %103 : vector<16x1xf32> to vector<16x400xf32>
    %105 = arith.mulf %102, %104 : vector<16x400xf32>
    %106 = arith.addf %100, %105 : vector<16x400xf32>
    %c0_61 = arith.constant 0 : index
    %c0_62 = arith.constant 0 : index
    %c5 = arith.constant 5 : index
    %c0_63 = arith.constant 0 : index
    %c0_64 = arith.constant 0 : index
    %107 = vector.load %arg1[%c0_61, %c0_62, %c5, %c0_63, %c0_64] : memref<1x1x6x16x400xf32, #tpu.memory_space<vmem>>, vector<1x1x1x16x400xf32>
    %108 = vector.shape_cast %107 : vector<1x1x1x16x400xf32> to vector<16x400xf32>
    %109 = vector.extract_strided_slice %77 {offsets = [0, 5], sizes = [16, 1], strides = [1, 1]} : vector<16x6xf32> to vector<16x1xf32>
    %110 = vector.broadcast %109 : vector<16x1xf32> to vector<16x400xf32>
    %111 = arith.mulf %108, %110 : vector<16x400xf32>
    %112 = arith.addf %106, %111 : vector<16x400xf32>
    %c0_65 = arith.constant 0 : index
    %c0_66 = arith.constant 0 : index
    %c0_67 = arith.constant 0 : index
    %c0_68 = arith.constant 0 : index
    %113 = vector.load %arg12[%c0_65, %c0_66, %c0_67, %c0_68] : memref<1x1x16x400xf32, #tpu.memory_space<vmem>>, vector<1x1x16x400xf32>
    %114 = vector.shape_cast %113 : vector<1x1x16x400xf32> to vector<16x400xf32>
    %115 = vector.shape_cast %112 : vector<16x400xf32> to vector<1x1x16x400xf32>
    tpu.vector_store %arg12[%c0_65, %c0_66, %c0_67, %c0_68], %115 {strides = array<i32>} : memref<1x1x16x400xf32, #tpu.memory_space<vmem>>, vector<1x1x16x400xf32>,
    return
  }
  func.func @transform_0(%arg0: i32) -> (i32, i32, i32, i32, i32) {
    %c0_i32 = arith.constant 0 : i32
    %c0_i32_0 = arith.constant 0 : i32
    %c0_i32_1 = arith.constant 0 : i32
    %c0_i32_2 = arith.constant 0 : i32
    %c0_i32_3 = arith.constant 0 : i32
    return %arg0, %c0_i32, %c0_i32_0, %c0_i32_1, %c0_i32_2 : i32, i32, i32, i32, i32
  }
  func.func @transform_1(%arg0: i32) -> (i32, i32, i32) {
    %c0_i32 = arith.constant 0 : i32
    %c0_i32_0 = arith.constant 0 : i32
    %c0_i32_1 = arith.constant 0 : i32
    return %arg0, %c0_i32, %c0_i32_0 : i32, i32, i32
  }
  func.func @transform_2(%arg0: i32) -> (i32, i32) {
    %c0_i32 = arith.constant 0 : i32
    %c0_i32_0 = arith.constant 0 : i32
    %c0_i32_1 = arith.constant 0 : i32
    return %c0_i32, %c0_i32_0 : i32, i32
  }
  func.func @transform_3(%arg0: i32) -> (i32, i32) {
    %c0_i32 = arith.constant 0 : i32
    %c0_i32_0 = arith.constant 0 : i32
    %c0_i32_1 = arith.constant 0 : i32
    return %c0_i32, %c0_i32_0 : i32, i32
  }
  func.func @transform_4(%arg0: i32) -> (i32, i32) {
    %c0_i32 = arith.constant 0 : i32
    %c0_i32_0 = arith.constant 0 : i32
    %c0_i32_1 = arith.constant 0 : i32
    return %c0_i32, %c0_i32_0 : i32, i32
  }
  func.func @transform_5(%arg0: i32) -> (i32, i32) {
    %c0_i32 = arith.constant 0 : i32
    %c0_i32_0 = arith.constant 0 : i32
    %c0_i32_1 = arith.constant 0 : i32
    return %c0_i32, %c0_i32_0 : i32, i32
  }
  func.func @transform_6(%arg0: i32) -> (i32, i32) {
    %c0_i32 = arith.constant 0 : i32
    %c0_i32_0 = arith.constant 0 : i32
    %c0_i32_1 = arith.constant 0 : i32
    return %c0_i32, %c0_i32_0 : i32, i32
  }
  func.func @transform_7(%arg0: i32) -> (i32, i32) {
    %c0_i32 = arith.constant 0 : i32
    %c0_i32_0 = arith.constant 0 : i32
    %c0_i32_1 = arith.constant 0 : i32
    return %c0_i32, %c0_i32_0 : i32, i32
  }
  func.func @transform_8(%arg0: i32) -> (i32, i32) {
    %c0_i32 = arith.constant 0 : i32
    %c0_i32_0 = arith.constant 0 : i32
    %c0_i32_1 = arith.constant 0 : i32
    return %c0_i32, %c0_i32_0 : i32, i32
  }
  func.func @transform_9(%arg0: i32) -> (i32, i32) {
    %c0_i32 = arith.constant 0 : i32
    %c0_i32_0 = arith.constant 0 : i32
    %c0_i32_1 = arith.constant 0 : i32
    return %c0_i32, %c0_i32_0 : i32, i32
  }
  func.func @transform_10(%arg0: i32) -> (i32, i32) {
    %c0_i32 = arith.constant 0 : i32
    %c0_i32_0 = arith.constant 0 : i32
    %c0_i32_1 = arith.constant 0 : i32
    return %c0_i32, %c0_i32_0 : i32, i32
  }
  func.func @transform_11(%arg0: i32) -> (i32, i32, i32, i32) {
    %c0_i32 = arith.constant 0 : i32
    %c0_i32_0 = arith.constant 0 : i32
    %c0_i32_1 = arith.constant 0 : i32
    %c0_i32_2 = arith.constant 0 : i32
    return %arg0, %c0_i32, %c0_i32_0, %c0_i32_1 : i32, i32, i32, i32
  }
}

</mosaic_0001>

<llo_original>
// kernel: tpu_custom_call.1
$region0: #{tpu_custom_call.1}
  #allocation0 [shape = 'u32[]', space=smem, size = 0x4, offset = 0x4, fixed_abs, tag = 'smem constant byte address 0x4 - core index']
  #allocation1 [shape = 'u32[144,128]{1,0:T(1,128)}', space=vmem, size = 0x12000, scoped, tag = 'internal scratch']
  %s0 = inlined_call_operand.hbm [shape: f32[2,1,6,16,400], index: 0, kind: input, shape index: {}]
  %s1 = inlined_call_operand.vmem [shape: f32[2,16,150], index: 1, kind: input, shape index: {}]
  %s2 = inlined_call_operand.vmem [shape: f32[6,6], index: 2, kind: input, shape index: {}]
  %s3 = inlined_call_operand.vmem [shape: f32[4,16], index: 3, kind: input, shape index: {}]
  %s4 = inlined_call_operand.vmem [shape: f32[4,1], index: 4, kind: input, shape index: {}]
  %s5 = inlined_call_operand.vmem [shape: f32[150,6], index: 5, kind: input, shape index: {}]
  %s6 = inlined_call_operand.vmem [shape: f32[4,4], index: 6, kind: input, shape index: {}]
  %s7 = inlined_call_operand.vmem [shape: f32[4,4], index: 7, kind: input, shape index: {}]
  %s8 = inlined_call_operand.vmem [shape: f32[4,1], index: 8, kind: input, shape index: {}]
  %s9 = inlined_call_operand.vmem [shape: f32[16,4], index: 9, kind: input, shape index: {}]
  %s10 = inlined_call_operand.vmem [shape: f32[16,1], index: 10, kind: input, shape index: {}]
  %s11 = inlined_call_operand.hbm [shape: f32[2,1,16,400], index: 11, kind: output, shape index: {}]
  %s12 = sld [smem:[#allocation0]]
  $region81: #{tpu_custom_call.1} parent=0
    _
  %s14 = ssub.s32 1, %s12
  %s15 = scalar_select 0, %s14, %s12
  $region1: #{tpu_custom_call.1} parent=0
    #allocation2 [shape = 'u8[393216]{0}', space=vmem, size = 0x60000, scoped, tag = 'input window, operand 0']
    #allocation3 [shape = 's32[2]{0}', space=sflag, size = 0x8, scoped, tag = 'scoped memory for tpu_custom_call.1']
    #allocation4 [shape = 's32[2]{0}', space=sflag, size = 0x8, scoped, tag = 'scoped memory for tpu_custom_call.1']
    #allocation5 [shape = 'u8[65536]{0}', space=vmem, size = 0x10000, scoped, tag = 'output window, operand 0']
    %16 = vsyncpa [#allocation3], 0
    %s17 = scalar_lea.sflag [#allocation3], 1
    %18 = vsyncpa %s17, 0
    %19 = vsyncpa [#allocation4], 0
    %s20 = scalar_lea.sflag [#allocation4], 1
    %21 = vsyncpa %s20, 0
    loop: start=0, step=1, limit=4
    $region2: #{tpu_custom_call.1} parent=1 // loop_pre_header
      _
    $region3: #{tpu_custom_call.1} parent=1 // loop_header
      %s23 = sphi 0, %s27
      %p24 = scmp.ge.s32.totalorder %s23, 4
      %s33 = sphi 0, %s35
      %s36 = sphi 0, %s33
      %s37 = sphi 0, %s36
      %s53 = sphi 0, %s37
      %s59 = sphi 0, %s61
      %s62 = sphi 0, %s59
      %s63 = sphi 0, %s62
      %s79 = sphi 0, %s63
      %s83 = sphi 0, %s83
      %s85 = sphi 0, %s83
      %s86 = sphi 0, %s85
      %s100 = sphi 0, %s86
      %s104 = sphi 0, %s104
      %s106 = sphi 0, %s104
      %s107 = sphi 0, %s106
      %s121 = sphi 0, %s107
      %s125 = sphi 0, %s125
      %s127 = sphi 0, %s125
      %s128 = sphi 0, %s127
      %s142 = sphi 0, %s128
      %s146 = sphi 0, %s146
      %s148 = sphi 0, %s146
      %s149 = sphi 0, %s148
      %s163 = sphi 0, %s149
      %s167 = sphi 0, %s167
      %s169 = sphi 0, %s167
      %s170 = sphi 0, %s169
      %s184 = sphi 0, %s170
      %s188 = sphi 0, %s188
      %s190 = sphi 0, %s188
      %s191 = sphi 0, %s190
      %s205 = sphi 0, %s191
      %s209 = sphi 0, %s209
      %s211 = sphi 0, %s209
      %s212 = sphi 0, %s211
      %s226 = sphi 0, %s212
      %s230 = sphi 0, %s230
      %s232 = sphi 0, %s230
      %s233 = sphi 0, %s232
      %s247 = sphi 0, %s233
      %s251 = sphi 0, %s251
      %s253 = sphi 0, %s251
      %s254 = sphi 0, %s253
      %s268 = sphi 0, %s254
      %s274 = sphi 0, %s276
      %s277 = sphi 0, %s274
      %s278 = sphi 0, %s277
      %s294 = sphi 0, %s278
    $region4: #{tpu_custom_call.1} parent=1 // loop_header_branch
      %26 = sbr.rel (%p24) target = $region8
    $region5: #{tpu_custom_call.1} parent=1 // loop_body
      %s28 = ssub.s32 %s23, 1
      %s29 = ssub.s32 %s23, 2
      %s30 = sadd.s32 %s23, 1
      %s31 = ssub.s32 %s23, %s30
      %p32 = scmp.eq.s32.totalorder %s31, 0
      %s34 = sadd.s32 %s33, 1
      %s35 = scalar_select %p32, %s33, %s34
      %p38 = pneg %p32
      %p39 = scmp.eq.s32.totalorder %s23, 1
      %p40 = por %p38, %p39
      %p41 = scmp.ne.s32.totalorder %s33, %s36
      %p42 = scmp.eq.s32.totalorder %s23, 0
      %p43 = por %p41, %p42
      %p44 = scmp.ne.s32.totalorder %s33, %s36
      %p45 = scmp.eq.s32.totalorder %s28, 1
      %p46 = por %p44, %p45
      %p47 = scmp.ne.s32.totalorder %s36, %s37
      %p48 = scmp.eq.s32.totalorder %s28, 0
      %p49 = por %p47, %p48
      %p50 = scmp.ne.s32.totalorder %s36, %s37
      %p51 = scmp.eq.s32.totalorder %s29, 1
      %p52 = por %p50, %p51
      %p54 = scmp.ne.s32.totalorder %s37, %s53
      %p55 = scmp.eq.s32.totalorder %s29, 0
      %p56 = por %p54, %p55
      %s57 = ssub.s32 %s23, %s30
      %p58 = scmp.eq.s32.totalorder %s57, 0
      %s60 = sadd.s32 %s59, 1
      %s61 = scalar_select %p58, %s59, %s60
      %p64 = pneg %p58
      %p65 = scmp.eq.s32.totalorder %s23, 1
      %p66 = por %p64, %p65
      %p67 = scmp.ne.s32.totalorder %s59, %s62
      %p68 = scmp.eq.s32.totalorder %s23, 0
      %p69 = por %p67, %p68
      %p70 = scmp.ne.s32.totalorder %s59, %s62
      %p71 = scmp.eq.s32.totalorder %s28, 1
      %p72 = por %p70, %p71
      %p73 = scmp.ne.s32.totalorder %s62, %s63
      %p74 = scmp.eq.s32.totalorder %s28, 0
      %p75 = por %p73, %p74
      %p76 = scmp.ne.s32.totalorder %s62, %s63
      %p77 = scmp.eq.s32.totalorder %s29, 1
      %p78 = por %p76, %p77
      %p80 = scmp.ne.s32.totalorder %s63, %s79
      %p81 = scmp.eq.s32.totalorder %s29, 0
      %p82 = por %p80, %p81
      %s84 = sadd.s32 %s83, 1
      %p87 = scmp.eq.s32.totalorder %s23, 1
      %p88 = scmp.ne.s32.totalorder %s83, %s85
      %p89 = scmp.eq.s32.totalorder %s23, 0
      %p90 = por %p88, %p89
      %p91 = scmp.ne.s32.totalorder %s83, %s85
      %p92 = scmp.eq.s32.totalorder %s28, 1
      %p93 = por %p91, %p92
      %p94 = scmp.ne.s32.totalorder %s85, %s86
      %p95 = scmp.eq.s32.totalorder %s28, 0
      %p96 = por %p94, %p95
      %p97 = scmp.ne.s32.totalorder %s85, %s86
      %p98 = scmp.eq.s32.totalorder %s29, 1
      %p99 = por %p97, %p98
      %p101 = scmp.ne.s32.totalorder %s86, %s100
      %p102 = scmp.eq.s32.totalorder %s29, 0
      %p103 = por %p101, %p102
      %s105 = sadd.s32 %s104, 1
      %p108 = scmp.eq.s32.totalorder %s23, 1
      %p109 = scmp.ne.s32.totalorder %s104, %s106
      %p110 = scmp.eq.s32.totalorder %s23, 0
      %p111 = por %p109, %p110
      %p112 = scmp.ne.s32.totalorder %s104, %s106
      %p113 = scmp.eq.s32.totalorder %s28, 1
      %p114 = por %p112, %p113
      %p115 = scmp.ne.s32.totalorder %s106, %s107
      %p116 = scmp.eq.s32.totalorder %s28, 0
      %p117 = por %p115, %p116
      %p118 = scmp.ne.s32.totalorder %s106, %s107
      %p119 = scmp.eq.s32.totalorder %s29, 1
      %p120 = por %p118, %p119
      %p122 = scmp.ne.s32.totalorder %s107, %s121
      %p123 = scmp.eq.s32.totalorder %s29, 0
      %p124 = por %p122, %p123
      %s126 = sadd.s32 %s125, 1
      %p129 = scmp.eq.s32.totalorder %s23, 1
      %p130 = scmp.ne.s32.totalorder %s125, %s127
      %p131 = scmp.eq.s32.totalorder %s23, 0
      %p132 = por %p130, %p131
      %p133 = scmp.ne.s32.totalorder %s125, %s127
      %p134 = scmp.eq.s32.totalorder %s28, 1
      %p135 = por %p133, %p134
      %p136 = scmp.ne.s32.totalorder %s127, %s128
      %p137 = scmp.eq.s32.totalorder %s28, 0
      %p138 = por %p136, %p137
      %p139 = scmp.ne.s32.totalorder %s127, %s128
      %p140 = scmp.eq.s32.totalorder %s29, 1
      %p141 = por %p139, %p140
      %p143 = scmp.ne.s32.totalorder %s128, %s142
      %p144 = scmp.eq.s32.totalorder %s29, 0
      %p145 = por %p143, %p144
      %s147 = sadd.s32 %s146, 1
      %p150 = scmp.eq.s32.totalorder %s23, 1
      %p151 = scmp.ne.s32.totalorder %s146, %s148
      %p152 = scmp.eq.s32.totalorder %s23, 0
      %p153 = por %p151, %p152
      %p154 = scmp.ne.s32.totalorder %s146, %s148
      %p155 = scmp.eq.s32.totalorder %s28, 1
      %p156 = por %p154, %p155
      %p157 = scmp.ne.s32.totalorder %s148, %s149
      %p158 = scmp.eq.s32.totalorder %s28, 0
      %p159 = por %p157, %p158
      %p160 = scmp.ne.s32.totalorder %s148, %s149
      %p161 = scmp.eq.s32.totalorder %s29, 1
      %p162 = por %p160, %p161
      %p164 = scmp.ne.s32.totalorder %s149, %s163
      %p165 = scmp.eq.s32.totalorder %s29, 0
      %p166 = por %p164, %p165
      %s168 = sadd.s32 %s167, 1
      %p171 = scmp.eq.s32.totalorder %s23, 1
      %p172 = scmp.ne.s32.totalorder %s167, %s169
      %p173 = scmp.eq.s32.totalorder %s23, 0
      %p174 = por %p172, %p173
      %p175 = scmp.ne.s32.totalorder %s167, %s169
      %p176 = scmp.eq.s32.totalorder %s28, 1
      %p177 = por %p175, %p176
      %p178 = scmp.ne.s32.totalorder %s169, %s170
      %p179 = scmp.eq.s32.totalorder %s28, 0
      %p180 = por %p178, %p179
      %p181 = scmp.ne.s32.totalorder %s169, %s170
      %p182 = scmp.eq.s32.totalorder %s29, 1
      %p183 = por %p181, %p182
      %p185 = scmp.ne.s32.totalorder %s170, %s184
      %p186 = scmp.eq.s32.totalorder %s29, 0
      %p187 = por %p185, %p186
      %s189 = sadd.s32 %s188, 1
      %p192 = scmp.eq.s32.totalorder %s23, 1
      %p193 = scmp.ne.s32.totalorder %s188, %s190
      %p194 = scmp.eq.s32.totalorder %s23, 0
      %p195 = por %p193, %p194
      %p196 = scmp.ne.s32.totalorder %s188, %s190
      %p197 = scmp.eq.s32.totalorder %s28, 1
      %p198 = por %p196, %p197
      %p199 = scmp.ne.s32.totalorder %s190, %s191
      %p200 = scmp.eq.s32.totalorder %s28, 0
      %p201 = por %p199, %p200
      %p202 = scmp.ne.s32.totalorder %s190, %s191
      %p203 = scmp.eq.s32.totalorder %s29, 1
      %p204 = por %p202, %p203
      %p206 = scmp.ne.s32.totalorder %s191, %s205
      %p207 = scmp.eq.s32.totalorder %s29, 0
      %p208 = por %p206, %p207
      %s210 = sadd.s32 %s209, 1
      %p213 = scmp.eq.s32.totalorder %s23, 1
      %p214 = scmp.ne.s32.totalorder %s209, %s211
      %p215 = scmp.eq.s32.totalorder %s23, 0
      %p216 = por %p214, %p215
      %p217 = scmp.ne.s32.totalorder %s209, %s211
      %p218 = scmp.eq.s32.totalorder %s28, 1
      %p219 = por %p217, %p218
      %p220 = scmp.ne.s32.totalorder %s211, %s212
      %p221 = scmp.eq.s32.totalorder %s28, 0
      %p222 = por %p220, %p221
      %p223 = scmp.ne.s32.totalorder %s211, %s212
      %p224 = scmp.eq.s32.totalorder %s29, 1
      %p225 = por %p223, %p224
      %p227 = scmp.ne.s32.totalorder %s212, %s226
      %p228 = scmp.eq.s32.totalorder %s29, 0
      %p229 = por %p227, %p228
      %s231 = sadd.s32 %s230, 1
      %p234 = scmp.eq.s32.totalorder %s23, 1
      %p235 = scmp.ne.s32.totalorder %s230, %s232
      %p236 = scmp.eq.s32.totalorder %s23, 0
      %p237 = por %p235, %p236
      %p238 = scmp.ne.s32.totalorder %s230, %s232
      %p239 = scmp.eq.s32.totalorder %s28, 1
      %p240 = por %p238, %p239
      %p241 = scmp.ne.s32.totalorder %s232, %s233
      %p242 = scmp.eq.s32.totalorder %s28, 0
      %p243 = por %p241, %p242
      %p244 = scmp.ne.s32.totalorder %s232, %s233
      %p245 = scmp.eq.s32.totalorder %s29, 1
      %p246 = por %p244, %p245
      %p248 = scmp.ne.s32.totalorder %s233, %s247
      %p249 = scmp.eq.s32.totalorder %s29, 0
      %p250 = por %p248, %p249
      %s252 = sadd.s32 %s251, 1
      %p255 = scmp.eq.s32.totalorder %s23, 1
      %p256 = scmp.ne.s32.totalorder %s251, %s253
      %p257 = scmp.eq.s32.totalorder %s23, 0
      %p258 = por %p256, %p257
      %p259 = scmp.ne.s32.totalorder %s251, %s253
      %p260 = scmp.eq.s32.totalorder %s28, 1
      %p261 = por %p259, %p260
      %p262 = scmp.ne.s32.totalorder %s253, %s254
      %p263 = scmp.eq.s32.totalorder %s28, 0
      %p264 = por %p262, %p263
      %p265 = scmp.ne.s32.totalorder %s253, %s254
      %p266 = scmp.eq.s32.totalorder %s29, 1
      %p267 = por %p265, %p266
      %p269 = scmp.ne.s32.totalorder %s254, %s268
      %p270 = scmp.eq.s32.totalorder %s29, 0
      %p271 = por %p269, %p270
      %s272 = ssub.s32 %s23, %s30
      %p273 = scmp.eq.s32.totalorder %s272, 0
      %s275 = sadd.s32 %s274, 1
      %s276 = scalar_select %p273, %s274, %s275
      %p279 = pneg %p273
      %p280 = scmp.eq.s32.totalorder %s23, 1
      %p281 = por %p279, %p280
      %p282 = scmp.ne.s32.totalorder %s274, %s277
      %p283 = scmp.eq.s32.totalorder %s23, 0
      %p284 = por %p282, %p283
      %p285 = scmp.ne.s32.totalorder %s274, %s277
      %p286 = scmp.eq.s32.totalorder %s28, 1
      %p287 = por %p285, %p286
      %p288 = scmp.ne.s32.totalorder %s277, %s278
      %p289 = scmp.eq.s32.totalorder %s28, 0
      %p290 = por %p288, %p289
      %p291 = scmp.ne.s32.totalorder %s277, %s278
      %p292 = scmp.eq.s32.totalorder %s29, 1
      %p293 = por %p291, %p292
      %p295 = scmp.ne.s32.totalorder %s278, %s294
      %p296 = scmp.eq.s32.totalorder %s29, 0
      %p297 = por %p295, %p296
      %p298 = scmp.le.s32.totalorder 1, %s23
      %p299 = scmp.lt.s32.totalorder %s23, 3
      %p300 = pnand %p298, %p299
      %p301 = pneg %p300
      // Predicated region
      $region9: #{tpu_custom_call.1} parent=5 // pred_check
        _
      $region10: #{tpu_custom_call.1} parent=5 // pred_check_branch
        %303 = sbr.rel (%p300) target = $region12
      $region11: #{tpu_custom_call.1} parent=5 // pred_region
        %s304 = ssub.s32 %s23, 1
        // Predicated region
        $region13: #{tpu_custom_call.1} parent=11 // pred_check
          %p305 = pneg %p96
        $region14: #{tpu_custom_call.1} parent=11 // pred_check_branch
          %307 = sbr.rel (%p305) target = $region16
        $region15: #{tpu_custom_call.1} parent=11 // pred_region
          _
        $region16: #{tpu_custom_call.1} parent=11 // pred_fallthru
          _
        // Predicated region
        $region17: #{tpu_custom_call.1} parent=11 // pred_check
          %p308 = pneg %p117
        $region18: #{tpu_custom_call.1} parent=11 // pred_check_branch
          %310 = sbr.rel (%p308) target = $region20
        $region19: #{tpu_custom_call.1} parent=11 // pred_region
          _
        $region20: #{tpu_custom_call.1} parent=11 // pred_fallthru
          _
        // Predicated region
        $region21: #{tpu_custom_call.1} parent=11 // pred_check
          %p311 = pneg %p138
        $region22: #{tpu_custom_call.1} parent=11 // pred_check_branch
          %313 = sbr.rel (%p311) target = $region24
        $region23: #{tpu_custom_call.1} parent=11 // pred_region
          _
        $region24: #{tpu_custom_call.1} parent=11 // pred_fallthru
          _
        // Predicated region
        $region25: #{tpu_custom_call.1} parent=11 // pred_check
          %p314 = pneg %p159
        $region26: #{tpu_custom_call.1} parent=11 // pred_check_branch
          %316 = sbr.rel (%p314) target = $region28
        $region27: #{tpu_custom_call.1} parent=11 // pred_region
          _
        $region28: #{tpu_custom_call.1} parent=11 // pred_fallthru
          _
        // Predicated region
        $region29: #{tpu_custom_call.1} parent=11 // pred_check
          %p317 = pneg %p180
        $region30: #{tpu_custom_call.1} parent=11 // pred_check_branch
          %319 = sbr.rel (%p317) target = $region32
        $region31: #{tpu_custom_call.1} parent=11 // pred_region
          _
        $region32: #{tpu_custom_call.1} parent=11 // pred_fallthru
          _
        // Predicated region
        $region33: #{tpu_custom_call.1} parent=11 // pred_check
          %p320 = pneg %p201
        $region34: #{tpu_custom_call.1} parent=11 // pred_check_branch
          %322 = sbr.rel (%p320) target = $region36
        $region35: #{tpu_custom_call.1} parent=11 // pred_region
          _
        $region36: #{tpu_custom_call.1} parent=11 // pred_fallthru
          _
        // Predicated region
        $region37: #{tpu_custom_call.1} parent=11 // pred_check
          %p323 = pneg %p222
        $region38: #{tpu_custom_call.1} parent=11 // pred_check_branch
          %325 = sbr.rel (%p323) target = $region40
        $region39: #{tpu_custom_call.1} parent=11 // pred_region
          _
        $region40: #{tpu_custom_call.1} parent=11 // pred_fallthru
          _
        // Predicated region
        $region41: #{tpu_custom_call.1} parent=11 // pred_check
          %p326 = pneg %p243
        $region42: #{tpu_custom_call.1} parent=11 // pred_check_branch
          %328 = sbr.rel (%p326) target = $region44
        $region43: #{tpu_custom_call.1} parent=11 // pred_region
          _
        $region44: #{tpu_custom_call.1} parent=11 // pred_fallthru
          _
        // Predicated region
        $region45: #{tpu_custom_call.1} parent=11 // pred_check
          %p329 = pneg %p264
        $region46: #{tpu_custom_call.1} parent=11 // pred_check_branch
          %331 = sbr.rel (%p329) target = $region48
        $region47: #{tpu_custom_call.1} parent=11 // pred_region
          _
        $region48: #{tpu_custom_call.1} parent=11 // pred_fallthru
          _
      $region12: #{tpu_custom_call.1} parent=5 // pred_fallthru
        _
      %p332 = scmp.lt.s32.totalorder %s23, 2
      // Predicated region
      $region49: #{tpu_custom_call.1} parent=5 // pred_check
        %p333 = pneg %p332
      $region50: #{tpu_custom_call.1} parent=5 // pred_check_branch
        %335 = sbr.rel (%p333) target = $region52
      $region51: #{tpu_custom_call.1} parent=5 // pred_region
        // Predicated region
        $region53: #{tpu_custom_call.1} parent=51 // pred_check
          %p336 = pneg %p43
        $region54: #{tpu_custom_call.1} parent=51 // pred_check_branch
          %338 = sbr.rel (%p336) target = $region56
        $region55: #{tpu_custom_call.1} parent=51 // pred_region
          %s339 = sand.u32 %s33, 1
          %s340 = scalar_lea.sflag [#allocation3], %s339
          %s341 = sand.u32 %s33, 1
          %s342 = smul.addr %s341, 384
          %s343 = scalar_lea.vmem [#allocation2], %s342
          %s345 = ssub.s32 6144, 6144
          %346 = vsyncadd %s340, %s345
          %s347 = smul.addr %s23, 48
          %s348 = smul.addr %s347, 128
          %s349 = scalar_lea.hbm %s0, %s348
          %s350 = sshll.u32 %s343, 4
          %s351 = int_to_ptr.vmem [resolvable:$true] %s350
          %356 = dma.hbm_to_vmem [thread:$0]  %s349, 6144, %s351, %s340, 512, 512, 32
        $region56: #{tpu_custom_call.1} parent=51 // pred_fallthru
          _
        // Predicated region
        $region57: #{tpu_custom_call.1} parent=51 // pred_check
          %p357 = pneg %p69
        $region58: #{tpu_custom_call.1} parent=51 // pred_check_branch
          %359 = sbr.rel (%p357) target = $region60
        $region59: #{tpu_custom_call.1} parent=51 // pred_region
          %p360 = scmp.lt.s32.totalorder %s23, 1
          %s361 = scalar_select %p360, %s23, 1
          %s362 = smul.addr %s361, 4
          %s363 = smul.addr %s362, 8
          %s364 = scalar_lea.vmem %s1, %s363
        $region60: #{tpu_custom_call.1} parent=51 // pred_fallthru
          _
      $region52: #{tpu_custom_call.1} parent=5 // pred_fallthru
        _
      %p365 = scmp.le.s32.totalorder 1, %s23
      %p366 = scmp.lt.s32.totalorder %s23, 3
      %p367 = pnand %p365, %p366
      %p368 = pneg %p367
      // Predicated region
      $region61: #{tpu_custom_call.1} parent=5 // pred_check
        _
      $region62: #{tpu_custom_call.1} parent=5 // pred_check_branch
        %370 = sbr.rel (%p367) target = $region64
      $region63: #{tpu_custom_call.1} parent=5 // pred_region
        %s371 = ssub.s32 %s23, 1
        %s372 = sand.u32 %s36, 1
        %s373 = scalar_lea.sflag [#allocation3], %s372
        %s374 = sand.u32 %s36, 1
        %s375 = smul.addr %s374, 384
        %s376 = scalar_lea.vmem [#allocation2], %s375
        // Predicated region
        $region65: #{tpu_custom_call.1} parent=63 // pred_check
          %p377 = pneg %p49
        $region66: #{tpu_custom_call.1} parent=63 // pred_check_branch
          %379 = sbr.rel (%p377) target = $region68
        $region67: #{tpu_custom_call.1} parent=63 // pred_region
          %380 = dma.done %s373, 6144
        $region68: #{tpu_custom_call.1} parent=63 // pred_fallthru
          _
        %s381 = sand.u32 %s36, 1
        %s382 = scalar_lea.sflag [#allocation3], %s381
        %s383 = sand.u32 %s36, 1
        %s384 = smul.addr %s383, 384
        %s385 = scalar_lea.vmem [#allocation2], %s384
        %p386 = pneg %p49
        %p387 = pneg %p46
        %p388 = scmp.lt.s32.totalorder %s28, 1
        %s389 = scalar_select %p388, %s28, 1
        %s390 = smul.addr %s389, 4
        %s391 = smul.addr %s390, 8
        %s392 = scalar_lea.vmem %s1, %s391
        %p393 = pneg %p75
        %p394 = pneg %p72
        %p395 = pneg %p96
        %p396 = pneg %p93
        %p397 = pneg %p117
        %p398 = pneg %p114
        %p399 = pneg %p138
        %p400 = pneg %p135
        %p401 = pneg %p159
        %p402 = pneg %p156
        %p403 = pneg %p180
        %p404 = pneg %p177
        %p405 = pneg %p201
        %p406 = pneg %p198
        %p407 = pneg %p222
        %p408 = pneg %p219
        %p409 = pneg %p243
        %p410 = pneg %p240
        %p411 = pneg %p264
        %p412 = pneg %p261
        %p413 = pneg %p290
        %p414 = pneg %p287
        %s415 = sand.u32 %s277, 1
        %s416 = scalar_lea.sflag [#allocation4], %s415
        %s417 = sand.u32 %s277, 1
        %s418 = smul.addr %s417, 64
        %s419 = scalar_lea.vmem [#allocation5], %s418
        %p420 = scmp.lt.s32.totalorder %s28, 1
        %s421 = scalar_select %p420, %s28, 1
        %s422 = smul.addr %s421, 4
        %s423 = smul.addr %s422, 8
        %s424 = scalar_lea.vmem %s1, %s423
        %v425 = vld [vmem:[%s3] sm:$0xf]
        %v426 = vld [vmem:[%s424] sm:$0xff]
        %v427 = vld [vmem:[%s424 + $0x8] sm:$0xff]
        %v428 = vld [vmem:[%s424 + $0x10] sm:$0xff]
        %v429 = vld [vmem:[%s424 + $0x18] sm:$0xff]
        %v430 = vld [vmem:[%s4] sm:$0xf]
        %432 = vset.pattern.permute.xlu0 0
        %433 = vperm.xlu0 %432, %v430
        %v434 = vpop.permute.xlu0 %433
        %vm436 = vcmask 130048
        %v438 = vsel %vm436, %v425, 0
        %440 = vmatprep.subr.mxu0 0.0
        %441 = vmatpush1.msra.mxu0 0.0
        %442 = vmatprep.subr.mxu0 0.0
        %443 = vmatpush1.msra.mxu0 0.0
        %444 = vmatprep.subr.mxu0 0.0
        %445 = vmatpush1.msra.mxu0 0.0
        %446 = vmatprep.subr.mxu0 0.0
        %447 = vmatpush1.msra.mxu0 0.0
        %448 = vmatprep.subr.mxu0 0.0
        %449 = vmatpush1.msra.mxu0 0.0
        %450 = vmatprep.subr.mxu0 0.0
        %451 = vmatpush1.msra.mxu0 0.0
        %452 = vmatprep.subr.mxu0 0.0
        %453 = vmatpush1.msra.mxu0 0.0
        %454 = vmatprep.subr.mxu0 0.0
        %455 = vmatpush1.msra.mxu0 0.0
        %456 = vmatprep.subr.mxu0 0.0
        %457 = vmatpush1.msra.mxu0 0.0
        %458 = vmatprep.subr.mxu0 0.0
        %459 = vmatpush1.msra.mxu0 0.0
        %460 = vmatprep.subr.mxu0 0.0
        %461 = vmatpush1.msra.mxu0 0.0
        %462 = vmatprep.subr.mxu0 0.0
        %463 = vmatpush1.msra.mxu0 0.0
        %464 = vmatprep.subr.mxu0 0.0
        %465 = vmatpush1.msra.mxu0 0.0
        %466 = vmatprep.subr.mxu0 0.0
        %467 = vmatpush1.msra.mxu0 0.0
        %v468 = vand.u32 %v429, 4294901760
        %469 = vmatprep.subr.mxu0 %v468
        %v470 = vand.u32 %v428, 4294901760
        %471 = vmatpush1.msra.mxu0 %v470
        %v472 = vand.u32 %v427, 4294901760
        %473 = vmatprep.subr.mxu0 %v472
        %v474 = vand.u32 %v426, 4294901760
        %475 = vmatpush1.msra.mxu0 %v474
        %476 = vmatprep.subr.mxu0 0.0
        %477 = vmatpush2.msra.mxu0 0.0
        %478 = vmatprep.subr.mxu0 0.0
        %479 = vmatpush2.msra.mxu0 0.0
        %480 = vmatprep.subr.mxu0 0.0
        %481 = vmatpush2.msra.mxu0 0.0
        %482 = vmatprep.subr.mxu0 0.0
        %483 = vmatpush2.msra.mxu0 0.0
        %484 = vmatprep.subr.mxu0 0.0
        %485 = vmatpush2.msra.mxu0 0.0
        %486 = vmatprep.subr.mxu0 0.0
        %487 = vmatpush2.msra.mxu0 0.0
        %488 = vmatprep.subr.mxu0 0.0
        %489 = vmatpush2.msra.mxu0 0.0
        %490 = vmatprep.subr.mxu0 0.0
        %491 = vmatpush2.msra.mxu0 0.0
        %492 = vmatprep.subr.mxu0 0.0
        %493 = vmatpush2.msra.mxu0 0.0
        %494 = vmatprep.subr.mxu0 0.0
        %495 = vmatpush2.msra.mxu0 0.0
        %496 = vmatprep.subr.mxu0 0.0
        %497 = vmatpush2.msra.mxu0 0.0
        %498 = vmatprep.subr.mxu0 0.0
        %499 = vmatpush2.msra.mxu0 0.0
        %500 = vmatprep.subr.mxu0 0.0
        %501 = vmatpush2.msra.mxu0 0.0
        %502 = vmatprep.subr.mxu0 0.0
        %503 = vmatpush2.msra.mxu0 0.0
        %504 = vmatprep.subr.mxu0 0.0
        %505 = vmatpush2.msra.mxu0 0.0
        %506 = vmatprep.subr.mxu0 0.0
        %507 = vmatpush2.msra.mxu0 0.0
        %508 = vmatprep.mubr.f32.mxu0 0.0
        %v509 = vand.u32 %v438, 4294901760
        %v510 = vsub.f32 %v438, %v509
        %v511 = vand.u32 %v510, 4294901760
        %v512 = vsub.f32 %v510, %v511
        %v513 = vand.u32 %v512, 4294901760
        %514 = vmatmul.mubr.f32.gmra.mxu0 %v513
        %v515 = vpop.f32.mrf.mxu0
        %v516 = vadd.f32 %v434, %v515
        %v517 = vpop.f32.mrf.mxu0
        %v518 = vadd.f32 %v434, %v517
        %519 = vdwg.mxu0
        %520 = vmatprep.subr.mxu0 0.0
        %521 = vmatpush1.msra.mxu0 0.0
        %522 = vmatprep.subr.mxu0 0.0
        %523 = vmatpush1.msra.mxu0 0.0
        %524 = vmatprep.subr.mxu0 0.0
        %525 = vmatpush1.msra.mxu0 0.0
        %526 = vmatprep.subr.mxu0 0.0
        %527 = vmatpush1.msra.mxu0 0.0
        %528 = vmatprep.subr.mxu0 0.0
        %529 = vmatpush1.msra.mxu0 0.0
        %530 = vmatprep.subr.mxu0 0.0
        %531 = vmatpush1.msra.mxu0 0.0
        %532 = vmatprep.subr.mxu0 0.0
        %533 = vmatpush1.msra.mxu0 0.0
        %534 = vmatprep.subr.mxu0 0.0
        %535 = vmatpush1.msra.mxu0 0.0
        %536 = vmatprep.subr.mxu0 0.0
        %537 = vmatpush1.msra.mxu0 0.0
        %538 = vmatprep.subr.mxu0 0.0
        %539 = vmatpush1.msra.mxu0 0.0
        %540 = vmatprep.subr.mxu0 0.0
        %541 = vmatpush1.msra.mxu0 0.0
        %542 = vmatprep.subr.mxu0 0.0
        %543 = vmatpush1.msra.mxu0 0.0
        %544 = vmatprep.subr.mxu0 0.0
        %545 = vmatpush1.msra.mxu0 0.0
        %546 = vmatprep.subr.mxu0 0.0
        %547 = vmatpush1.msra.mxu0 0.0
        %v548 = vand.u32 %v429, 4294901760
        %v549 = vsub.f32 %v429, %v548
        %v550 = vand.u32 %v549, 4294901760
        %v551 = vsub.f32 %v549, %v550
        %v552 = vand.u32 %v551, 4294901760
        %553 = vmatprep.subr.mxu0 %v552
        %v554 = vand.u32 %v428, 4294901760
        %v555 = vsub.f32 %v428, %v554
        %v556 = vand.u32 %v555, 4294901760
        %v557 = vsub.f32 %v555, %v556
        %v558 = vand.u32 %v557, 4294901760
        %559 = vmatpush1.msra.mxu0 %v558
        %v560 = vand.u32 %v427, 4294901760
        %v561 = vsub.f32 %v427, %v560
        %v562 = vand.u32 %v561, 4294901760
        %v563 = vsub.f32 %v561, %v562
        %v564 = vand.u32 %v563, 4294901760
        %565 = vmatprep.subr.mxu0 %v564
        %v566 = vand.u32 %v426, 4294901760
        %v567 = vsub.f32 %v426, %v566
        %v568 = vand.u32 %v567, 4294901760
        %v569 = vsub.f32 %v567, %v568
        %v570 = vand.u32 %v569, 4294901760
        %571 = vmatpush1.msra.mxu0 %v570
        %572 = vmatprep.subr.mxu0 0.0
        %573 = vmatpush2.msra.mxu0 0.0
        %574 = vmatprep.subr.mxu0 0.0
        %575 = vmatpush2.msra.mxu0 0.0
        %576 = vmatprep.subr.mxu0 0.0
        %577 = vmatpush2.msra.mxu0 0.0
        %578 = vmatprep.subr.mxu0 0.0
        %579 = vmatpush2.msra.mxu0 0.0
        %580 = vmatprep.subr.mxu0 0.0
        %581 = vmatpush2.msra.mxu0 0.0
        %582 = vmatprep.subr.mxu0 0.0
        %583 = vmatpush2.msra.mxu0 0.0
        %584 = vmatprep.subr.mxu0 0.0
        %585 = vmatpush2.msra.mxu0 0.0
        %586 = vmatprep.subr.mxu0 0.0
        %587 = vmatpush2.msra.mxu0 0.0
        %588 = vmatprep.subr.mxu0 0.0
        %589 = vmatpush2.msra.mxu0 0.0
        %590 = vmatprep.subr.mxu0 0.0
        %591 = vmatpush2.msra.mxu0 0.0
        %592 = vmatprep.subr.mxu0 0.0
        %593 = vmatpush2.msra.mxu0 0.0
        %594 = vmatprep.subr.mxu0 0.0
        %595 = vmatpush2.msra.mxu0 0.0
        %596 = vmatprep.subr.mxu0 0.0
        %597 = vmatpush2.msra.mxu0 0.0
        %598 = vmatprep.subr.mxu0 0.0
        %599 = vmatpush2.msra.mxu0 0.0
        %600 = vmatprep.subr.mxu0 0.0
        %601 = vmatpush2.msra.mxu0 0.0
        %602 = vmatprep.subr.mxu0 0.0
        %603 = vmatpush2.msra.mxu0 0.0
        %604 = vmatprep.mubr.f32.mxu0 0.0
        %v605 = vand.u32 %v438, 4294901760
        %606 = vmatmul.mubr.f32.gmra.mxu0 %v605
        %v607 = vpop.f32.mrf.mxu0
        %v608 = vadd.f32 %v516, %v607
        %v609 = vpop.f32.mrf.mxu0
        %v610 = vadd.f32 %v518, %v609
        %611 = vdwg.mxu0
        %612 = vmatprep.subr.mxu0 0.0
        %613 = vmatpush1.msra.mxu0 0.0
        %614 = vmatprep.subr.mxu0 0.0
        %615 = vmatpush1.msra.mxu0 0.0
        %616 = vmatprep.subr.mxu0 0.0
        %617 = vmatpush1.msra.mxu0 0.0
        %618 = vmatprep.subr.mxu0 0.0
        %619 = vmatpush1.msra.mxu0 0.0
        %620 = vmatprep.subr.mxu0 0.0
        %621 = vmatpush1.msra.mxu0 0.0
        %622 = vmatprep.subr.mxu0 0.0
        %623 = vmatpush1.msra.mxu0 0.0
        %624 = vmatprep.subr.mxu0 0.0
        %625 = vmatpush1.msra.mxu0 0.0
        %626 = vmatprep.subr.mxu0 0.0
        %627 = vmatpush1.msra.mxu0 0.0
        %628 = vmatprep.subr.mxu0 0.0
        %629 = vmatpush1.msra.mxu0 0.0
        %630 = vmatprep.subr.mxu0 0.0
        %631 = vmatpush1.msra.mxu0 0.0
        %632 = vmatprep.subr.mxu0 0.0
        %633 = vmatpush1.msra.mxu0 0.0
        %634 = vmatprep.subr.mxu0 0.0
        %635 = vmatpush1.msra.mxu0 0.0
        %636 = vmatprep.subr.mxu0 0.0
        %637 = vmatpush1.msra.mxu0 0.0
        %638 = vmatprep.subr.mxu0 0.0
        %639 = vmatpush1.msra.mxu0 0.0
        %v640 = vand.u32 %v429, 4294901760
        %v641 = vsub.f32 %v429, %v640
        %642 = vmatprep.subr.mxu0 %v641
        %v643 = vand.u32 %v428, 4294901760
        %v644 = vsub.f32 %v428, %v643
        %645 = vmatpush1.msra.mxu0 %v644
        %v646 = vand.u32 %v427, 4294901760
        %v647 = vsub.f32 %v427, %v646
        %648 = vmatprep.subr.mxu0 %v647
        %v649 = vand.u32 %v426, 4294901760
        %v650 = vsub.f32 %v426, %v649
        %651 = vmatpush1.msra.mxu0 %v650
        %652 = vmatprep.subr.mxu0 0.0
        %653 = vmatpush2.msra.mxu0 0.0
        %654 = vmatprep.subr.mxu0 0.0
        %655 = vmatpush2.msra.mxu0 0.0
        %656 = vmatprep.subr.mxu0 0.0
        %657 = vmatpush2.msra.mxu0 0.0
        %658 = vmatprep.subr.mxu0 0.0
        %659 = vmatpush2.msra.mxu0 0.0
        %660 = vmatprep.subr.mxu0 0.0
        %661 = vmatpush2.msra.mxu0 0.0
        %662 = vmatprep.subr.mxu0 0.0
        %663 = vmatpush2.msra.mxu0 0.0
        %664 = vmatprep.subr.mxu0 0.0
        %665 = vmatpush2.msra.mxu0 0.0
        %666 = vmatprep.subr.mxu0 0.0
        %667 = vmatpush2.msra.mxu0 0.0
        %668 = vmatprep.subr.mxu0 0.0
        %669 = vmatpush2.msra.mxu0 0.0
        %670 = vmatprep.subr.mxu0 0.0
        %671 = vmatpush2.msra.mxu0 0.0
        %672 = vmatprep.subr.mxu0 0.0
        %673 = vmatpush2.msra.mxu0 0.0
        %674 = vmatprep.subr.mxu0 0.0
        %675 = vmatpush2.msra.mxu0 0.0
        %676 = vmatprep.subr.mxu0 0.0
        %677 = vmatpush2.msra.mxu0 0.0
        %678 = vmatprep.subr.mxu0 0.0
        %679 = vmatpush2.msra.mxu0 0.0
        %680 = vmatprep.subr.mxu0 0.0
        %681 = vmatpush2.msra.mxu0 0.0
        %682 = vmatprep.subr.mxu0 0.0
        %683 = vmatpush2.msra.mxu0 0.0
        %684 = vmatprep.mubr.f32.mxu0 0.0
        %v685 = vand.u32 %v438, 4294901760
        %v686 = vsub.f32 %v438, %v685
        %687 = vmatmul.mubr.f32.gmra.mxu0 %v686
        %v688 = vpop.f32.mrf.mxu0
        %v689 = vadd.f32 %v608, %v688
        %v690 = vpop.f32.mrf.mxu0
        %v691 = vadd.f32 %v610, %v690
        %692 = vdwg.mxu0
        %693 = vmatprep.subr.mxu0 0.0
        %694 = vmatpush1.msra.mxu0 0.0
        %695 = vmatprep.subr.mxu0 0.0
        %696 = vmatpush1.msra.mxu0 0.0
        %697 = vmatprep.subr.mxu0 0.0
        %698 = vmatpush1.msra.mxu0 0.0
        %699 = vmatprep.subr.mxu0 0.0
        %700 = vmatpush1.msra.mxu0 0.0
        %701 = vmatprep.subr.mxu0 0.0
        %702 = vmatpush1.msra.mxu0 0.0
        %703 = vmatprep.subr.mxu0 0.0
        %704 = vmatpush1.msra.mxu0 0.0
        %705 = vmatprep.subr.mxu0 0.0
        %706 = vmatpush1.msra.mxu0 0.0
        %707 = vmatprep.subr.mxu0 0.0
        %708 = vmatpush1.msra.mxu0 0.0
        %709 = vmatprep.subr.mxu0 0.0
        %710 = vmatpush1.msra.mxu0 0.0
        %711 = vmatprep.subr.mxu0 0.0
        %712 = vmatpush1.msra.mxu0 0.0
        %713 = vmatprep.subr.mxu0 0.0
        %714 = vmatpush1.msra.mxu0 0.0
        %715 = vmatprep.subr.mxu0 0.0
        %716 = vmatpush1.msra.mxu0 0.0
        %717 = vmatprep.subr.mxu0 0.0
        %718 = vmatpush1.msra.mxu0 0.0
        %719 = vmatprep.subr.mxu0 0.0
        %720 = vmatpush1.msra.mxu0 0.0
        %v721 = vand.u32 %v429, 4294901760
        %722 = vmatprep.subr.mxu0 %v721
        %v723 = vand.u32 %v428, 4294901760
        %724 = vmatpush1.msra.mxu0 %v723
        %v725 = vand.u32 %v427, 4294901760
        %726 = vmatprep.subr.mxu0 %v725
        %v727 = vand.u32 %v426, 4294901760
        %728 = vmatpush1.msra.mxu0 %v727
        %729 = vmatprep.subr.mxu0 0.0
        %730 = vmatpush2.msra.mxu0 0.0
        %731 = vmatprep.subr.mxu0 0.0
        %732 = vmatpush2.msra.mxu0 0.0
        %733 = vmatprep.subr.mxu0 0.0
        %734 = vmatpush2.msra.mxu0 0.0
        %735 = vmatprep.subr.mxu0 0.0
        %736 = vmatpush2.msra.mxu0 0.0
        %737 = vmatprep.subr.mxu0 0.0
        %738 = vmatpush2.msra.mxu0 0.0
        %739 = vmatprep.subr.mxu0 0.0
        %740 = vmatpush2.msra.mxu0 0.0
        %741 = vmatprep.subr.mxu0 0.0
        %742 = vmatpush2.msra.mxu0 0.0
        %743 = vmatprep.subr.mxu0 0.0
        %744 = vmatpush2.msra.mxu0 0.0
        %745 = vmatprep.subr.mxu0 0.0
        %746 = vmatpush2.msra.mxu0 0.0
        %747 = vmatprep.subr.mxu0 0.0
        %748 = vmatpush2.msra.mxu0 0.0
        %749 = vmatprep.subr.mxu0 0.0
        %750 = vmatpush2.msra.mxu0 0.0
        %751 = vmatprep.subr.mxu0 0.0
        %752 = vmatpush2.msra.mxu0 0.0
        %753 = vmatprep.subr.mxu0 0.0
        %754 = vmatpush2.msra.mxu0 0.0
        %755 = vmatprep.subr.mxu0 0.0
        %756 = vmatpush2.msra.mxu0 0.0
        %757 = vmatprep.subr.mxu0 0.0
        %758 = vmatpush2.msra.mxu0 0.0
        %759 = vmatprep.subr.mxu0 0.0
        %760 = vmatpush2.msra.mxu0 0.0
        %761 = vmatprep.mubr.f32.mxu0 0.0
        %v762 = vand.u32 %v438, 4294901760
        %v763 = vsub.f32 %v438, %v762
        %v764 = vand.u32 %v763, 4294901760
        %765 = vmatmul.mubr.f32.gmra.mxu0 %v764
        %v766 = vpop.f32.mrf.mxu0
        %v767 = vadd.f32 %v689, %v766
        %v768 = vpop.f32.mrf.mxu0
        %v769 = vadd.f32 %v691, %v768
        %770 = vdwg.mxu0
        %771 = vmatprep.subr.mxu0 0.0
        %772 = vmatpush1.msra.mxu0 0.0
        %773 = vmatprep.subr.mxu0 0.0
        %774 = vmatpush1.msra.mxu0 0.0
        %775 = vmatprep.subr.mxu0 0.0
        %776 = vmatpush1.msra.mxu0 0.0
        %777 = vmatprep.subr.mxu0 0.0
        %778 = vmatpush1.msra.mxu0 0.0
        %779 = vmatprep.subr.mxu0 0.0
        %780 = vmatpush1.msra.mxu0 0.0
        %781 = vmatprep.subr.mxu0 0.0
        %782 = vmatpush1.msra.mxu0 0.0
        %783 = vmatprep.subr.mxu0 0.0
        %784 = vmatpush1.msra.mxu0 0.0
        %785 = vmatprep.subr.mxu0 0.0
        %786 = vmatpush1.msra.mxu0 0.0
        %787 = vmatprep.subr.mxu0 0.0
        %788 = vmatpush1.msra.mxu0 0.0
        %789 = vmatprep.subr.mxu0 0.0
        %790 = vmatpush1.msra.mxu0 0.0
        %791 = vmatprep.subr.mxu0 0.0
        %792 = vmatpush1.msra.mxu0 0.0
        %793 = vmatprep.subr.mxu0 0.0
        %794 = vmatpush1.msra.mxu0 0.0
        %795 = vmatprep.subr.mxu0 0.0
        %796 = vmatpush1.msra.mxu0 0.0
        %797 = vmatprep.subr.mxu0 0.0
        %798 = vmatpush1.msra.mxu0 0.0
        %v799 = vand.u32 %v429, 4294901760
        %v800 = vsub.f32 %v429, %v799
        %v801 = vand.u32 %v800, 4294901760
        %802 = vmatprep.subr.mxu0 %v801
        %v803 = vand.u32 %v428, 4294901760
        %v804 = vsub.f32 %v428, %v803
        %v805 = vand.u32 %v804, 4294901760
        %806 = vmatpush1.msra.mxu0 %v805
        %v807 = vand.u32 %v427, 4294901760
        %v808 = vsub.f32 %v427, %v807
        %v809 = vand.u32 %v808, 4294901760
        %810 = vmatprep.subr.mxu0 %v809
        %v811 = vand.u32 %v426, 4294901760
        %v812 = vsub.f32 %v426, %v811
        %v813 = vand.u32 %v812, 4294901760
        %814 = vmatpush1.msra.mxu0 %v813
        %815 = vmatprep.subr.mxu0 0.0
        %816 = vmatpush2.msra.mxu0 0.0
        %817 = vmatprep.subr.mxu0 0.0
        %818 = vmatpush2.msra.mxu0 0.0
        %819 = vmatprep.subr.mxu0 0.0
        %820 = vmatpush2.msra.mxu0 0.0
        %821 = vmatprep.subr.mxu0 0.0
        %822 = vmatpush2.msra.mxu0 0.0
        %823 = vmatprep.subr.mxu0 0.0
        %824 = vmatpush2.msra.mxu0 0.0
        %825 = vmatprep.subr.mxu0 0.0
        %826 = vmatpush2.msra.mxu0 0.0
        %827 = vmatprep.subr.mxu0 0.0
        %828 = vmatpush2.msra.mxu0 0.0
        %829 = vmatprep.subr.mxu0 0.0
        %830 = vmatpush2.msra.mxu0 0.0
        %831 = vmatprep.subr.mxu0 0.0
        %832 = vmatpush2.msra.mxu0 0.0
        %833 = vmatprep.subr.mxu0 0.0
        %834 = vmatpush2.msra.mxu0 0.0
        %835 = vmatprep.subr.mxu0 0.0
        %836 = vmatpush2.msra.mxu0 0.0
        %837 = vmatprep.subr.mxu0 0.0
        %838 = vmatpush2.msra.mxu0 0.0
        %839 = vmatprep.subr.mxu0 0.0
        %840 = vmatpush2.msra.mxu0 0.0
        %841 = vmatprep.subr.mxu0 0.0
        %842 = vmatpush2.msra.mxu0 0.0
        %843 = vmatprep.subr.mxu0 0.0
        %844 = vmatpush2.msra.mxu0 0.0
        %845 = vmatprep.subr.mxu0 0.0
        %846 = vmatpush2.msra.mxu0 0.0
        %847 = vmatprep.mubr.f32.mxu0 0.0
        %v848 = vand.u32 %v438, 4294901760
        %849 = vmatmul.mubr.f32.gmra.mxu0 %v848
        %v850 = vpop.f32.mrf.mxu0
        %v851 = vadd.f32 %v767, %v850
        %v852 = vpop.f32.mrf.mxu0
        %v853 = vadd.f32 %v769, %v852
        %854 = vdwg.mxu0
        %855 = vmatprep.subr.mxu0 0.0
        %856 = vmatpush1.msra.mxu0 0.0
        %857 = vmatprep.subr.mxu0 0.0
        %858 = vmatpush1.msra.mxu0 0.0
        %859 = vmatprep.subr.mxu0 0.0
        %860 = vmatpush1.msra.mxu0 0.0
        %861 = vmatprep.subr.mxu0 0.0
        %862 = vmatpush1.msra.mxu0 0.0
        %863 = vmatprep.subr.mxu0 0.0
        %864 = vmatpush1.msra.mxu0 0.0
        %865 = vmatprep.subr.mxu0 0.0
        %866 = vmatpush1.msra.mxu0 0.0
        %867 = vmatprep.subr.mxu0 0.0
        %868 = vmatpush1.msra.mxu0 0.0
        %869 = vmatprep.subr.mxu0 0.0
        %870 = vmatpush1.msra.mxu0 0.0
        %871 = vmatprep.subr.mxu0 0.0
        %872 = vmatpush1.msra.mxu0 0.0
        %873 = vmatprep.subr.mxu0 0.0
        %874 = vmatpush1.msra.mxu0 0.0
        %875 = vmatprep.subr.mxu0 0.0
        %876 = vmatpush1.msra.mxu0 0.0
        %877 = vmatprep.subr.mxu0 0.0
        %878 = vmatpush1.msra.mxu0 0.0
        %879 = vmatprep.subr.mxu0 0.0
        %880 = vmatpush1.msra.mxu0 0.0
        %881 = vmatprep.subr.mxu0 0.0
        %882 = vmatpush1.msra.mxu0 0.0
        %v883 = vand.u32 %v429, 4294901760
        %884 = vmatprep.subr.mxu0 %v883
        %v885 = vand.u32 %v428, 4294901760
        %886 = vmatpush1.msra.mxu0 %v885
        %v887 = vand.u32 %v427, 4294901760
        %888 = vmatprep.subr.mxu0 %v887
        %v889 = vand.u32 %v426, 4294901760
        %890 = vmatpush1.msra.mxu0 %v889
        %891 = vmatprep.subr.mxu0 0.0
        %892 = vmatpush2.msra.mxu0 0.0
        %893 = vmatprep.subr.mxu0 0.0
        %894 = vmatpush2.msra.mxu0 0.0
        %895 = vmatprep.subr.mxu0 0.0
        %896 = vmatpush2.msra.mxu0 0.0
        %897 = vmatprep.subr.mxu0 0.0
        %898 = vmatpush2.msra.mxu0 0.0
        %899 = vmatprep.subr.mxu0 0.0
        %900 = vmatpush2.msra.mxu0 0.0
        %901 = vmatprep.subr.mxu0 0.0
        %902 = vmatpush2.msra.mxu0 0.0
        %903 = vmatprep.subr.mxu0 0.0
        %904 = vmatpush2.msra.mxu0 0.0
        %905 = vmatprep.subr.mxu0 0.0
        %906 = vmatpush2.msra.mxu0 0.0
        %907 = vmatprep.subr.mxu0 0.0
        %908 = vmatpush2.msra.mxu0 0.0
        %909 = vmatprep.subr.mxu0 0.0
        %910 = vmatpush2.msra.mxu0 0.0
        %911 = vmatprep.subr.mxu0 0.0
        %912 = vmatpush2.msra.mxu0 0.0
        %913 = vmatprep.subr.mxu0 0.0
        %914 = vmatpush2.msra.mxu0 0.0
        %915 = vmatprep.subr.mxu0 0.0
        %916 = vmatpush2.msra.mxu0 0.0
        %917 = vmatprep.subr.mxu0 0.0
        %918 = vmatpush2.msra.mxu0 0.0
        %919 = vmatprep.subr.mxu0 0.0
        %920 = vmatpush2.msra.mxu0 0.0
        %921 = vmatprep.subr.mxu0 0.0
        %922 = vmatpush2.msra.mxu0 0.0
        %923 = vmatprep.mubr.f32.mxu0 0.0
        %v924 = vand.u32 %v438, 4294901760
        %925 = vmatmul.mubr.f32.gmra.mxu0 %v924
        %v926 = vpop.f32.mrf.mxu0
        %v927 = vadd.f32 %v851, %v926
        %v928 = vpop.f32.mrf.mxu0
        %v929 = vadd.f32 %v853, %v928
        %930 = vdwg.mxu0
        %v931 = vmax.f32 %v927, 0.0
        %v932 = vmax.f32 %v929, 0.0
        %v933 = vld [vmem:[%s5] sm:$0xff]
        %v934 = vld [vmem:[%s5 + $0x8] sm:$0xff]
        %v935 = vld [vmem:[%s5 + $0x10] sm:$0xff]
        %v936 = vld [vmem:[%s5 + $0x18] sm:$0xff]
        %v937 = vld [vmem:[%s5 + $0x20] sm:$0xff]
        %v938 = vld [vmem:[%s5 + $0x28] sm:$0xff]
        %v939 = vld [vmem:[%s5 + $0x30] sm:$0xff]
        %v940 = vld [vmem:[%s5 + $0x38] sm:$0xff]
        %v941 = vld [vmem:[%s5 + $0x40] sm:$0xff]
        %v942 = vld [vmem:[%s5 + $0x48] sm:$0xff]
        %v943 = vld [vmem:[%s5 + $0x50] sm:$0xff]
        %v944 = vld [vmem:[%s5 + $0x58] sm:$0xff]
        %v945 = vld [vmem:[%s5 + $0x60] sm:$0xff]
        %v946 = vld [vmem:[%s5 + $0x68] sm:$0xff]
        %v947 = vld [vmem:[%s5 + $0x70] sm:$0xff]
        %v948 = vld [vmem:[%s5 + $0x78] sm:$0xff]
        %v949 = vld [vmem:[%s5 + $0x80] sm:$0xff]
        %v950 = vld [vmem:[%s5 + $0x88] sm:$0xff]
        %v951 = vld [vmem:[%s5 + $0x90] sm:$0x3f]
        %vm952 = vcmask 179200
        %v954 = vsel %vm952, %v932, 0
        %vm956 = vcmask 1045504
        %v958 = vsel %vm956, %v951, 0
        %960 = vmatprep.subr.mxu0 0.0
        %v961 = vand.u32 %v948, 4294901760
        %962 = vmatpush1.msra.mxu0 %v961
        %963 = vmatprep.subr.mxu0 0.0
        %v964 = vand.u32 %v947, 4294901760
        %965 = vmatpush1.msra.mxu0 %v964
        %966 = vmatprep.subr.mxu0 0.0
        %v967 = vand.u32 %v946, 4294901760
        %968 = vmatpush1.msra.mxu0 %v967
        %969 = vmatprep.subr.mxu0 0.0
        %v970 = vand.u32 %v945, 4294901760
        %971 = vmatpush1.msra.mxu0 %v970
        %972 = vmatprep.subr.mxu0 0.0
        %v973 = vand.u32 %v944, 4294901760
        %974 = vmatpush1.msra.mxu0 %v973
        %975 = vmatprep.subr.mxu0 0.0
        %v976 = vand.u32 %v943, 4294901760
        %977 = vmatpush1.msra.mxu0 %v976
        %978 = vmatprep.subr.mxu0 0.0
        %v979 = vand.u32 %v942, 4294901760
        %980 = vmatpush1.msra.mxu0 %v979
        %981 = vmatprep.subr.mxu0 0.0
        %v982 = vand.u32 %v941, 4294901760
        %983 = vmatpush1.msra.mxu0 %v982
        %984 = vmatprep.subr.mxu0 0.0
        %v985 = vand.u32 %v940, 4294901760
        %986 = vmatpush1.msra.mxu0 %v985
        %987 = vmatprep.subr.mxu0 0.0
        %v988 = vand.u32 %v939, 4294901760
        %989 = vmatpush1.msra.mxu0 %v988
        %990 = vmatprep.subr.mxu0 0.0
        %v991 = vand.u32 %v938, 4294901760
        %992 = vmatpush1.msra.mxu0 %v991
        %993 = vmatprep.subr.mxu0 0.0
        %v994 = vand.u32 %v937, 4294901760
        %995 = vmatpush1.msra.mxu0 %v994
        %996 = vmatprep.subr.mxu0 0.0
        %v997 = vand.u32 %v936, 4294901760
        %998 = vmatpush1.msra.mxu0 %v997
        %999 = vmatprep.subr.mxu0 0.0
        %v1000 = vand.u32 %v935, 4294901760
        %1001 = vmatpush1.msra.mxu0 %v1000
        %1002 = vmatprep.subr.mxu0 0.0
        %v1003 = vand.u32 %v934, 4294901760
        %1004 = vmatpush1.msra.mxu0 %v1003
        %1005 = vmatprep.subr.mxu0 0.0
        %v1006 = vand.u32 %v933, 4294901760
        %1007 = vmatpush1.msra.mxu0 %v1006
        %1008 = vmatprep.subr.mxu0 0.0
        %1009 = vmatpush2.msra.mxu0 0.0
        %1010 = vmatprep.subr.mxu0 0.0
        %1011 = vmatpush2.msra.mxu0 0.0
        %1012 = vmatprep.subr.mxu0 0.0
        %1013 = vmatpush2.msra.mxu0 0.0
        %1014 = vmatprep.subr.mxu0 0.0
        %1015 = vmatpush2.msra.mxu0 0.0
        %1016 = vmatprep.subr.mxu0 0.0
        %1017 = vmatpush2.msra.mxu0 0.0
        %1018 = vmatprep.subr.mxu0 0.0
        %1019 = vmatpush2.msra.mxu0 0.0
        %1020 = vmatprep.subr.mxu0 0.0
        %1021 = vmatpush2.msra.mxu0 0.0
        %1022 = vmatprep.subr.mxu0 0.0
        %1023 = vmatpush2.msra.mxu0 0.0
        %1024 = vmatprep.subr.mxu0 0.0
        %1025 = vmatpush2.msra.mxu0 0.0
        %1026 = vmatprep.subr.mxu0 0.0
        %1027 = vmatpush2.msra.mxu0 0.0
        %1028 = vmatprep.subr.mxu0 0.0
        %1029 = vmatpush2.msra.mxu0 0.0
        %1030 = vmatprep.subr.mxu0 0.0
        %1031 = vmatpush2.msra.mxu0 0.0
        %1032 = vmatprep.subr.mxu0 0.0
        %1033 = vmatpush2.msra.mxu0 0.0
        %1034 = vmatprep.subr.mxu0 0.0
        %v1035 = vand.u32 %v958, 4294901760
        %1036 = vmatpush2.msra.mxu0 %v1035
        %1037 = vmatprep.subr.mxu0 0.0
        %v1038 = vand.u32 %v950, 4294901760
        %1039 = vmatpush2.msra.mxu0 %v1038
        %1040 = vmatprep.subr.mxu0 0.0
        %v1041 = vand.u32 %v949, 4294901760
        %1042 = vmatpush2.msra.mxu0 %v1041
        %v1043 = vand.u32 %v954, 4294901760
        %v1044 = vsub.f32 %v954, %v1043
        %v1045 = vand.u32 %v1044, 4294901760
        %v1046 = vsub.f32 %v1044, %v1045
        %v1047 = vand.u32 %v1046, 4294901760
        %1048 = vmatprep.mubr.f32.mxu0 %v1047
        %v1049 = vand.u32 %v931, 4294901760
        %v1050 = vsub.f32 %v931, %v1049
        %v1051 = vand.u32 %v1050, 4294901760
        %v1052 = vsub.f32 %v1050, %v1051
        %v1053 = vand.u32 %v1052, 4294901760
        %1054 = vmatmul.mubr.f32.gmra.mxu0 %v1053
        %v1055 = vpop.f32.mrf.mxu0
        %v1056 = vadd.f32 0.0, %v1055
        %v1057 = vpop.f32.mrf.mxu0
        %1058 = vdwg.mxu0
        %1059 = vmatprep.subr.mxu0 0.0
        %v1060 = vand.u32 %v948, 4294901760
        %v1061 = vsub.f32 %v948, %v1060
        %v1062 = vand.u32 %v1061, 4294901760
        %v1063 = vsub.f32 %v1061, %v1062
        %v1064 = vand.u32 %v1063, 4294901760
        %1065 = vmatpush1.msra.mxu0 %v1064
        %1066 = vmatprep.subr.mxu0 0.0
        %v1067 = vand.u32 %v947, 4294901760
        %v1068 = vsub.f32 %v947, %v1067
        %v1069 = vand.u32 %v1068, 4294901760
        %v1070 = vsub.f32 %v1068, %v1069
        %v1071 = vand.u32 %v1070, 4294901760
        %1072 = vmatpush1.msra.mxu0 %v1071
        %1073 = vmatprep.subr.mxu0 0.0
        %v1074 = vand.u32 %v946, 4294901760
        %v1075 = vsub.f32 %v946, %v1074
        %v1076 = vand.u32 %v1075, 4294901760
        %v1077 = vsub.f32 %v1075, %v1076
        %v1078 = vand.u32 %v1077, 4294901760
        %1079 = vmatpush1.msra.mxu0 %v1078
        %1080 = vmatprep.subr.mxu0 0.0
        %v1081 = vand.u32 %v945, 4294901760
        %v1082 = vsub.f32 %v945, %v1081
        %v1083 = vand.u32 %v1082, 4294901760
        %v1084 = vsub.f32 %v1082, %v1083
        %v1085 = vand.u32 %v1084, 4294901760
        %1086 = vmatpush1.msra.mxu0 %v1085
        %1087 = vmatprep.subr.mxu0 0.0
        %v1088 = vand.u32 %v944, 4294901760
        %v1089 = vsub.f32 %v944, %v1088
        %v1090 = vand.u32 %v1089, 4294901760
        %v1091 = vsub.f32 %v1089, %v1090
        %v1092 = vand.u32 %v1091, 4294901760
        %1093 = vmatpush1.msra.mxu0 %v1092
        %1094 = vmatprep.subr.mxu0 0.0
        %v1095 = vand.u32 %v943, 4294901760
        %v1096 = vsub.f32 %v943, %v1095
        %v1097 = vand.u32 %v1096, 4294901760
        %v1098 = vsub.f32 %v1096, %v1097
        %v1099 = vand.u32 %v1098, 4294901760
        %1100 = vmatpush1.msra.mxu0 %v1099
        %1101 = vmatprep.subr.mxu0 0.0
        %v1102 = vand.u32 %v942, 4294901760
        %v1103 = vsub.f32 %v942, %v1102
        %v1104 = vand.u32 %v1103, 4294901760
        %v1105 = vsub.f32 %v1103, %v1104
        %v1106 = vand.u32 %v1105, 4294901760
        %1107 = vmatpush1.msra.mxu0 %v1106
        %1108 = vmatprep.subr.mxu0 0.0
        %v1109 = vand.u32 %v941, 4294901760
        %v1110 = vsub.f32 %v941, %v1109
        %v1111 = vand.u32 %v1110, 4294901760
        %v1112 = vsub.f32 %v1110, %v1111
        %v1113 = vand.u32 %v1112, 4294901760
        %1114 = vmatpush1.msra.mxu0 %v1113
        %1115 = vmatprep.subr.mxu0 0.0
        %v1116 = vand.u32 %v940, 4294901760
        %v1117 = vsub.f32 %v940, %v1116
        %v1118 = vand.u32 %v1117, 4294901760
        %v1119 = vsub.f32 %v1117, %v1118
        %v1120 = vand.u32 %v1119, 4294901760
        %1121 = vmatpush1.msra.mxu0 %v1120
        %1122 = vmatprep.subr.mxu0 0.0
        %v1123 = vand.u32 %v939, 4294901760
        %v1124 = vsub.f32 %v939, %v1123
        %v1125 = vand.u32 %v1124, 4294901760
        %v1126 = vsub.f32 %v1124, %v1125
        %v1127 = vand.u32 %v1126, 4294901760
        %1128 = vmatpush1.msra.mxu0 %v1127
        %1129 = vmatprep.subr.mxu0 0.0
        %v1130 = vand.u32 %v938, 4294901760
        %v1131 = vsub.f32 %v938, %v1130
        %v1132 = vand.u32 %v1131, 4294901760
        %v1133 = vsub.f32 %v1131, %v1132
        %v1134 = vand.u32 %v1133, 4294901760
        %1135 = vmatpush1.msra.mxu0 %v1134
        %1136 = vmatprep.subr.mxu0 0.0
        %v1137 = vand.u32 %v937, 4294901760
        %v1138 = vsub.f32 %v937, %v1137
        %v1139 = vand.u32 %v1138, 4294901760
        %v1140 = vsub.f32 %v1138, %v1139
        %v1141 = vand.u32 %v1140, 4294901760
        %1142 = vmatpush1.msra.mxu0 %v1141
        %1143 = vmatprep.subr.mxu0 0.0
        %v1144 = vand.u32 %v936, 4294901760
        %v1145 = vsub.f32 %v936, %v1144
        %v1146 = vand.u32 %v1145, 4294901760
        %v1147 = vsub.f32 %v1145, %v1146
        %v1148 = vand.u32 %v1147, 4294901760
        %1149 = vmatpush1.msra.mxu0 %v1148
        %1150 = vmatprep.subr.mxu0 0.0
        %v1151 = vand.u32 %v935, 4294901760
        %v1152 = vsub.f32 %v935, %v1151
        %v1153 = vand.u32 %v1152, 4294901760
        %v1154 = vsub.f32 %v1152, %v1153
        %v1155 = vand.u32 %v1154, 4294901760
        %1156 = vmatpush1.msra.mxu0 %v1155
        %1157 = vmatprep.subr.mxu0 0.0
        %v1158 = vand.u32 %v934, 4294901760
        %v1159 = vsub.f32 %v934, %v1158
        %v1160 = vand.u32 %v1159, 4294901760
        %v1161 = vsub.f32 %v1159, %v1160
        %v1162 = vand.u32 %v1161, 4294901760
        %1163 = vmatpush1.msra.mxu0 %v1162
        %1164 = vmatprep.subr.mxu0 0.0
        %v1165 = vand.u32 %v933, 4294901760
        %v1166 = vsub.f32 %v933, %v1165
        %v1167 = vand.u32 %v1166, 4294901760
        %v1168 = vsub.f32 %v1166, %v1167
        %v1169 = vand.u32 %v1168, 4294901760
        %1170 = vmatpush1.msra.mxu0 %v1169
        %1171 = vmatprep.subr.mxu0 0.0
        %1172 = vmatpush2.msra.mxu0 0.0
        %1173 = vmatprep.subr.mxu0 0.0
        %1174 = vmatpush2.msra.mxu0 0.0
        %1175 = vmatprep.subr.mxu0 0.0
        %1176 = vmatpush2.msra.mxu0 0.0
        %1177 = vmatprep.subr.mxu0 0.0
        %1178 = vmatpush2.msra.mxu0 0.0
        %1179 = vmatprep.subr.mxu0 0.0
        %1180 = vmatpush2.msra.mxu0 0.0
        %1181 = vmatprep.subr.mxu0 0.0
        %1182 = vmatpush2.msra.mxu0 0.0
        %1183 = vmatprep.subr.mxu0 0.0
        %1184 = vmatpush2.msra.mxu0 0.0
        %1185 = vmatprep.subr.mxu0 0.0
        %1186 = vmatpush2.msra.mxu0 0.0
        %1187 = vmatprep.subr.mxu0 0.0
        %1188 = vmatpush2.msra.mxu0 0.0
        %1189 = vmatprep.subr.mxu0 0.0
        %1190 = vmatpush2.msra.mxu0 0.0
        %1191 = vmatprep.subr.mxu0 0.0
        %1192 = vmatpush2.msra.mxu0 0.0
        %1193 = vmatprep.subr.mxu0 0.0
        %1194 = vmatpush2.msra.mxu0 0.0
        %1195 = vmatprep.subr.mxu0 0.0
        %1196 = vmatpush2.msra.mxu0 0.0
        %1197 = vmatprep.subr.mxu0 0.0
        %v1198 = vand.u32 %v958, 4294901760
        %v1199 = vsub.f32 %v958, %v1198
        %v1200 = vand.u32 %v1199, 4294901760
        %v1201 = vsub.f32 %v1199, %v1200
        %v1202 = vand.u32 %v1201, 4294901760
        %1203 = vmatpush2.msra.mxu0 %v1202
        %1204 = vmatprep.subr.mxu0 0.0
        %v1205 = vand.u32 %v950, 4294901760
        %v1206 = vsub.f32 %v950, %v1205
        %v1207 = vand.u32 %v1206, 4294901760
        %v1208 = vsub.f32 %v1206, %v1207
        %v1209 = vand.u32 %v1208, 4294901760
        %1210 = vmatpush2.msra.mxu0 %v1209
        %1211 = vmatprep.subr.mxu0 0.0
        %v1212 = vand.u32 %v949, 4294901760
        %v1213 = vsub.f32 %v949, %v1212
        %v1214 = vand.u32 %v1213, 4294901760
        %v1215 = vsub.f32 %v1213, %v1214
        %v1216 = vand.u32 %v1215, 4294901760
        %1217 = vmatpush2.msra.mxu0 %v1216
        %v1218 = vand.u32 %v954, 4294901760
        %1219 = vmatprep.mubr.f32.mxu0 %v1218
        %v1220 = vand.u32 %v931, 4294901760
        %1221 = vmatmul.mubr.f32.gmra.mxu0 %v1220
        %v1222 = vpop.f32.mrf.mxu0
        %v1223 = vadd.f32 %v1056, %v1222
        %v1224 = vpop.f32.mrf.mxu0
        %1225 = vdwg.mxu0
        %1226 = vmatprep.subr.mxu0 0.0
        %v1227 = vand.u32 %v948, 4294901760
        %v1228 = vsub.f32 %v948, %v1227
        %1229 = vmatpush1.msra.mxu0 %v1228
        %1230 = vmatprep.subr.mxu0 0.0
        %v1231 = vand.u32 %v947, 4294901760
        %v1232 = vsub.f32 %v947, %v1231
        %1233 = vmatpush1.msra.mxu0 %v1232
        %1234 = vmatprep.subr.mxu0 0.0
        %v1235 = vand.u32 %v946, 4294901760
        %v1236 = vsub.f32 %v946, %v1235
        %1237 = vmatpush1.msra.mxu0 %v1236
        %1238 = vmatprep.subr.mxu0 0.0
        %v1239 = vand.u32 %v945, 4294901760
        %v1240 = vsub.f32 %v945, %v1239
        %1241 = vmatpush1.msra.mxu0 %v1240
        %1242 = vmatprep.subr.mxu0 0.0
        %v1243 = vand.u32 %v944, 4294901760
        %v1244 = vsub.f32 %v944, %v1243
        %1245 = vmatpush1.msra.mxu0 %v1244
        %1246 = vmatprep.subr.mxu0 0.0
        %v1247 = vand.u32 %v943, 4294901760
        %v1248 = vsub.f32 %v943, %v1247
        %1249 = vmatpush1.msra.mxu0 %v1248
        %1250 = vmatprep.subr.mxu0 0.0
        %v1251 = vand.u32 %v942, 4294901760
        %v1252 = vsub.f32 %v942, %v1251
        %1253 = vmatpush1.msra.mxu0 %v1252
        %1254 = vmatprep.subr.mxu0 0.0
        %v1255 = vand.u32 %v941, 4294901760
        %v1256 = vsub.f32 %v941, %v1255
        %1257 = vmatpush1.msra.mxu0 %v1256
        %1258 = vmatprep.subr.mxu0 0.0
        %v1259 = vand.u32 %v940, 4294901760
        %v1260 = vsub.f32 %v940, %v1259
        %1261 = vmatpush1.msra.mxu0 %v1260
        %1262 = vmatprep.subr.mxu0 0.0
        %v1263 = vand.u32 %v939, 4294901760
        %v1264 = vsub.f32 %v939, %v1263
        %1265 = vmatpush1.msra.mxu0 %v1264
        %1266 = vmatprep.subr.mxu0 0.0
        %v1267 = vand.u32 %v938, 4294901760
        %v1268 = vsub.f32 %v938, %v1267
        %1269 = vmatpush1.msra.mxu0 %v1268
        %1270 = vmatprep.subr.mxu0 0.0
        %v1271 = vand.u32 %v937, 4294901760
        %v1272 = vsub.f32 %v937, %v1271
        %1273 = vmatpush1.msra.mxu0 %v1272
        %1274 = vmatprep.subr.mxu0 0.0
        %v1275 = vand.u32 %v936, 4294901760
        %v1276 = vsub.f32 %v936, %v1275
        %1277 = vmatpush1.msra.mxu0 %v1276
        %1278 = vmatprep.subr.mxu0 0.0
        %v1279 = vand.u32 %v935, 4294901760
        %v1280 = vsub.f32 %v935, %v1279
        %1281 = vmatpush1.msra.mxu0 %v1280
        %1282 = vmatprep.subr.mxu0 0.0
        %v1283 = vand.u32 %v934, 4294901760
        %v1284 = vsub.f32 %v934, %v1283
        %1285 = vmatpush1.msra.mxu0 %v1284
        %1286 = vmatprep.subr.mxu0 0.0
        %v1287 = vand.u32 %v933, 4294901760
        %v1288 = vsub.f32 %v933, %v1287
        %1289 = vmatpush1.msra.mxu0 %v1288
        %1290 = vmatprep.subr.mxu0 0.0
        %1291 = vmatpush2.msra.mxu0 0.0
        %1292 = vmatprep.subr.mxu0 0.0
        %1293 = vmatpush2.msra.mxu0 0.0
        %1294 = vmatprep.subr.mxu0 0.0
        %1295 = vmatpush2.msra.mxu0 0.0
        %1296 = vmatprep.subr.mxu0 0.0
        %1297 = vmatpush2.msra.mxu0 0.0
        %1298 = vmatprep.subr.mxu0 0.0
        %1299 = vmatpush2.msra.mxu0 0.0
        %1300 = vmatprep.subr.mxu0 0.0
        %1301 = vmatpush2.msra.mxu0 0.0
        %1302 = vmatprep.subr.mxu0 0.0
        %1303 = vmatpush2.msra.mxu0 0.0
        %1304 = vmatprep.subr.mxu0 0.0
        %1305 = vmatpush2.msra.mxu0 0.0
        %1306 = vmatprep.subr.mxu0 0.0
        %1307 = vmatpush2.msra.mxu0 0.0
        %1308 = vmatprep.subr.mxu0 0.0
        %1309 = vmatpush2.msra.mxu0 0.0
        %1310 = vmatprep.subr.mxu0 0.0
        %1311 = vmatpush2.msra.mxu0 0.0
        %1312 = vmatprep.subr.mxu0 0.0
        %1313 = vmatpush2.msra.mxu0 0.0
        %1314 = vmatprep.subr.mxu0 0.0
        %1315 = vmatpush2.msra.mxu0 0.0
        %1316 = vmatprep.subr.mxu0 0.0
        %v1317 = vand.u32 %v958, 4294901760
        %v1318 = vsub.f32 %v958, %v1317
        %1319 = vmatpush2.msra.mxu0 %v1318
        %1320 = vmatprep.subr.mxu0 0.0
        %v1321 = vand.u32 %v950, 4294901760
        %v1322 = vsub.f32 %v950, %v1321
        %1323 = vmatpush2.msra.mxu0 %v1322
        %1324 = vmatprep.subr.mxu0 0.0
        %v1325 = vand.u32 %v949, 4294901760
        %v1326 = vsub.f32 %v949, %v1325
        %1327 = vmatpush2.msra.mxu0 %v1326
        %v1328 = vand.u32 %v954, 4294901760
        %v1329 = vsub.f32 %v954, %v1328
        %1330 = vmatprep.mubr.f32.mxu0 %v1329
        %v1331 = vand.u32 %v931, 4294901760
        %v1332 = vsub.f32 %v931, %v1331
        %1333 = vmatmul.mubr.f32.gmra.mxu0 %v1332
        %v1334 = vpop.f32.mrf.mxu0
        %v1335 = vadd.f32 %v1223, %v1334
        %v1336 = vpop.f32.mrf.mxu0
        %1337 = vdwg.mxu0
        %1338 = vmatprep.subr.mxu0 0.0
        %v1339 = vand.u32 %v948, 4294901760
        %1340 = vmatpush1.msra.mxu0 %v1339
        %1341 = vmatprep.subr.mxu0 0.0
        %v1342 = vand.u32 %v947, 4294901760
        %1343 = vmatpush1.msra.mxu0 %v1342
        %1344 = vmatprep.subr.mxu0 0.0
        %v1345 = vand.u32 %v946, 4294901760
        %1346 = vmatpush1.msra.mxu0 %v1345
        %1347 = vmatprep.subr.mxu0 0.0
        %v1348 = vand.u32 %v945, 4294901760
        %1349 = vmatpush1.msra.mxu0 %v1348
        %1350 = vmatprep.subr.mxu0 0.0
        %v1351 = vand.u32 %v944, 4294901760
        %1352 = vmatpush1.msra.mxu0 %v1351
        %1353 = vmatprep.subr.mxu0 0.0
        %v1354 = vand.u32 %v943, 4294901760
        %1355 = vmatpush1.msra.mxu0 %v1354
        %1356 = vmatprep.subr.mxu0 0.0
        %v1357 = vand.u32 %v942, 4294901760
        %1358 = vmatpush1.msra.mxu0 %v1357
        %1359 = vmatprep.subr.mxu0 0.0
        %v1360 = vand.u32 %v941, 4294901760
        %1361 = vmatpush1.msra.mxu0 %v1360
        %1362 = vmatprep.subr.mxu0 0.0
        %v1363 = vand.u32 %v940, 4294901760
        %1364 = vmatpush1.msra.mxu0 %v1363
        %1365 = vmatprep.subr.mxu0 0.0
        %v1366 = vand.u32 %v939, 4294901760
        %1367 = vmatpush1.msra.mxu0 %v1366
        %1368 = vmatprep.subr.mxu0 0.0
        %v1369 = vand.u32 %v938, 4294901760
        %1370 = vmatpush1.msra.mxu0 %v1369
        %1371 = vmatprep.subr.mxu0 0.0
        %v1372 = vand.u32 %v937, 4294901760
        %1373 = vmatpush1.msra.mxu0 %v1372
        %1374 = vmatprep.subr.mxu0 0.0
        %v1375 = vand.u32 %v936, 4294901760
        %1376 = vmatpush1.msra.mxu0 %v1375
        %1377 = vmatprep.subr.mxu0 0.0
        %v1378 = vand.u32 %v935, 4294901760
        %1379 = vmatpush1.msra.mxu0 %v1378
        %1380 = vmatprep.subr.mxu0 0.0
        %v1381 = vand.u32 %v934, 4294901760
        %1382 = vmatpush1.msra.mxu0 %v1381
        %1383 = vmatprep.subr.mxu0 0.0
        %v1384 = vand.u32 %v933, 4294901760
        %1385 = vmatpush1.msra.mxu0 %v1384
        %1386 = vmatprep.subr.mxu0 0.0
        %1387 = vmatpush2.msra.mxu0 0.0
        %1388 = vmatprep.subr.mxu0 0.0
        %1389 = vmatpush2.msra.mxu0 0.0
        %1390 = vmatprep.subr.mxu0 0.0
        %1391 = vmatpush2.msra.mxu0 0.0
        %1392 = vmatprep.subr.mxu0 0.0
        %1393 = vmatpush2.msra.mxu0 0.0
        %1394 = vmatprep.subr.mxu0 0.0
        %1395 = vmatpush2.msra.mxu0 0.0
        %1396 = vmatprep.subr.mxu0 0.0
        %1397 = vmatpush2.msra.mxu0 0.0
        %1398 = vmatprep.subr.mxu0 0.0
        %1399 = vmatpush2.msra.mxu0 0.0
        %1400 = vmatprep.subr.mxu0 0.0
        %1401 = vmatpush2.msra.mxu0 0.0
        %1402 = vmatprep.subr.mxu0 0.0
        %1403 = vmatpush2.msra.mxu0 0.0
        %1404 = vmatprep.subr.mxu0 0.0
        %1405 = vmatpush2.msra.mxu0 0.0
        %1406 = vmatprep.subr.mxu0 0.0
        %1407 = vmatpush2.msra.mxu0 0.0
        %1408 = vmatprep.subr.mxu0 0.0
        %1409 = vmatpush2.msra.mxu0 0.0
        %1410 = vmatprep.subr.mxu0 0.0
        %1411 = vmatpush2.msra.mxu0 0.0
        %1412 = vmatprep.subr.mxu0 0.0
        %v1413 = vand.u32 %v958, 4294901760
        %1414 = vmatpush2.msra.mxu0 %v1413
        %1415 = vmatprep.subr.mxu0 0.0
        %v1416 = vand.u32 %v950, 4294901760
        %1417 = vmatpush2.msra.mxu0 %v1416
        %1418 = vmatprep.subr.mxu0 0.0
        %v1419 = vand.u32 %v949, 4294901760
        %1420 = vmatpush2.msra.mxu0 %v1419
        %v1421 = vand.u32 %v954, 4294901760
        %v1422 = vsub.f32 %v954, %v1421
        %v1423 = vand.u32 %v1422, 4294901760
        %1424 = vmatprep.mubr.f32.mxu0 %v1423
        %v1425 = vand.u32 %v931, 4294901760
        %v1426 = vsub.f32 %v931, %v1425
        %v1427 = vand.u32 %v1426, 4294901760
        %1428 = vmatmul.mubr.f32.gmra.mxu0 %v1427
        %v1429 = vpop.f32.mrf.mxu0
        %v1430 = vadd.f32 %v1335, %v1429
        %v1431 = vpop.f32.mrf.mxu0
        %1432 = vdwg.mxu0
        %1433 = vmatprep.subr.mxu0 0.0
        %v1434 = vand.u32 %v948, 4294901760
        %v1435 = vsub.f32 %v948, %v1434
        %v1436 = vand.u32 %v1435, 4294901760
        %1437 = vmatpush1.msra.mxu0 %v1436
        %1438 = vmatprep.subr.mxu0 0.0
        %v1439 = vand.u32 %v947, 4294901760
        %v1440 = vsub.f32 %v947, %v1439
        %v1441 = vand.u32 %v1440, 4294901760
        %1442 = vmatpush1.msra.mxu0 %v1441
        %1443 = vmatprep.subr.mxu0 0.0
        %v1444 = vand.u32 %v946, 4294901760
        %v1445 = vsub.f32 %v946, %v1444
        %v1446 = vand.u32 %v1445, 4294901760
        %1447 = vmatpush1.msra.mxu0 %v1446
        %1448 = vmatprep.subr.mxu0 0.0
        %v1449 = vand.u32 %v945, 4294901760
        %v1450 = vsub.f32 %v945, %v1449
        %v1451 = vand.u32 %v1450, 4294901760
        %1452 = vmatpush1.msra.mxu0 %v1451
        %1453 = vmatprep.subr.mxu0 0.0
        %v1454 = vand.u32 %v944, 4294901760
        %v1455 = vsub.f32 %v944, %v1454
        %v1456 = vand.u32 %v1455, 4294901760
        %1457 = vmatpush1.msra.mxu0 %v1456
        %1458 = vmatprep.subr.mxu0 0.0
        %v1459 = vand.u32 %v943, 4294901760
        %v1460 = vsub.f32 %v943, %v1459
        %v1461 = vand.u32 %v1460, 4294901760
        %1462 = vmatpush1.msra.mxu0 %v1461
        %1463 = vmatprep.subr.mxu0 0.0
        %v1464 = vand.u32 %v942, 4294901760
        %v1465 = vsub.f32 %v942, %v1464
        %v1466 = vand.u32 %v1465, 4294901760
        %1467 = vmatpush1.msra.mxu0 %v1466
        %1468 = vmatprep.subr.mxu0 0.0
        %v1469 = vand.u32 %v941, 4294901760
        %v1470 = vsub.f32 %v941, %v1469
        %v1471 = vand.u32 %v1470, 4294901760
        %1472 = vmatpush1.msra.mxu0 %v1471
        %1473 = vmatprep.subr.mxu0 0.0
        %v1474 = vand.u32 %v940, 4294901760
        %v1475 = vsub.f32 %v940, %v1474
        %v1476 = vand.u32 %v1475, 4294901760
        %1477 = vmatpush1.msra.mxu0 %v1476
        %1478 = vmatprep.subr.mxu0 0.0
        %v1479 = vand.u32 %v939, 4294901760
        %v1480 = vsub.f32 %v939, %v1479
        %v1481 = vand.u32 %v1480, 4294901760
        %1482 = vmatpush1.msra.mxu0 %v1481
        %1483 = vmatprep.subr.mxu0 0.0
        %v1484 = vand.u32 %v938, 4294901760
        %v1485 = vsub.f32 %v938, %v1484
        %v1486 = vand.u32 %v1485, 4294901760
        %1487 = vmatpush1.msra.mxu0 %v1486
        %1488 = vmatprep.subr.mxu0 0.0
        %v1489 = vand.u32 %v937, 4294901760
        %v1490 = vsub.f32 %v937, %v1489
        %v1491 = vand.u32 %v1490, 4294901760
        %1492 = vmatpush1.msra.mxu0 %v1491
        %1493 = vmatprep.subr.mxu0 0.0
        %v1494 = vand.u32 %v936, 4294901760
        %v1495 = vsub.f32 %v936, %v1494
        %v1496 = vand.u32 %v1495, 4294901760
        %1497 = vmatpush1.msra.mxu0 %v1496
        %1498 = vmatprep.subr.mxu0 0.0
        %v1499 = vand.u32 %v935, 4294901760
        %v1500 = vsub.f32 %v935, %v1499
        %v1501 = vand.u32 %v1500, 4294901760
        %1502 = vmatpush1.msra.mxu0 %v1501
        %1503 = vmatprep.subr.mxu0 0.0
        %v1504 = vand.u32 %v934, 4294901760
        %v1505 = vsub.f32 %v934, %v1504
        %v1506 = vand.u32 %v1505, 4294901760
        %1507 = vmatpush1.msra.mxu0 %v1506
        %1508 = vmatprep.subr.mxu0 0.0
        %v1509 = vand.u32 %v933, 4294901760
        %v1510 = vsub.f32 %v933, %v1509
        %v1511 = vand.u32 %v1510, 4294901760
        %1512 = vmatpush1.msra.mxu0 %v1511
        %1513 = vmatprep.subr.mxu0 0.0
        %1514 = vmatpush2.msra.mxu0 0.0
        %1515 = vmatprep.subr.mxu0 0.0
        %1516 = vmatpush2.msra.mxu0 0.0
        %1517 = vmatprep.subr.mxu0 0.0
        %1518 = vmatpush2.msra.mxu0 0.0
        %1519 = vmatprep.subr.mxu0 0.0
        %1520 = vmatpush2.msra.mxu0 0.0
        %1521 = vmatprep.subr.mxu0 0.0
        %1522 = vmatpush2.msra.mxu0 0.0
        %1523 = vmatprep.subr.mxu0 0.0
        %1524 = vmatpush2.msra.mxu0 0.0
        %1525 = vmatprep.subr.mxu0 0.0
        %1526 = vmatpush2.msra.mxu0 0.0
        %1527 = vmatprep.subr.mxu0 0.0
        %1528 = vmatpush2.msra.mxu0 0.0
        %1529 = vmatprep.subr.mxu0 0.0
        %1530 = vmatpush2.msra.mxu0 0.0
        %1531 = vmatprep.subr.mxu0 0.0
        %1532 = vmatpush2.msra.mxu0 0.0
        %1533 = vmatprep.subr.mxu0 0.0
        %1534 = vmatpush2.msra.mxu0 0.0
        %1535 = vmatprep.subr.mxu0 0.0
        %1536 = vmatpush2.msra.mxu0 0.0
        %1537 = vmatprep.subr.mxu0 0.0
        %1538 = vmatpush2.msra.mxu0 0.0
        %1539 = vmatprep.subr.mxu0 0.0
        %v1540 = vand.u32 %v958, 4294901760
        %v1541 = vsub.f32 %v958, %v1540
        %v1542 = vand.u32 %v1541, 4294901760
        %1543 = vmatpush2.msra.mxu0 %v1542
        %1544 = vmatprep.subr.mxu0 0.0
        %v1545 = vand.u32 %v950, 4294901760
        %v1546 = vsub.f32 %v950, %v1545
        %v1547 = vand.u32 %v1546, 4294901760
        %1548 = vmatpush2.msra.mxu0 %v1547
        %1549 = vmatprep.subr.mxu0 0.0
        %v1550 = vand.u32 %v949, 4294901760
        %v1551 = vsub.f32 %v949, %v1550
        %v1552 = vand.u32 %v1551, 4294901760
        %1553 = vmatpush2.msra.mxu0 %v1552
        %v1554 = vand.u32 %v954, 4294901760
        %1555 = vmatprep.mubr.f32.mxu0 %v1554
        %v1556 = vand.u32 %v931, 4294901760
        %1557 = vmatmul.mubr.f32.gmra.mxu0 %v1556
        %v1558 = vpop.f32.mrf.mxu0
        %v1559 = vadd.f32 %v1430, %v1558
        %v1560 = vpop.f32.mrf.mxu0
        %1561 = vdwg.mxu0
        %1562 = vmatprep.subr.mxu0 0.0
        %v1563 = vand.u32 %v948, 4294901760
        %1564 = vmatpush1.msra.mxu0 %v1563
        %1565 = vmatprep.subr.mxu0 0.0
        %v1566 = vand.u32 %v947, 4294901760
        %1567 = vmatpush1.msra.mxu0 %v1566
        %1568 = vmatprep.subr.mxu0 0.0
        %v1569 = vand.u32 %v946, 4294901760
        %1570 = vmatpush1.msra.mxu0 %v1569
        %1571 = vmatprep.subr.mxu0 0.0
        %v1572 = vand.u32 %v945, 4294901760
        %1573 = vmatpush1.msra.mxu0 %v1572
        %1574 = vmatprep.subr.mxu0 0.0
        %v1575 = vand.u32 %v944, 4294901760
        %1576 = vmatpush1.msra.mxu0 %v1575
        %1577 = vmatprep.subr.mxu0 0.0
        %v1578 = vand.u32 %v943, 4294901760
        %1579 = vmatpush1.msra.mxu0 %v1578
        %1580 = vmatprep.subr.mxu0 0.0
        %v1581 = vand.u32 %v942, 4294901760
        %1582 = vmatpush1.msra.mxu0 %v1581
        %1583 = vmatprep.subr.mxu0 0.0
        %v1584 = vand.u32 %v941, 4294901760
        %1585 = vmatpush1.msra.mxu0 %v1584
        %1586 = vmatprep.subr.mxu0 0.0
        %v1587 = vand.u32 %v940, 4294901760
        %1588 = vmatpush1.msra.mxu0 %v1587
        %1589 = vmatprep.subr.mxu0 0.0
        %v1590 = vand.u32 %v939, 4294901760
        %1591 = vmatpush1.msra.mxu0 %v1590
        %1592 = vmatprep.subr.mxu0 0.0
        %v1593 = vand.u32 %v938, 4294901760
        %1594 = vmatpush1.msra.mxu0 %v1593
        %1595 = vmatprep.subr.mxu0 0.0
        %v1596 = vand.u32 %v937, 4294901760
        %1597 = vmatpush1.msra.mxu0 %v1596
        %1598 = vmatprep.subr.mxu0 0.0
        %v1599 = vand.u32 %v936, 4294901760
        %1600 = vmatpush1.msra.mxu0 %v1599
        %1601 = vmatprep.subr.mxu0 0.0
        %v1602 = vand.u32 %v935, 4294901760
        %1603 = vmatpush1.msra.mxu0 %v1602
        %1604 = vmatprep.subr.mxu0 0.0
        %v1605 = vand.u32 %v934, 4294901760
        %1606 = vmatpush1.msra.mxu0 %v1605
        %1607 = vmatprep.subr.mxu0 0.0
        %v1608 = vand.u32 %v933, 4294901760
        %1609 = vmatpush1.msra.mxu0 %v1608
        %1610 = vmatprep.subr.mxu0 0.0
        %1611 = vmatpush2.msra.mxu0 0.0
        %1612 = vmatprep.subr.mxu0 0.0
        %1613 = vmatpush2.msra.mxu0 0.0
        %1614 = vmatprep.subr.mxu0 0.0
        %1615 = vmatpush2.msra.mxu0 0.0
        %1616 = vmatprep.subr.mxu0 0.0
        %1617 = vmatpush2.msra.mxu0 0.0
        %1618 = vmatprep.subr.mxu0 0.0
        %1619 = vmatpush2.msra.mxu0 0.0
        %1620 = vmatprep.subr.mxu0 0.0
        %1621 = vmatpush2.msra.mxu0 0.0
        %1622 = vmatprep.subr.mxu0 0.0
        %1623 = vmatpush2.msra.mxu0 0.0
        %1624 = vmatprep.subr.mxu0 0.0
        %1625 = vmatpush2.msra.mxu0 0.0
        %1626 = vmatprep.subr.mxu0 0.0
        %1627 = vmatpush2.msra.mxu0 0.0
        %1628 = vmatprep.subr.mxu0 0.0
        %1629 = vmatpush2.msra.mxu0 0.0
        %1630 = vmatprep.subr.mxu0 0.0
        %1631 = vmatpush2.msra.mxu0 0.0
        %1632 = vmatprep.subr.mxu0 0.0
        %1633 = vmatpush2.msra.mxu0 0.0
        %1634 = vmatprep.subr.mxu0 0.0
        %1635 = vmatpush2.msra.mxu0 0.0
        %1636 = vmatprep.subr.mxu0 0.0
        %v1637 = vand.u32 %v958, 4294901760
        %1638 = vmatpush2.msra.mxu0 %v1637
        %1639 = vmatprep.subr.mxu0 0.0
        %v1640 = vand.u32 %v950, 4294901760
        %1641 = vmatpush2.msra.mxu0 %v1640
        %1642 = vmatprep.subr.mxu0 0.0
        %v1643 = vand.u32 %v949, 4294901760
        %1644 = vmatpush2.msra.mxu0 %v1643
        %v1645 = vand.u32 %v954, 4294901760
        %1646 = vmatprep.mubr.f32.mxu0 %v1645
        %v1647 = vand.u32 %v931, 4294901760
        %1648 = vmatmul.mubr.f32.gmra.mxu0 %v1647
        %v1649 = vpop.f32.mrf.mxu0
        %v1650 = vadd.f32 %v1559, %v1649
        %v1651 = vpop.f32.mrf.mxu0
        %1652 = vdwg.mxu0
        %v1653 = vmul.f32 %v1650, %v1650
        %vm1654 = vcmask 44032
        %v1655 = vsel %vm1654, %v1653, 0.0
        %v1656 = vrot.slane %v1655, 4
        %v1657 = vadd.f32 %v1655, %v1656
        %v1658 = vrot.slane %v1657, 2
        %v1659 = vadd.f32 %v1657, %v1658
        %v1660 = vrot.slane %v1659, 1
        %v1661 = vadd.f32 %v1659, %v1660
        %v1662 = vlaneseq
        %v1663 = vshrl.u32 %v1662, 7
        %v1664 = vsub.s32 0, %v1663
        %v1665 = vrot.slane %v1650, %v1664
        %1667 = vbcast.lane.b32.xlu0 %v1665, 256
        %v1668 = vpop.permute.xlu0 %1667
        %v1669 = vlaneseq
        %v1670 = vshrl.u32 %v1669, 7
        %v1671 = vsub.s32 1, %v1670
        %v1672 = vrot.slane %v1650, %v1671
        %1674 = vbcast.lane.b32.xlu0 %v1672, 256
        %v1675 = vpop.permute.xlu0 %1674
        %v1676 = vlaneseq
        %v1677 = vshrl.u32 %v1676, 7
        %v1678 = vsub.s32 2, %v1677
        %v1679 = vrot.slane %v1650, %v1678
        %1681 = vbcast.lane.b32.xlu0 %v1679, 256
        %v1682 = vpop.permute.xlu0 %1681
        %v1683 = vlaneseq
        %v1684 = vshrl.u32 %v1683, 7
        %v1685 = vsub.s32 3, %v1684
        %v1686 = vrot.slane %v1650, %v1685
        %1688 = vbcast.lane.b32.xlu0 %v1686, 256
        %v1689 = vpop.permute.xlu0 %1688
        %v1692 = vunpack.c.l.s4 1966171168
        %v1693 = vunpack.c.0.s8 %v1692
        %v1694 = vlaneseq
        %v1695 = vshrl.u32 %v1694, 7
        %v1696 = vsub.s32 %v1693, %v1695
        %v1697 = vrot.slane %v1650, %v1696
        %v1698 = vcombine.high %v1697, %v1697
        %v1700 = vunpack.c.l.s4 1966171168
        %v1701 = vunpack.c.0.s8 %v1700
        %v1702 = vlaneseq
        %v1703 = vshrl.u32 %v1702, 7
        %v1704 = vsub.s32 %v1701, %v1703
        %v1705 = vrot.slane %v1697, %v1704
        %v1707 = vunpack.c.l.s4 1966171168
        %v1708 = vunpack.c.0.s8 %v1707
        %v1709 = vlaneseq
        %v1710 = vshrl.u32 %v1709, 7
        %v1711 = vsub.s32 %v1708, %v1710
        %v1712 = vrot.slane %v1698, %v1711
        %v1713 = vcombine.high %v1705, %v1705
        %v1714 = vcombine.high %v1712, %v1712
        %v1715 = vlaneseq
        %v1716 = vshrl.u32 %v1715, 7
        %v1717 = vsub.s32 0, %v1716
        %v1718 = vrot.slane %v1705, %v1717
        %v1719 = vlaneseq
        %v1720 = vshrl.u32 %v1719, 7
        %v1721 = vsub.s32 0, %v1720
        %v1722 = vrot.slane %v1712, %v1721
        %v1723 = vlaneseq
        %v1724 = vshrl.u32 %v1723, 7
        %v1725 = vsub.s32 0, %v1724
        %v1726 = vrot.slane %v1713, %v1725
        %v1727 = vlaneseq
        %v1728 = vshrl.u32 %v1727, 7
        %v1729 = vsub.s32 0, %v1728
        %v1730 = vrot.slane %v1714, %v1729
        %v1735 = vmul.f32 %v1668, %v1718
        %v1736 = vmul.f32 %v1675, %v1722
        %v1737 = vmul.f32 %v1682, %v1726
        %v1738 = vmul.f32 %v1689, %v1730
        %vm1739 = vcmask 46080
        %v1740 = vsel %vm1739, %v1735, 0.0
        %v1741 = vsel %vm1739, %v1736, 0.0
        %v1742 = vadd.f32 %v1740, %v1741
        %v1743 = vsel %vm1739, %v1737, 0.0
        %v1744 = vadd.f32 %v1742, %v1743
        %v1745 = vsel %vm1739, %v1738, 0.0
        %v1746 = vadd.f32 %v1744, %v1745
        %v1747 = vmul.f32 %v1746, 2.0
        %v1748 = vsub.f32 %v1747, %v1661
        %v1749 = vld [vmem:[%s2] sm:$0x3f]
        %vm1750 = vcmp.gt.f32.partialorder %v1749, 0.5
        %v1751 = vsel %vm1750, %v1748, -inf
        %v1752 = vsel %vm1739, %v1751, -inf
        %1753 = vmax.xlane.f32.xlu0 %v1752
        %v1754 = vpop.xlane.xlu0 %1753
        %vm1755 = vcmp.ge.f32.partialorder %v1751, %v1754
        %v1756 = vsel %vm1755, -inf, %v1751
        %v1757 = vsel %vm1739, %v1756, -inf
        %1758 = vmax.xlane.f32.xlu0 %v1757
        %v1759 = vpop.xlane.xlu0 %1758
        %vm1760 = vcmp.ge.f32.partialorder %v1756, %v1759
        %v1761 = vsel %vm1760, -inf, %v1756
        %v1762 = vsel %vm1739, %v1761, -inf
        %1763 = vmax.xlane.f32.xlu0 %v1762
        %v1764 = vpop.xlane.xlu0 %1763
        %vm1765 = vcmp.ge.f32.partialorder %v1748, %v1764
        %vm1766 = vmand %vm1750, %vm1765
        %v1767 = vld [vmem:[%s6] sm:$0xf]
        %vm1768 = vcmask 31744
        %v1770 = vsel %vm1768, %v1767, 0
        %vm1772 = vcmask 1043456
        %v1773 = vsel %vm1772, %v1650, 0
        %1775 = vmatprep.subr.mxu0 0.0
        %1776 = vmatpush1.msra.mxu0 0.0
        %1777 = vmatprep.subr.mxu0 0.0
        %1778 = vmatpush1.msra.mxu0 0.0
        %1779 = vmatprep.subr.mxu0 0.0
        %1780 = vmatpush1.msra.mxu0 0.0
        %1781 = vmatprep.subr.mxu0 0.0
        %1782 = vmatpush1.msra.mxu0 0.0
        %1783 = vmatprep.subr.mxu0 0.0
        %1784 = vmatpush1.msra.mxu0 0.0
        %1785 = vmatprep.subr.mxu0 0.0
        %1786 = vmatpush1.msra.mxu0 0.0
        %1787 = vmatprep.subr.mxu0 0.0
        %1788 = vmatpush1.msra.mxu0 0.0
        %1789 = vmatprep.subr.mxu0 0.0
        %1790 = vmatpush1.msra.mxu0 0.0
        %1791 = vmatprep.subr.mxu0 0.0
        %1792 = vmatpush1.msra.mxu0 0.0
        %1793 = vmatprep.subr.mxu0 0.0
        %1794 = vmatpush1.msra.mxu0 0.0
        %1795 = vmatprep.subr.mxu0 0.0
        %1796 = vmatpush1.msra.mxu0 0.0
        %1797 = vmatprep.subr.mxu0 0.0
        %1798 = vmatpush1.msra.mxu0 0.0
        %1799 = vmatprep.subr.mxu0 0.0
        %1800 = vmatpush1.msra.mxu0 0.0
        %1801 = vmatprep.subr.mxu0 0.0
        %1802 = vmatpush1.msra.mxu0 0.0
        %1803 = vmatprep.subr.mxu0 0.0
        %1804 = vmatpush1.msra.mxu0 0.0
        %1805 = vmatprep.subr.mxu0 0.0
        %v1806 = vand.u32 %v1773, 4294901760
        %1807 = vmatpush1.msra.mxu0 %v1806
        %1808 = vmatprep.subr.mxu0 0.0
        %1809 = vmatpush2.msra.mxu0 0.0
        %1810 = vmatprep.subr.mxu0 0.0
        %1811 = vmatpush2.msra.mxu0 0.0
        %1812 = vmatprep.subr.mxu0 0.0
        %1813 = vmatpush2.msra.mxu0 0.0
        %1814 = vmatprep.subr.mxu0 0.0
        %1815 = vmatpush2.msra.mxu0 0.0
        %1816 = vmatprep.subr.mxu0 0.0
        %1817 = vmatpush2.msra.mxu0 0.0
        %1818 = vmatprep.subr.mxu0 0.0
        %1819 = vmatpush2.msra.mxu0 0.0
        %1820 = vmatprep.subr.mxu0 0.0
        %1821 = vmatpush2.msra.mxu0 0.0
        %1822 = vmatprep.subr.mxu0 0.0
        %1823 = vmatpush2.msra.mxu0 0.0
        %1824 = vmatprep.subr.mxu0 0.0
        %1825 = vmatpush2.msra.mxu0 0.0
        %1826 = vmatprep.subr.mxu0 0.0
        %1827 = vmatpush2.msra.mxu0 0.0
        %1828 = vmatprep.subr.mxu0 0.0
        %1829 = vmatpush2.msra.mxu0 0.0
        %1830 = vmatprep.subr.mxu0 0.0
        %1831 = vmatpush2.msra.mxu0 0.0
        %1832 = vmatprep.subr.mxu0 0.0
        %1833 = vmatpush2.msra.mxu0 0.0
        %1834 = vmatprep.subr.mxu0 0.0
        %1835 = vmatpush2.msra.mxu0 0.0
        %1836 = vmatprep.subr.mxu0 0.0
        %1837 = vmatpush2.msra.mxu0 0.0
        %1838 = vmatprep.subr.mxu0 0.0
        %1839 = vmatpush2.msra.mxu0 0.0
        %1840 = vmatprep.mubr.f32.mxu0 0.0
        %v1841 = vand.u32 %v1770, 4294901760
        %v1842 = vsub.f32 %v1770, %v1841
        %v1843 = vand.u32 %v1842, 4294901760
        %v1844 = vsub.f32 %v1842, %v1843
        %v1845 = vand.u32 %v1844, 4294901760
        %1846 = vmatmul.mubr.f32.gmra.mxu0 %v1845
        %v1847 = vpop.f32.mrf.mxu0
        %v1848 = vadd.f32 0.0, %v1847
        %v1849 = vpop.f32.mrf.mxu0
        %1850 = vdwg.mxu0
        %1851 = vmatprep.subr.mxu0 0.0
        %1852 = vmatpush1.msra.mxu0 0.0
        %1853 = vmatprep.subr.mxu0 0.0
        %1854 = vmatpush1.msra.mxu0 0.0
        %1855 = vmatprep.subr.mxu0 0.0
        %1856 = vmatpush1.msra.mxu0 0.0
        %1857 = vmatprep.subr.mxu0 0.0
        %1858 = vmatpush1.msra.mxu0 0.0
        %1859 = vmatprep.subr.mxu0 0.0
        %1860 = vmatpush1.msra.mxu0 0.0
        %1861 = vmatprep.subr.mxu0 0.0
        %1862 = vmatpush1.msra.mxu0 0.0
        %1863 = vmatprep.subr.mxu0 0.0
        %1864 = vmatpush1.msra.mxu0 0.0
        %1865 = vmatprep.subr.mxu0 0.0
        %1866 = vmatpush1.msra.mxu0 0.0
        %1867 = vmatprep.subr.mxu0 0.0
        %1868 = vmatpush1.msra.mxu0 0.0
        %1869 = vmatprep.subr.mxu0 0.0
        %1870 = vmatpush1.msra.mxu0 0.0
        %1871 = vmatprep.subr.mxu0 0.0
        %1872 = vmatpush1.msra.mxu0 0.0
        %1873 = vmatprep.subr.mxu0 0.0
        %1874 = vmatpush1.msra.mxu0 0.0
        %1875 = vmatprep.subr.mxu0 0.0
        %1876 = vmatpush1.msra.mxu0 0.0
        %1877 = vmatprep.subr.mxu0 0.0
        %1878 = vmatpush1.msra.mxu0 0.0
        %1879 = vmatprep.subr.mxu0 0.0
        %1880 = vmatpush1.msra.mxu0 0.0
        %1881 = vmatprep.subr.mxu0 0.0
        %v1882 = vand.u32 %v1773, 4294901760
        %v1883 = vsub.f32 %v1773, %v1882
        %v1884 = vand.u32 %v1883, 4294901760
        %v1885 = vsub.f32 %v1883, %v1884
        %v1886 = vand.u32 %v1885, 4294901760
        %1887 = vmatpush1.msra.mxu0 %v1886
        %1888 = vmatprep.subr.mxu0 0.0
        %1889 = vmatpush2.msra.mxu0 0.0
        %1890 = vmatprep.subr.mxu0 0.0
        %1891 = vmatpush2.msra.mxu0 0.0
        %1892 = vmatprep.subr.mxu0 0.0
        %1893 = vmatpush2.msra.mxu0 0.0
        %1894 = vmatprep.subr.mxu0 0.0
        %1895 = vmatpush2.msra.mxu0 0.0
        %1896 = vmatprep.subr.mxu0 0.0
        %1897 = vmatpush2.msra.mxu0 0.0
        %1898 = vmatprep.subr.mxu0 0.0
        %1899 = vmatpush2.msra.mxu0 0.0
        %1900 = vmatprep.subr.mxu0 0.0
        %1901 = vmatpush2.msra.mxu0 0.0
        %1902 = vmatprep.subr.mxu0 0.0
        %1903 = vmatpush2.msra.mxu0 0.0
        %1904 = vmatprep.subr.mxu0 0.0
        %1905 = vmatpush2.msra.mxu0 0.0
        %1906 = vmatprep.subr.mxu0 0.0
        %1907 = vmatpush2.msra.mxu0 0.0
        %1908 = vmatprep.subr.mxu0 0.0
        %1909 = vmatpush2.msra.mxu0 0.0
        %1910 = vmatprep.subr.mxu0 0.0
        %1911 = vmatpush2.msra.mxu0 0.0
        %1912 = vmatprep.subr.mxu0 0.0
        %1913 = vmatpush2.msra.mxu0 0.0
        %1914 = vmatprep.subr.mxu0 0.0
        %1915 = vmatpush2.msra.mxu0 0.0
        %1916 = vmatprep.subr.mxu0 0.0
        %1917 = vmatpush2.msra.mxu0 0.0
        %1918 = vmatprep.subr.mxu0 0.0
        %1919 = vmatpush2.msra.mxu0 0.0
        %1920 = vmatprep.mubr.f32.mxu0 0.0
        %v1921 = vand.u32 %v1770, 4294901760
        %1922 = vmatmul.mubr.f32.gmra.mxu0 %v1921
        %v1923 = vpop.f32.mrf.mxu0
        %v1924 = vadd.f32 %v1848, %v1923
        %v1925 = vpop.f32.mrf.mxu0
        %1926 = vdwg.mxu0
        %1927 = vmatprep.subr.mxu0 0.0
        %1928 = vmatpush1.msra.mxu0 0.0
        %1929 = vmatprep.subr.mxu0 0.0
        %1930 = vmatpush1.msra.mxu0 0.0
        %1931 = vmatprep.subr.mxu0 0.0
        %1932 = vmatpush1.msra.mxu0 0.0
        %1933 = vmatprep.subr.mxu0 0.0
        %1934 = vmatpush1.msra.mxu0 0.0
        %1935 = vmatprep.subr.mxu0 0.0
        %1936 = vmatpush1.msra.mxu0 0.0
        %1937 = vmatprep.subr.mxu0 0.0
        %1938 = vmatpush1.msra.mxu0 0.0
        %1939 = vmatprep.subr.mxu0 0.0
        %1940 = vmatpush1.msra.mxu0 0.0
        %1941 = vmatprep.subr.mxu0 0.0
        %1942 = vmatpush1.msra.mxu0 0.0
        %1943 = vmatprep.subr.mxu0 0.0
        %1944 = vmatpush1.msra.mxu0 0.0
        %1945 = vmatprep.subr.mxu0 0.0
        %1946 = vmatpush1.msra.mxu0 0.0
        %1947 = vmatprep.subr.mxu0 0.0
        %1948 = vmatpush1.msra.mxu0 0.0
        %1949 = vmatprep.subr.mxu0 0.0
        %1950 = vmatpush1.msra.mxu0 0.0
        %1951 = vmatprep.subr.mxu0 0.0
        %1952 = vmatpush1.msra.mxu0 0.0
        %1953 = vmatprep.subr.mxu0 0.0
        %1954 = vmatpush1.msra.mxu0 0.0
        %1955 = vmatprep.subr.mxu0 0.0
        %1956 = vmatpush1.msra.mxu0 0.0
        %1957 = vmatprep.subr.mxu0 0.0
        %v1958 = vand.u32 %v1773, 4294901760
        %v1959 = vsub.f32 %v1773, %v1958
        %1960 = vmatpush1.msra.mxu0 %v1959
        %1961 = vmatprep.subr.mxu0 0.0
        %1962 = vmatpush2.msra.mxu0 0.0
        %1963 = vmatprep.subr.mxu0 0.0
        %1964 = vmatpush2.msra.mxu0 0.0
        %1965 = vmatprep.subr.mxu0 0.0
        %1966 = vmatpush2.msra.mxu0 0.0
        %1967 = vmatprep.subr.mxu0 0.0
        %1968 = vmatpush2.msra.mxu0 0.0
        %1969 = vmatprep.subr.mxu0 0.0
        %1970 = vmatpush2.msra.mxu0 0.0
        %1971 = vmatprep.subr.mxu0 0.0
        %1972 = vmatpush2.msra.mxu0 0.0
        %1973 = vmatprep.subr.mxu0 0.0
        %1974 = vmatpush2.msra.mxu0 0.0
        %1975 = vmatprep.subr.mxu0 0.0
        %1976 = vmatpush2.msra.mxu0 0.0
        %1977 = vmatprep.subr.mxu0 0.0
        %1978 = vmatpush2.msra.mxu0 0.0
        %1979 = vmatprep.subr.mxu0 0.0
        %1980 = vmatpush2.msra.mxu0 0.0
        %1981 = vmatprep.subr.mxu0 0.0
        %1982 = vmatpush2.msra.mxu0 0.0
        %1983 = vmatprep.subr.mxu0 0.0
        %1984 = vmatpush2.msra.mxu0 0.0
        %1985 = vmatprep.subr.mxu0 0.0
        %1986 = vmatpush2.msra.mxu0 0.0
        %1987 = vmatprep.subr.mxu0 0.0
        %1988 = vmatpush2.msra.mxu0 0.0
        %1989 = vmatprep.subr.mxu0 0.0
        %1990 = vmatpush2.msra.mxu0 0.0
        %1991 = vmatprep.subr.mxu0 0.0
        %1992 = vmatpush2.msra.mxu0 0.0
        %1993 = vmatprep.mubr.f32.mxu0 0.0
        %v1994 = vand.u32 %v1770, 4294901760
        %v1995 = vsub.f32 %v1770, %v1994
        %1996 = vmatmul.mubr.f32.gmra.mxu0 %v1995
        %v1997 = vpop.f32.mrf.mxu0
        %v1998 = vadd.f32 %v1924, %v1997
        %v1999 = vpop.f32.mrf.mxu0
        %2000 = vdwg.mxu0
        %2001 = vmatprep.subr.mxu0 0.0
        %2002 = vmatpush1.msra.mxu0 0.0
        %2003 = vmatprep.subr.mxu0 0.0
        %2004 = vmatpush1.msra.mxu0 0.0
        %2005 = vmatprep.subr.mxu0 0.0
        %2006 = vmatpush1.msra.mxu0 0.0
        %2007 = vmatprep.subr.mxu0 0.0
        %2008 = vmatpush1.msra.mxu0 0.0
        %2009 = vmatprep.subr.mxu0 0.0
        %2010 = vmatpush1.msra.mxu0 0.0
        %2011 = vmatprep.subr.mxu0 0.0
        %2012 = vmatpush1.msra.mxu0 0.0
        %2013 = vmatprep.subr.mxu0 0.0
        %2014 = vmatpush1.msra.mxu0 0.0
        %2015 = vmatprep.subr.mxu0 0.0
        %2016 = vmatpush1.msra.mxu0 0.0
        %2017 = vmatprep.subr.mxu0 0.0
        %2018 = vmatpush1.msra.mxu0 0.0
        %2019 = vmatprep.subr.mxu0 0.0
        %2020 = vmatpush1.msra.mxu0 0.0
        %2021 = vmatprep.subr.mxu0 0.0
        %2022 = vmatpush1.msra.mxu0 0.0
        %2023 = vmatprep.subr.mxu0 0.0
        %2024 = vmatpush1.msra.mxu0 0.0
        %2025 = vmatprep.subr.mxu0 0.0
        %2026 = vmatpush1.msra.mxu0 0.0
        %2027 = vmatprep.subr.mxu0 0.0
        %2028 = vmatpush1.msra.mxu0 0.0
        %2029 = vmatprep.subr.mxu0 0.0
        %2030 = vmatpush1.msra.mxu0 0.0
        %2031 = vmatprep.subr.mxu0 0.0
        %v2032 = vand.u32 %v1773, 4294901760
        %2033 = vmatpush1.msra.mxu0 %v2032
        %2034 = vmatprep.subr.mxu0 0.0
        %2035 = vmatpush2.msra.mxu0 0.0
        %2036 = vmatprep.subr.mxu0 0.0
        %2037 = vmatpush2.msra.mxu0 0.0
        %2038 = vmatprep.subr.mxu0 0.0
        %2039 = vmatpush2.msra.mxu0 0.0
        %2040 = vmatprep.subr.mxu0 0.0
        %2041 = vmatpush2.msra.mxu0 0.0
        %2042 = vmatprep.subr.mxu0 0.0
        %2043 = vmatpush2.msra.mxu0 0.0
        %2044 = vmatprep.subr.mxu0 0.0
        %2045 = vmatpush2.msra.mxu0 0.0
        %2046 = vmatprep.subr.mxu0 0.0
        %2047 = vmatpush2.msra.mxu0 0.0
        %2048 = vmatprep.subr.mxu0 0.0
        %2049 = vmatpush2.msra.mxu0 0.0
        %2050 = vmatprep.subr.mxu0 0.0
        %2051 = vmatpush2.msra.mxu0 0.0
        %2052 = vmatprep.subr.mxu0 0.0
        %2053 = vmatpush2.msra.mxu0 0.0
        %2054 = vmatprep.subr.mxu0 0.0
        %2055 = vmatpush2.msra.mxu0 0.0
        %2056 = vmatprep.subr.mxu0 0.0
        %2057 = vmatpush2.msra.mxu0 0.0
        %2058 = vmatprep.subr.mxu0 0.0
        %2059 = vmatpush2.msra.mxu0 0.0
        %2060 = vmatprep.subr.mxu0 0.0
        %2061 = vmatpush2.msra.mxu0 0.0
        %2062 = vmatprep.subr.mxu0 0.0
        %2063 = vmatpush2.msra.mxu0 0.0
        %2064 = vmatprep.subr.mxu0 0.0
        %2065 = vmatpush2.msra.mxu0 0.0
        %2066 = vmatprep.mubr.f32.mxu0 0.0
        %v2067 = vand.u32 %v1770, 4294901760
        %v2068 = vsub.f32 %v1770, %v2067
        %v2069 = vand.u32 %v2068, 4294901760
        %2070 = vmatmul.mubr.f32.gmra.mxu0 %v2069
        %v2071 = vpop.f32.mrf.mxu0
        %v2072 = vadd.f32 %v1998, %v2071
        %v2073 = vpop.f32.mrf.mxu0
        %2074 = vdwg.mxu0
        %2075 = vmatprep.subr.mxu0 0.0
        %2076 = vmatpush1.msra.mxu0 0.0
        %2077 = vmatprep.subr.mxu0 0.0
        %2078 = vmatpush1.msra.mxu0 0.0
        %2079 = vmatprep.subr.mxu0 0.0
        %2080 = vmatpush1.msra.mxu0 0.0
        %2081 = vmatprep.subr.mxu0 0.0
        %2082 = vmatpush1.msra.mxu0 0.0
        %2083 = vmatprep.subr.mxu0 0.0
        %2084 = vmatpush1.msra.mxu0 0.0
        %2085 = vmatprep.subr.mxu0 0.0
        %2086 = vmatpush1.msra.mxu0 0.0
        %2087 = vmatprep.subr.mxu0 0.0
        %2088 = vmatpush1.msra.mxu0 0.0
        %2089 = vmatprep.subr.mxu0 0.0
        %2090 = vmatpush1.msra.mxu0 0.0
        %2091 = vmatprep.subr.mxu0 0.0
        %2092 = vmatpush1.msra.mxu0 0.0
        %2093 = vmatprep.subr.mxu0 0.0
        %2094 = vmatpush1.msra.mxu0 0.0
        %2095 = vmatprep.subr.mxu0 0.0
        %2096 = vmatpush1.msra.mxu0 0.0
        %2097 = vmatprep.subr.mxu0 0.0
        %2098 = vmatpush1.msra.mxu0 0.0
        %2099 = vmatprep.subr.mxu0 0.0
        %2100 = vmatpush1.msra.mxu0 0.0
        %2101 = vmatprep.subr.mxu0 0.0
        %2102 = vmatpush1.msra.mxu0 0.0
        %2103 = vmatprep.subr.mxu0 0.0
        %2104 = vmatpush1.msra.mxu0 0.0
        %2105 = vmatprep.subr.mxu0 0.0
        %v2106 = vand.u32 %v1773, 4294901760
        %v2107 = vsub.f32 %v1773, %v2106
        %v2108 = vand.u32 %v2107, 4294901760
        %2109 = vmatpush1.msra.mxu0 %v2108
        %2110 = vmatprep.subr.mxu0 0.0
        %2111 = vmatpush2.msra.mxu0 0.0
        %2112 = vmatprep.subr.mxu0 0.0
        %2113 = vmatpush2.msra.mxu0 0.0
        %2114 = vmatprep.subr.mxu0 0.0
        %2115 = vmatpush2.msra.mxu0 0.0
        %2116 = vmatprep.subr.mxu0 0.0
        %2117 = vmatpush2.msra.mxu0 0.0
        %2118 = vmatprep.subr.mxu0 0.0
        %2119 = vmatpush2.msra.mxu0 0.0
        %2120 = vmatprep.subr.mxu0 0.0
        %2121 = vmatpush2.msra.mxu0 0.0
        %2122 = vmatprep.subr.mxu0 0.0
        %2123 = vmatpush2.msra.mxu0 0.0
        %2124 = vmatprep.subr.mxu0 0.0
        %2125 = vmatpush2.msra.mxu0 0.0
        %2126 = vmatprep.subr.mxu0 0.0
        %2127 = vmatpush2.msra.mxu0 0.0
        %2128 = vmatprep.subr.mxu0 0.0
        %2129 = vmatpush2.msra.mxu0 0.0
        %2130 = vmatprep.subr.mxu0 0.0
        %2131 = vmatpush2.msra.mxu0 0.0
        %2132 = vmatprep.subr.mxu0 0.0
        %2133 = vmatpush2.msra.mxu0 0.0
        %2134 = vmatprep.subr.mxu0 0.0
        %2135 = vmatpush2.msra.mxu0 0.0
        %2136 = vmatprep.subr.mxu0 0.0
        %2137 = vmatpush2.msra.mxu0 0.0
        %2138 = vmatprep.subr.mxu0 0.0
        %2139 = vmatpush2.msra.mxu0 0.0
        %2140 = vmatprep.subr.mxu0 0.0
        %2141 = vmatpush2.msra.mxu0 0.0
        %2142 = vmatprep.mubr.f32.mxu0 0.0
        %v2143 = vand.u32 %v1770, 4294901760
        %2144 = vmatmul.mubr.f32.gmra.mxu0 %v2143
        %v2145 = vpop.f32.mrf.mxu0
        %v2146 = vadd.f32 %v2072, %v2145
        %v2147 = vpop.f32.mrf.mxu0
        %2148 = vdwg.mxu0
        %2149 = vmatprep.subr.mxu0 0.0
        %2150 = vmatpush1.msra.mxu0 0.0
        %2151 = vmatprep.subr.mxu0 0.0
        %2152 = vmatpush1.msra.mxu0 0.0
        %2153 = vmatprep.subr.mxu0 0.0
        %2154 = vmatpush1.msra.mxu0 0.0
        %2155 = vmatprep.subr.mxu0 0.0
        %2156 = vmatpush1.msra.mxu0 0.0
        %2157 = vmatprep.subr.mxu0 0.0
        %2158 = vmatpush1.msra.mxu0 0.0
        %2159 = vmatprep.subr.mxu0 0.0
        %2160 = vmatpush1.msra.mxu0 0.0
        %2161 = vmatprep.subr.mxu0 0.0
        %2162 = vmatpush1.msra.mxu0 0.0
        %2163 = vmatprep.subr.mxu0 0.0
        %2164 = vmatpush1.msra.mxu0 0.0
        %2165 = vmatprep.subr.mxu0 0.0
        %2166 = vmatpush1.msra.mxu0 0.0
        %2167 = vmatprep.subr.mxu0 0.0
        %2168 = vmatpush1.msra.mxu0 0.0
        %2169 = vmatprep.subr.mxu0 0.0
        %2170 = vmatpush1.msra.mxu0 0.0
        %2171 = vmatprep.subr.mxu0 0.0
        %2172 = vmatpush1.msra.mxu0 0.0
        %2173 = vmatprep.subr.mxu0 0.0
        %2174 = vmatpush1.msra.mxu0 0.0
        %2175 = vmatprep.subr.mxu0 0.0
        %2176 = vmatpush1.msra.mxu0 0.0
        %2177 = vmatprep.subr.mxu0 0.0
        %2178 = vmatpush1.msra.mxu0 0.0
        %2179 = vmatprep.subr.mxu0 0.0
        %v2180 = vand.u32 %v1773, 4294901760
        %2181 = vmatpush1.msra.mxu0 %v2180
        %2182 = vmatprep.subr.mxu0 0.0
        %2183 = vmatpush2.msra.mxu0 0.0
        %2184 = vmatprep.subr.mxu0 0.0
        %2185 = vmatpush2.msra.mxu0 0.0
        %2186 = vmatprep.subr.mxu0 0.0
        %2187 = vmatpush2.msra.mxu0 0.0
        %2188 = vmatprep.subr.mxu0 0.0
        %2189 = vmatpush2.msra.mxu0 0.0
        %2190 = vmatprep.subr.mxu0 0.0
        %2191 = vmatpush2.msra.mxu0 0.0
        %2192 = vmatprep.subr.mxu0 0.0
        %2193 = vmatpush2.msra.mxu0 0.0
        %2194 = vmatprep.subr.mxu0 0.0
        %2195 = vmatpush2.msra.mxu0 0.0
        %2196 = vmatprep.subr.mxu0 0.0
        %2197 = vmatpush2.msra.mxu0 0.0
        %2198 = vmatprep.subr.mxu0 0.0
        %2199 = vmatpush2.msra.mxu0 0.0
        %2200 = vmatprep.subr.mxu0 0.0
        %2201 = vmatpush2.msra.mxu0 0.0
        %2202 = vmatprep.subr.mxu0 0.0
        %2203 = vmatpush2.msra.mxu0 0.0
        %2204 = vmatprep.subr.mxu0 0.0
        %2205 = vmatpush2.msra.mxu0 0.0
        %2206 = vmatprep.subr.mxu0 0.0
        %2207 = vmatpush2.msra.mxu0 0.0
        %2208 = vmatprep.subr.mxu0 0.0
        %2209 = vmatpush2.msra.mxu0 0.0
        %2210 = vmatprep.subr.mxu0 0.0
        %2211 = vmatpush2.msra.mxu0 0.0
        %2212 = vmatprep.subr.mxu0 0.0
        %2213 = vmatpush2.msra.mxu0 0.0
        %2214 = vmatprep.mubr.f32.mxu0 0.0
        %v2215 = vand.u32 %v1770, 4294901760
        %2216 = vmatmul.mubr.f32.gmra.mxu0 %v2215
        %v2217 = vpop.f32.mrf.mxu0
        %v2218 = vadd.f32 %v2146, %v2217
        %v2219 = vpop.f32.mrf.mxu0
        %2220 = vdwg.mxu0
        %v2221 = vld [vmem:[%s7] sm:$0xf]
        %v2224 = vunpack.c.l.s4 1966171168
        %v2225 = vunpack.c.0.s8 %v2224
        %v2226 = vlaneseq
        %v2227 = vshrl.u32 %v2226, 7
        %v2228 = vsub.s32 %v2225, %v2227
        %v2229 = vrot.slane %v2218, %v2228
        %v2230 = vcombine.high %v2229, %v2229
        %v2232 = vunpack.c.l.s4 1966171168
        %v2233 = vunpack.c.0.s8 %v2232
        %v2234 = vlaneseq
        %v2235 = vshrl.u32 %v2234, 7
        %v2236 = vsub.s32 %v2233, %v2235
        %v2237 = vrot.slane %v2229, %v2236
        %v2239 = vunpack.c.l.s4 1966171168
        %v2240 = vunpack.c.0.s8 %v2239
        %v2241 = vlaneseq
        %v2242 = vshrl.u32 %v2241, 7
        %v2243 = vsub.s32 %v2240, %v2242
        %v2244 = vrot.slane %v2230, %v2243
        %v2245 = vcombine.high %v2237, %v2237
        %v2246 = vcombine.high %v2244, %v2244
        %v2247 = vsel %vm1766, 1, 0
        %vm2248 = vcmp.eq.s32.totalorder %v2247, 1
        %v2249 = vlaneseq
        %v2250 = vshrl.u32 %v2249, 7
        %v2251 = vsub.s32 0, %v2250
        %v2252 = vrot.slane %v2237, %v2251
        %v2253 = vlaneseq
        %v2254 = vshrl.u32 %v2253, 7
        %v2255 = vsub.s32 0, %v2254
        %v2256 = vrot.slane %v2244, %v2255
        %v2257 = vlaneseq
        %v2258 = vshrl.u32 %v2257, 7
        %v2259 = vsub.s32 0, %v2258
        %v2260 = vrot.slane %v2245, %v2259
        %v2261 = vlaneseq
        %v2262 = vshrl.u32 %v2261, 7
        %v2263 = vsub.s32 0, %v2262
        %v2264 = vrot.slane %v2246, %v2263
        %v2269 = vsel %vm2248, %v2252, -inf
        %v2270 = vsel %vm2248, %v2256, -inf
        %v2271 = vsel %vm2248, %v2260, -inf
        %v2272 = vsel %vm2248, %v2264, -inf
        %v2273 = vsel %vm1739, %v2269, -inf
        %2274 = vmax.xlane.f32.xlu0 %v2273
        %v2275 = vpop.xlane.xlu0 %2274
        %v2276 = vsel %vm1739, %v2270, -inf
        %2277 = vmax.xlane.f32.xlu0 %v2276
        %v2278 = vpop.xlane.xlu0 %2277
        %v2279 = vsel %vm1739, %v2271, -inf
        %2280 = vmax.xlane.f32.xlu0 %v2279
        %v2281 = vpop.xlane.xlu0 %2280
        %v2282 = vsel %vm1739, %v2272, -inf
        %2283 = vmax.xlane.f32.xlu0 %v2282
        %v2284 = vpop.xlane.xlu0 %2283
        %v2289 = vlaneseq
        %v2290 = vand.u32 %v2289, 127
        %v2291 = vlaneseq
        %v2292 = vshrl.u32 %v2291, 7
        %v2293 = vsub.s32 %v2290, %v2292
        %v2294 = vrot.slane %v2275, %v2293
        %v2295 = vlaneseq
        %v2296 = vshrl.u32 %v2295, 7
        %v2297 = vsub.s32 %v2290, %v2296
        %v2298 = vrot.slane %v2278, %v2297
        %v2299 = vlaneseq
        %v2300 = vshrl.u32 %v2299, 7
        %v2301 = vsub.s32 %v2290, %v2300
        %v2302 = vrot.slane %v2281, %v2301
        %v2303 = vlaneseq
        %v2304 = vshrl.u32 %v2303, 7
        %v2305 = vsub.s32 %v2290, %v2304
        %v2306 = vrot.slane %v2284, %v2305
        %vm2307 = vcmask 1041409
        %v2308 = vsel %vm2307, %v2298, %v2294
        %vm2309 = vcmask 1042434
        %v2310 = vsel %vm2309, %v2302, %v2308
        %vm2311 = vcmask 1043459
        %v2312 = vsel %vm2311, %v2306, %v2310
        %v2315 = vsel %vm1768, %v2221, 0
        %2317 = vmatprep.subr.mxu0 0.0
        %2318 = vmatpush1.msra.mxu0 0.0
        %2319 = vmatprep.subr.mxu0 0.0
        %2320 = vmatpush1.msra.mxu0 0.0
        %2321 = vmatprep.subr.mxu0 0.0
        %2322 = vmatpush1.msra.mxu0 0.0
        %2323 = vmatprep.subr.mxu0 0.0
        %2324 = vmatpush1.msra.mxu0 0.0
        %2325 = vmatprep.subr.mxu0 0.0
        %2326 = vmatpush1.msra.mxu0 0.0
        %2327 = vmatprep.subr.mxu0 0.0
        %2328 = vmatpush1.msra.mxu0 0.0
        %2329 = vmatprep.subr.mxu0 0.0
        %2330 = vmatpush1.msra.mxu0 0.0
        %2331 = vmatprep.subr.mxu0 0.0
        %2332 = vmatpush1.msra.mxu0 0.0
        %2333 = vmatprep.subr.mxu0 0.0
        %2334 = vmatpush1.msra.mxu0 0.0
        %2335 = vmatprep.subr.mxu0 0.0
        %2336 = vmatpush1.msra.mxu0 0.0
        %2337 = vmatprep.subr.mxu0 0.0
        %2338 = vmatpush1.msra.mxu0 0.0
        %2339 = vmatprep.subr.mxu0 0.0
        %2340 = vmatpush1.msra.mxu0 0.0
        %2341 = vmatprep.subr.mxu0 0.0
        %2342 = vmatpush1.msra.mxu0 0.0
        %2343 = vmatprep.subr.mxu0 0.0
        %2344 = vmatpush1.msra.mxu0 0.0
        %2345 = vmatprep.subr.mxu0 0.0
        %2346 = vmatpush1.msra.mxu0 0.0
        %2347 = vmatprep.subr.mxu0 0.0
        %v2348 = vand.u32 %v1773, 4294901760
        %2349 = vmatpush1.msra.mxu0 %v2348
        %2350 = vmatprep.subr.mxu0 0.0
        %2351 = vmatpush2.msra.mxu0 0.0
        %2352 = vmatprep.subr.mxu0 0.0
        %2353 = vmatpush2.msra.mxu0 0.0
        %2354 = vmatprep.subr.mxu0 0.0
        %2355 = vmatpush2.msra.mxu0 0.0
        %2356 = vmatprep.subr.mxu0 0.0
        %2357 = vmatpush2.msra.mxu0 0.0
        %2358 = vmatprep.subr.mxu0 0.0
        %2359 = vmatpush2.msra.mxu0 0.0
        %2360 = vmatprep.subr.mxu0 0.0
        %2361 = vmatpush2.msra.mxu0 0.0
        %2362 = vmatprep.subr.mxu0 0.0
        %2363 = vmatpush2.msra.mxu0 0.0
        %2364 = vmatprep.subr.mxu0 0.0
        %2365 = vmatpush2.msra.mxu0 0.0
        %2366 = vmatprep.subr.mxu0 0.0
        %2367 = vmatpush2.msra.mxu0 0.0
        %2368 = vmatprep.subr.mxu0 0.0
        %2369 = vmatpush2.msra.mxu0 0.0
        %2370 = vmatprep.subr.mxu0 0.0
        %2371 = vmatpush2.msra.mxu0 0.0
        %2372 = vmatprep.subr.mxu0 0.0
        %2373 = vmatpush2.msra.mxu0 0.0
        %2374 = vmatprep.subr.mxu0 0.0
        %2375 = vmatpush2.msra.mxu0 0.0
        %2376 = vmatprep.subr.mxu0 0.0
        %2377 = vmatpush2.msra.mxu0 0.0
        %2378 = vmatprep.subr.mxu0 0.0
        %2379 = vmatpush2.msra.mxu0 0.0
        %2380 = vmatprep.subr.mxu0 0.0
        %2381 = vmatpush2.msra.mxu0 0.0
        %2382 = vmatprep.mubr.f32.mxu0 0.0
        %v2383 = vand.u32 %v2315, 4294901760
        %v2384 = vsub.f32 %v2315, %v2383
        %v2385 = vand.u32 %v2384, 4294901760
        %v2386 = vsub.f32 %v2384, %v2385
        %v2387 = vand.u32 %v2386, 4294901760
        %2388 = vmatmul.mubr.f32.gmra.mxu0 %v2387
        %v2389 = vpop.f32.mrf.mxu0
        %v2390 = vadd.f32 %v2312, %v2389
        %v2391 = vpop.f32.mrf.mxu0
        %2392 = vdwg.mxu0
        %2393 = vmatprep.subr.mxu0 0.0
        %2394 = vmatpush1.msra.mxu0 0.0
        %2395 = vmatprep.subr.mxu0 0.0
        %2396 = vmatpush1.msra.mxu0 0.0
        %2397 = vmatprep.subr.mxu0 0.0
        %2398 = vmatpush1.msra.mxu0 0.0
        %2399 = vmatprep.subr.mxu0 0.0
        %2400 = vmatpush1.msra.mxu0 0.0
        %2401 = vmatprep.subr.mxu0 0.0
        %2402 = vmatpush1.msra.mxu0 0.0
        %2403 = vmatprep.subr.mxu0 0.0
        %2404 = vmatpush1.msra.mxu0 0.0
        %2405 = vmatprep.subr.mxu0 0.0
        %2406 = vmatpush1.msra.mxu0 0.0
        %2407 = vmatprep.subr.mxu0 0.0
        %2408 = vmatpush1.msra.mxu0 0.0
        %2409 = vmatprep.subr.mxu0 0.0
        %2410 = vmatpush1.msra.mxu0 0.0
        %2411 = vmatprep.subr.mxu0 0.0
        %2412 = vmatpush1.msra.mxu0 0.0
        %2413 = vmatprep.subr.mxu0 0.0
        %2414 = vmatpush1.msra.mxu0 0.0
        %2415 = vmatprep.subr.mxu0 0.0
        %2416 = vmatpush1.msra.mxu0 0.0
        %2417 = vmatprep.subr.mxu0 0.0
        %2418 = vmatpush1.msra.mxu0 0.0
        %2419 = vmatprep.subr.mxu0 0.0
        %2420 = vmatpush1.msra.mxu0 0.0
        %2421 = vmatprep.subr.mxu0 0.0
        %2422 = vmatpush1.msra.mxu0 0.0
        %2423 = vmatprep.subr.mxu0 0.0
        %v2424 = vand.u32 %v1773, 4294901760
        %v2425 = vsub.f32 %v1773, %v2424
        %v2426 = vand.u32 %v2425, 4294901760
        %v2427 = vsub.f32 %v2425, %v2426
        %v2428 = vand.u32 %v2427, 4294901760
        %2429 = vmatpush1.msra.mxu0 %v2428
        %2430 = vmatprep.subr.mxu0 0.0
        %2431 = vmatpush2.msra.mxu0 0.0
        %2432 = vmatprep.subr.mxu0 0.0
        %2433 = vmatpush2.msra.mxu0 0.0
        %2434 = vmatprep.subr.mxu0 0.0
        %2435 = vmatpush2.msra.mxu0 0.0
        %2436 = vmatprep.subr.mxu0 0.0
        %2437 = vmatpush2.msra.mxu0 0.0
        %2438 = vmatprep.subr.mxu0 0.0
        %2439 = vmatpush2.msra.mxu0 0.0
        %2440 = vmatprep.subr.mxu0 0.0
        %2441 = vmatpush2.msra.mxu0 0.0
        %2442 = vmatprep.subr.mxu0 0.0
        %2443 = vmatpush2.msra.mxu0 0.0
        %2444 = vmatprep.subr.mxu0 0.0
        %2445 = vmatpush2.msra.mxu0 0.0
        %2446 = vmatprep.subr.mxu0 0.0
        %2447 = vmatpush2.msra.mxu0 0.0
        %2448 = vmatprep.subr.mxu0 0.0
        %2449 = vmatpush2.msra.mxu0 0.0
        %2450 = vmatprep.subr.mxu0 0.0
        %2451 = vmatpush2.msra.mxu0 0.0
        %2452 = vmatprep.subr.mxu0 0.0
        %2453 = vmatpush2.msra.mxu0 0.0
        %2454 = vmatprep.subr.mxu0 0.0
        %2455 = vmatpush2.msra.mxu0 0.0
        %2456 = vmatprep.subr.mxu0 0.0
        %2457 = vmatpush2.msra.mxu0 0.0
        %2458 = vmatprep.subr.mxu0 0.0
        %2459 = vmatpush2.msra.mxu0 0.0
        %2460 = vmatprep.subr.mxu0 0.0
        %2461 = vmatpush2.msra.mxu0 0.0
        %2462 = vmatprep.mubr.f32.mxu0 0.0
        %v2463 = vand.u32 %v2315, 4294901760
        %2464 = vmatmul.mubr.f32.gmra.mxu0 %v2463
        %v2465 = vpop.f32.mrf.mxu0
        %v2466 = vadd.f32 %v2390, %v2465
        %v2467 = vpop.f32.mrf.mxu0
        %2468 = vdwg.mxu0
        %2469 = vmatprep.subr.mxu0 0.0
        %2470 = vmatpush1.msra.mxu0 0.0
        %2471 = vmatprep.subr.mxu0 0.0
        %2472 = vmatpush1.msra.mxu0 0.0
        %2473 = vmatprep.subr.mxu0 0.0
        %2474 = vmatpush1.msra.mxu0 0.0
        %2475 = vmatprep.subr.mxu0 0.0
        %2476 = vmatpush1.msra.mxu0 0.0
        %2477 = vmatprep.subr.mxu0 0.0
        %2478 = vmatpush1.msra.mxu0 0.0
        %2479 = vmatprep.subr.mxu0 0.0
        %2480 = vmatpush1.msra.mxu0 0.0
        %2481 = vmatprep.subr.mxu0 0.0
        %2482 = vmatpush1.msra.mxu0 0.0
        %2483 = vmatprep.subr.mxu0 0.0
        %2484 = vmatpush1.msra.mxu0 0.0
        %2485 = vmatprep.subr.mxu0 0.0
        %2486 = vmatpush1.msra.mxu0 0.0
        %2487 = vmatprep.subr.mxu0 0.0
        %2488 = vmatpush1.msra.mxu0 0.0
        %2489 = vmatprep.subr.mxu0 0.0
        %2490 = vmatpush1.msra.mxu0 0.0
        %2491 = vmatprep.subr.mxu0 0.0
        %2492 = vmatpush1.msra.mxu0 0.0
        %2493 = vmatprep.subr.mxu0 0.0
        %2494 = vmatpush1.msra.mxu0 0.0
        %2495 = vmatprep.subr.mxu0 0.0
        %2496 = vmatpush1.msra.mxu0 0.0
        %2497 = vmatprep.subr.mxu0 0.0
        %2498 = vmatpush1.msra.mxu0 0.0
        %2499 = vmatprep.subr.mxu0 0.0
        %v2500 = vand.u32 %v1773, 4294901760
        %v2501 = vsub.f32 %v1773, %v2500
        %2502 = vmatpush1.msra.mxu0 %v2501
        %2503 = vmatprep.subr.mxu0 0.0
        %2504 = vmatpush2.msra.mxu0 0.0
        %2505 = vmatprep.subr.mxu0 0.0
        %2506 = vmatpush2.msra.mxu0 0.0
        %2507 = vmatprep.subr.mxu0 0.0
        %2508 = vmatpush2.msra.mxu0 0.0
        %2509 = vmatprep.subr.mxu0 0.0
        %2510 = vmatpush2.msra.mxu0 0.0
        %2511 = vmatprep.subr.mxu0 0.0
        %2512 = vmatpush2.msra.mxu0 0.0
        %2513 = vmatprep.subr.mxu0 0.0
        %2514 = vmatpush2.msra.mxu0 0.0
        %2515 = vmatprep.subr.mxu0 0.0
        %2516 = vmatpush2.msra.mxu0 0.0
        %2517 = vmatprep.subr.mxu0 0.0
        %2518 = vmatpush2.msra.mxu0 0.0
        %2519 = vmatprep.subr.mxu0 0.0
        %2520 = vmatpush2.msra.mxu0 0.0
        %2521 = vmatprep.subr.mxu0 0.0
        %2522 = vmatpush2.msra.mxu0 0.0
        %2523 = vmatprep.subr.mxu0 0.0
        %2524 = vmatpush2.msra.mxu0 0.0
        %2525 = vmatprep.subr.mxu0 0.0
        %2526 = vmatpush2.msra.mxu0 0.0
        %2527 = vmatprep.subr.mxu0 0.0
        %2528 = vmatpush2.msra.mxu0 0.0
        %2529 = vmatprep.subr.mxu0 0.0
        %2530 = vmatpush2.msra.mxu0 0.0
        %2531 = vmatprep.subr.mxu0 0.0
        %2532 = vmatpush2.msra.mxu0 0.0
        %2533 = vmatprep.subr.mxu0 0.0
        %2534 = vmatpush2.msra.mxu0 0.0
        %2535 = vmatprep.mubr.f32.mxu0 0.0
        %v2536 = vand.u32 %v2315, 4294901760
        %v2537 = vsub.f32 %v2315, %v2536
        %2538 = vmatmul.mubr.f32.gmra.mxu0 %v2537
        %v2539 = vpop.f32.mrf.mxu0
        %v2540 = vadd.f32 %v2466, %v2539
        %v2541 = vpop.f32.mrf.mxu0
        %2542 = vdwg.mxu0
        %2543 = vmatprep.subr.mxu0 0.0
        %2544 = vmatpush1.msra.mxu0 0.0
        %2545 = vmatprep.subr.mxu0 0.0
        %2546 = vmatpush1.msra.mxu0 0.0
        %2547 = vmatprep.subr.mxu0 0.0
        %2548 = vmatpush1.msra.mxu0 0.0
        %2549 = vmatprep.subr.mxu0 0.0
        %2550 = vmatpush1.msra.mxu0 0.0
        %2551 = vmatprep.subr.mxu0 0.0
        %2552 = vmatpush1.msra.mxu0 0.0
        %2553 = vmatprep.subr.mxu0 0.0
        %2554 = vmatpush1.msra.mxu0 0.0
        %2555 = vmatprep.subr.mxu0 0.0
        %2556 = vmatpush1.msra.mxu0 0.0
        %2557 = vmatprep.subr.mxu0 0.0
        %2558 = vmatpush1.msra.mxu0 0.0
        %2559 = vmatprep.subr.mxu0 0.0
        %2560 = vmatpush1.msra.mxu0 0.0
        %2561 = vmatprep.subr.mxu0 0.0
        %2562 = vmatpush1.msra.mxu0 0.0
        %2563 = vmatprep.subr.mxu0 0.0
        %2564 = vmatpush1.msra.mxu0 0.0
        %2565 = vmatprep.subr.mxu0 0.0
        %2566 = vmatpush1.msra.mxu0 0.0
        %2567 = vmatprep.subr.mxu0 0.0
        %2568 = vmatpush1.msra.mxu0 0.0
        %2569 = vmatprep.subr.mxu0 0.0
        %2570 = vmatpush1.msra.mxu0 0.0
        %2571 = vmatprep.subr.mxu0 0.0
        %2572 = vmatpush1.msra.mxu0 0.0
        %2573 = vmatprep.subr.mxu0 0.0
        %v2574 = vand.u32 %v1773, 4294901760
        %2575 = vmatpush1.msra.mxu0 %v2574
        %2576 = vmatprep.subr.mxu0 0.0
        %2577 = vmatpush2.msra.mxu0 0.0
        %2578 = vmatprep.subr.mxu0 0.0
        %2579 = vmatpush2.msra.mxu0 0.0
        %2580 = vmatprep.subr.mxu0 0.0
        %2581 = vmatpush2.msra.mxu0 0.0
        %2582 = vmatprep.subr.mxu0 0.0
        %2583 = vmatpush2.msra.mxu0 0.0
        %2584 = vmatprep.subr.mxu0 0.0
        %2585 = vmatpush2.msra.mxu0 0.0
        %2586 = vmatprep.subr.mxu0 0.0
        %2587 = vmatpush2.msra.mxu0 0.0
        %2588 = vmatprep.subr.mxu0 0.0
        %2589 = vmatpush2.msra.mxu0 0.0
        %2590 = vmatprep.subr.mxu0 0.0
        %2591 = vmatpush2.msra.mxu0 0.0
        %2592 = vmatprep.subr.mxu0 0.0
        %2593 = vmatpush2.msra.mxu0 0.0
        %2594 = vmatprep.subr.mxu0 0.0
        %2595 = vmatpush2.msra.mxu0 0.0
        %2596 = vmatprep.subr.mxu0 0.0
        %2597 = vmatpush2.msra.mxu0 0.0
        %2598 = vmatprep.subr.mxu0 0.0
        %2599 = vmatpush2.msra.mxu0 0.0
        %2600 = vmatprep.subr.mxu0 0.0
        %2601 = vmatpush2.msra.mxu0 0.0
        %2602 = vmatprep.subr.mxu0 0.0
        %2603 = vmatpush2.msra.mxu0 0.0
        %2604 = vmatprep.subr.mxu0 0.0
        %2605 = vmatpush2.msra.mxu0 0.0
        %2606 = vmatprep.subr.mxu0 0.0
        %2607 = vmatpush2.msra.mxu0 0.0
        %2608 = vmatprep.mubr.f32.mxu0 0.0
        %v2609 = vand.u32 %v2315, 4294901760
        %v2610 = vsub.f32 %v2315, %v2609
        %v2611 = vand.u32 %v2610, 4294901760
        %2612 = vmatmul.mubr.f32.gmra.mxu0 %v2611
        %v2613 = vpop.f32.mrf.mxu0
        %v2614 = vadd.f32 %v2540, %v2613
        %v2615 = vpop.f32.mrf.mxu0
        %2616 = vdwg.mxu0
        %2617 = vmatprep.subr.mxu0 0.0
        %2618 = vmatpush1.msra.mxu0 0.0
        %2619 = vmatprep.subr.mxu0 0.0
        %2620 = vmatpush1.msra.mxu0 0.0
        %2621 = vmatprep.subr.mxu0 0.0
        %2622 = vmatpush1.msra.mxu0 0.0
        %2623 = vmatprep.subr.mxu0 0.0
        %2624 = vmatpush1.msra.mxu0 0.0
        %2625 = vmatprep.subr.mxu0 0.0
        %2626 = vmatpush1.msra.mxu0 0.0
        %2627 = vmatprep.subr.mxu0 0.0
        %2628 = vmatpush1.msra.mxu0 0.0
        %2629 = vmatprep.subr.mxu0 0.0
        %2630 = vmatpush1.msra.mxu0 0.0
        %2631 = vmatprep.subr.mxu0 0.0
        %2632 = vmatpush1.msra.mxu0 0.0
        %2633 = vmatprep.subr.mxu0 0.0
        %2634 = vmatpush1.msra.mxu0 0.0
        %2635 = vmatprep.subr.mxu0 0.0
        %2636 = vmatpush1.msra.mxu0 0.0
        %2637 = vmatprep.subr.mxu0 0.0
        %2638 = vmatpush1.msra.mxu0 0.0
        %2639 = vmatprep.subr.mxu0 0.0
        %2640 = vmatpush1.msra.mxu0 0.0
        %2641 = vmatprep.subr.mxu0 0.0
        %2642 = vmatpush1.msra.mxu0 0.0
        %2643 = vmatprep.subr.mxu0 0.0
        %2644 = vmatpush1.msra.mxu0 0.0
        %2645 = vmatprep.subr.mxu0 0.0
        %2646 = vmatpush1.msra.mxu0 0.0
        %2647 = vmatprep.subr.mxu0 0.0
        %v2648 = vand.u32 %v1773, 4294901760
        %v2649 = vsub.f32 %v1773, %v2648
        %v2650 = vand.u32 %v2649, 4294901760
        %2651 = vmatpush1.msra.mxu0 %v2650
        %2652 = vmatprep.subr.mxu0 0.0
        %2653 = vmatpush2.msra.mxu0 0.0
        %2654 = vmatprep.subr.mxu0 0.0
        %2655 = vmatpush2.msra.mxu0 0.0
        %2656 = vmatprep.subr.mxu0 0.0
        %2657 = vmatpush2.msra.mxu0 0.0
        %2658 = vmatprep.subr.mxu0 0.0
        %2659 = vmatpush2.msra.mxu0 0.0
        %2660 = vmatprep.subr.mxu0 0.0
        %2661 = vmatpush2.msra.mxu0 0.0
        %2662 = vmatprep.subr.mxu0 0.0
        %2663 = vmatpush2.msra.mxu0 0.0
        %2664 = vmatprep.subr.mxu0 0.0
        %2665 = vmatpush2.msra.mxu0 0.0
        %2666 = vmatprep.subr.mxu0 0.0
        %2667 = vmatpush2.msra.mxu0 0.0
        %2668 = vmatprep.subr.mxu0 0.0
        %2669 = vmatpush2.msra.mxu0 0.0
        %2670 = vmatprep.subr.mxu0 0.0
        %2671 = vmatpush2.msra.mxu0 0.0
        %2672 = vmatprep.subr.mxu0 0.0
        %2673 = vmatpush2.msra.mxu0 0.0
        %2674 = vmatprep.subr.mxu0 0.0
        %2675 = vmatpush2.msra.mxu0 0.0
        %2676 = vmatprep.subr.mxu0 0.0
        %2677 = vmatpush2.msra.mxu0 0.0
        %2678 = vmatprep.subr.mxu0 0.0
        %2679 = vmatpush2.msra.mxu0 0.0
        %2680 = vmatprep.subr.mxu0 0.0
        %2681 = vmatpush2.msra.mxu0 0.0
        %2682 = vmatprep.subr.mxu0 0.0
        %2683 = vmatpush2.msra.mxu0 0.0
        %2684 = vmatprep.mubr.f32.mxu0 0.0
        %v2685 = vand.u32 %v2315, 4294901760
        %2686 = vmatmul.mubr.f32.gmra.mxu0 %v2685
        %v2687 = vpop.f32.mrf.mxu0
        %v2688 = vadd.f32 %v2614, %v2687
        %v2689 = vpop.f32.mrf.mxu0
        %2690 = vdwg.mxu0
        %2691 = vmatprep.subr.mxu0 0.0
        %2692 = vmatpush1.msra.mxu0 0.0
        %2693 = vmatprep.subr.mxu0 0.0
        %2694 = vmatpush1.msra.mxu0 0.0
        %2695 = vmatprep.subr.mxu0 0.0
        %2696 = vmatpush1.msra.mxu0 0.0
        %2697 = vmatprep.subr.mxu0 0.0
        %2698 = vmatpush1.msra.mxu0 0.0
        %2699 = vmatprep.subr.mxu0 0.0
        %2700 = vmatpush1.msra.mxu0 0.0
        %2701 = vmatprep.subr.mxu0 0.0
        %2702 = vmatpush1.msra.mxu0 0.0
        %2703 = vmatprep.subr.mxu0 0.0
        %2704 = vmatpush1.msra.mxu0 0.0
        %2705 = vmatprep.subr.mxu0 0.0
        %2706 = vmatpush1.msra.mxu0 0.0
        %2707 = vmatprep.subr.mxu0 0.0
        %2708 = vmatpush1.msra.mxu0 0.0
        %2709 = vmatprep.subr.mxu0 0.0
        %2710 = vmatpush1.msra.mxu0 0.0
        %2711 = vmatprep.subr.mxu0 0.0
        %2712 = vmatpush1.msra.mxu0 0.0
        %2713 = vmatprep.subr.mxu0 0.0
        %2714 = vmatpush1.msra.mxu0 0.0
        %2715 = vmatprep.subr.mxu0 0.0
        %2716 = vmatpush1.msra.mxu0 0.0
        %2717 = vmatprep.subr.mxu0 0.0
        %2718 = vmatpush1.msra.mxu0 0.0
        %2719 = vmatprep.subr.mxu0 0.0
        %2720 = vmatpush1.msra.mxu0 0.0
        %2721 = vmatprep.subr.mxu0 0.0
        %v2722 = vand.u32 %v1773, 4294901760
        %2723 = vmatpush1.msra.mxu0 %v2722
        %2724 = vmatprep.subr.mxu0 0.0
        %2725 = vmatpush2.msra.mxu0 0.0
        %2726 = vmatprep.subr.mxu0 0.0
        %2727 = vmatpush2.msra.mxu0 0.0
        %2728 = vmatprep.subr.mxu0 0.0
        %2729 = vmatpush2.msra.mxu0 0.0
        %2730 = vmatprep.subr.mxu0 0.0
        %2731 = vmatpush2.msra.mxu0 0.0
        %2732 = vmatprep.subr.mxu0 0.0
        %2733 = vmatpush2.msra.mxu0 0.0
        %2734 = vmatprep.subr.mxu0 0.0
        %2735 = vmatpush2.msra.mxu0 0.0
        %2736 = vmatprep.subr.mxu0 0.0
        %2737 = vmatpush2.msra.mxu0 0.0
        %2738 = vmatprep.subr.mxu0 0.0
        %2739 = vmatpush2.msra.mxu0 0.0
        %2740 = vmatprep.subr.mxu0 0.0
        %2741 = vmatpush2.msra.mxu0 0.0
        %2742 = vmatprep.subr.mxu0 0.0
        %2743 = vmatpush2.msra.mxu0 0.0
        %2744 = vmatprep.subr.mxu0 0.0
        %2745 = vmatpush2.msra.mxu0 0.0
        %2746 = vmatprep.subr.mxu0 0.0
        %2747 = vmatpush2.msra.mxu0 0.0
        %2748 = vmatprep.subr.mxu0 0.0
        %2749 = vmatpush2.msra.mxu0 0.0
        %2750 = vmatprep.subr.mxu0 0.0
        %2751 = vmatpush2.msra.mxu0 0.0
        %2752 = vmatprep.subr.mxu0 0.0
        %2753 = vmatpush2.msra.mxu0 0.0
        %2754 = vmatprep.subr.mxu0 0.0
        %2755 = vmatpush2.msra.mxu0 0.0
        %2756 = vmatprep.mubr.f32.mxu0 0.0
        %v2757 = vand.u32 %v2315, 4294901760
        %2758 = vmatmul.mubr.f32.gmra.mxu0 %v2757
        %v2759 = vpop.f32.mrf.mxu0
        %v2760 = vadd.f32 %v2688, %v2759
        %v2761 = vpop.f32.mrf.mxu0
        %2762 = vdwg.mxu0
        %v2763 = vld [vmem:[%s8] sm:$0xf]
        %2765 = vset.pattern.permute.xlu0 0
        %2766 = vperm.xlu0 %2765, %v2763
        %v2767 = vpop.permute.xlu0 %2766
        %v2769 = vadd.f32 %v2760, %v2767
        %vm2770 = vcmp.gt.f32.partialorder %v2769, 0.0
        %v2771 = vmul.f32 %v2769, 0.2
        %v2772 = vsel %vm2770, %v2769, %v2771
        %v2773 = vld [vmem:[%s9] sm:$0xff]
        %v2774 = vld [vmem:[%s9 + $0x8] sm:$0xff]
        %v2775 = vld [vmem:[%s10] sm:$0xff]
        %v2776 = vld [vmem:[%s10 + $0x8] sm:$0xff]
        %2778 = vset.pattern.permute.xlu0 0
        %2779 = vperm.xlu0 %2778, %v2775
        %v2780 = vpop.permute.xlu0 %2779
        %2783 = vset.pattern.permute.xlu0 0
        %2784 = vperm.xlu0 %2783, %v2776
        %v2785 = vpop.permute.xlu0 %2784
        %v2788 = vsel %vm1768, %v2773, 0
        %v2791 = vsel %vm1768, %v2774, 0
        %v2794 = vsel %vm1772, %v2772, 0
        %2796 = vmatprep.subr.mxu0 0.0
        %2797 = vmatpush1.msra.mxu0 0.0
        %2798 = vmatprep.subr.mxu0 0.0
        %2799 = vmatpush1.msra.mxu0 0.0
        %2800 = vmatprep.subr.mxu0 0.0
        %2801 = vmatpush1.msra.mxu0 0.0
        %2802 = vmatprep.subr.mxu0 0.0
        %2803 = vmatpush1.msra.mxu0 0.0
        %2804 = vmatprep.subr.mxu0 0.0
        %2805 = vmatpush1.msra.mxu0 0.0
        %2806 = vmatprep.subr.mxu0 0.0
        %2807 = vmatpush1.msra.mxu0 0.0
        %2808 = vmatprep.subr.mxu0 0.0
        %2809 = vmatpush1.msra.mxu0 0.0
        %2810 = vmatprep.subr.mxu0 0.0
        %2811 = vmatpush1.msra.mxu0 0.0
        %2812 = vmatprep.subr.mxu0 0.0
        %2813 = vmatpush1.msra.mxu0 0.0
        %2814 = vmatprep.subr.mxu0 0.0
        %2815 = vmatpush1.msra.mxu0 0.0
        %2816 = vmatprep.subr.mxu0 0.0
        %2817 = vmatpush1.msra.mxu0 0.0
        %2818 = vmatprep.subr.mxu0 0.0
        %2819 = vmatpush1.msra.mxu0 0.0
        %2820 = vmatprep.subr.mxu0 0.0
        %2821 = vmatpush1.msra.mxu0 0.0
        %2822 = vmatprep.subr.mxu0 0.0
        %2823 = vmatpush1.msra.mxu0 0.0
        %2824 = vmatprep.subr.mxu0 0.0
        %2825 = vmatpush1.msra.mxu0 0.0
        %2826 = vmatprep.subr.mxu0 0.0
        %v2827 = vand.u32 %v2794, 4294901760
        %2828 = vmatpush1.msra.mxu0 %v2827
        %2829 = vmatprep.subr.mxu0 0.0
        %2830 = vmatpush2.msra.mxu0 0.0
        %2831 = vmatprep.subr.mxu0 0.0
        %2832 = vmatpush2.msra.mxu0 0.0
        %2833 = vmatprep.subr.mxu0 0.0
        %2834 = vmatpush2.msra.mxu0 0.0
        %2835 = vmatprep.subr.mxu0 0.0
        %2836 = vmatpush2.msra.mxu0 0.0
        %2837 = vmatprep.subr.mxu0 0.0
        %2838 = vmatpush2.msra.mxu0 0.0
        %2839 = vmatprep.subr.mxu0 0.0
        %2840 = vmatpush2.msra.mxu0 0.0
        %2841 = vmatprep.subr.mxu0 0.0
        %2842 = vmatpush2.msra.mxu0 0.0
        %2843 = vmatprep.subr.mxu0 0.0
        %2844 = vmatpush2.msra.mxu0 0.0
        %2845 = vmatprep.subr.mxu0 0.0
        %2846 = vmatpush2.msra.mxu0 0.0
        %2847 = vmatprep.subr.mxu0 0.0
        %2848 = vmatpush2.msra.mxu0 0.0
        %2849 = vmatprep.subr.mxu0 0.0
        %2850 = vmatpush2.msra.mxu0 0.0
        %2851 = vmatprep.subr.mxu0 0.0
        %2852 = vmatpush2.msra.mxu0 0.0
        %2853 = vmatprep.subr.mxu0 0.0
        %2854 = vmatpush2.msra.mxu0 0.0
        %2855 = vmatprep.subr.mxu0 0.0
        %2856 = vmatpush2.msra.mxu0 0.0
        %2857 = vmatprep.subr.mxu0 0.0
        %2858 = vmatpush2.msra.mxu0 0.0
        %2859 = vmatprep.subr.mxu0 0.0
        %2860 = vmatpush2.msra.mxu0 0.0
        %2861 = vmatprep.mubr.f32.mxu0 0.0
        %v2862 = vand.u32 %v2788, 4294901760
        %v2863 = vsub.f32 %v2788, %v2862
        %v2864 = vand.u32 %v2863, 4294901760
        %v2865 = vsub.f32 %v2863, %v2864
        %v2866 = vand.u32 %v2865, 4294901760
        %2867 = vmatmul.mubr.f32.gmra.mxu0 %v2866
        %v2868 = vpop.f32.mrf.mxu0
        %v2869 = vadd.f32 %v2780, %v2868
        %v2870 = vpop.f32.mrf.mxu0
        %2871 = vmatprep.mubr.f32.mxu0 0.0
        %v2872 = vand.u32 %v2791, 4294901760
        %v2873 = vsub.f32 %v2791, %v2872
        %v2874 = vand.u32 %v2873, 4294901760
        %v2875 = vsub.f32 %v2873, %v2874
        %v2876 = vand.u32 %v2875, 4294901760
        %2877 = vmatmul.mubr.f32.gmra.mxu0 %v2876
        %v2878 = vpop.f32.mrf.mxu0
        %v2879 = vadd.f32 %v2785, %v2878
        %v2880 = vpop.f32.mrf.mxu0
        %2881 = vdwg.mxu0
        %2882 = vmatprep.subr.mxu0 0.0
        %2883 = vmatpush1.msra.mxu0 0.0
        %2884 = vmatprep.subr.mxu0 0.0
        %2885 = vmatpush1.msra.mxu0 0.0
        %2886 = vmatprep.subr.mxu0 0.0
        %2887 = vmatpush1.msra.mxu0 0.0
        %2888 = vmatprep.subr.mxu0 0.0
        %2889 = vmatpush1.msra.mxu0 0.0
        %2890 = vmatprep.subr.mxu0 0.0
        %2891 = vmatpush1.msra.mxu0 0.0
        %2892 = vmatprep.subr.mxu0 0.0
        %2893 = vmatpush1.msra.mxu0 0.0
        %2894 = vmatprep.subr.mxu0 0.0
        %2895 = vmatpush1.msra.mxu0 0.0
        %2896 = vmatprep.subr.mxu0 0.0
        %2897 = vmatpush1.msra.mxu0 0.0
        %2898 = vmatprep.subr.mxu0 0.0
        %2899 = vmatpush1.msra.mxu0 0.0
        %2900 = vmatprep.subr.mxu0 0.0
        %2901 = vmatpush1.msra.mxu0 0.0
        %2902 = vmatprep.subr.mxu0 0.0
        %2903 = vmatpush1.msra.mxu0 0.0
        %2904 = vmatprep.subr.mxu0 0.0
        %2905 = vmatpush1.msra.mxu0 0.0
        %2906 = vmatprep.subr.mxu0 0.0
        %2907 = vmatpush1.msra.mxu0 0.0
        %2908 = vmatprep.subr.mxu0 0.0
        %2909 = vmatpush1.msra.mxu0 0.0
        %2910 = vmatprep.subr.mxu0 0.0
        %2911 = vmatpush1.msra.mxu0 0.0
        %2912 = vmatprep.subr.mxu0 0.0
        %v2913 = vand.u32 %v2794, 4294901760
        %v2914 = vsub.f32 %v2794, %v2913
        %v2915 = vand.u32 %v2914, 4294901760
        %v2916 = vsub.f32 %v2914, %v2915
        %v2917 = vand.u32 %v2916, 4294901760
        %2918 = vmatpush1.msra.mxu0 %v2917
        %2919 = vmatprep.subr.mxu0 0.0
        %2920 = vmatpush2.msra.mxu0 0.0
        %2921 = vmatprep.subr.mxu0 0.0
        %2922 = vmatpush2.msra.mxu0 0.0
        %2923 = vmatprep.subr.mxu0 0.0
        %2924 = vmatpush2.msra.mxu0 0.0
        %2925 = vmatprep.subr.mxu0 0.0
        %2926 = vmatpush2.msra.mxu0 0.0
        %2927 = vmatprep.subr.mxu0 0.0
        %2928 = vmatpush2.msra.mxu0 0.0
        %2929 = vmatprep.subr.mxu0 0.0
        %2930 = vmatpush2.msra.mxu0 0.0
        %2931 = vmatprep.subr.mxu0 0.0
        %2932 = vmatpush2.msra.mxu0 0.0
        %2933 = vmatprep.subr.mxu0 0.0
        %2934 = vmatpush2.msra.mxu0 0.0
        %2935 = vmatprep.subr.mxu0 0.0
        %2936 = vmatpush2.msra.mxu0 0.0
        %2937 = vmatprep.subr.mxu0 0.0
        %2938 = vmatpush2.msra.mxu0 0.0
        %2939 = vmatprep.subr.mxu0 0.0
        %2940 = vmatpush2.msra.mxu0 0.0
        %2941 = vmatprep.subr.mxu0 0.0
        %2942 = vmatpush2.msra.mxu0 0.0
        %2943 = vmatprep.subr.mxu0 0.0
        %2944 = vmatpush2.msra.mxu0 0.0
        %2945 = vmatprep.subr.mxu0 0.0
        %2946 = vmatpush2.msra.mxu0 0.0
        %2947 = vmatprep.subr.mxu0 0.0
        %2948 = vmatpush2.msra.mxu0 0.0
        %2949 = vmatprep.subr.mxu0 0.0
        %2950 = vmatpush2.msra.mxu0 0.0
        %2951 = vmatprep.mubr.f32.mxu0 0.0
        %v2952 = vand.u32 %v2788, 4294901760
        %2953 = vmatmul.mubr.f32.gmra.mxu0 %v2952
        %v2954 = vpop.f32.mrf.mxu0
        %v2955 = vadd.f32 %v2869, %v2954
        %v2956 = vpop.f32.mrf.mxu0
        %2957 = vmatprep.mubr.f32.mxu0 0.0
        %v2958 = vand.u32 %v2791, 4294901760
        %2959 = vmatmul.mubr.f32.gmra.mxu0 %v2958
        %v2960 = vpop.f32.mrf.mxu0
        %v2961 = vadd.f32 %v2879, %v2960
        %v2962 = vpop.f32.mrf.mxu0
        %2963 = vdwg.mxu0
        %2964 = vmatprep.subr.mxu0 0.0
        %2965 = vmatpush1.msra.mxu0 0.0
        %2966 = vmatprep.subr.mxu0 0.0
        %2967 = vmatpush1.msra.mxu0 0.0
        %2968 = vmatprep.subr.mxu0 0.0
        %2969 = vmatpush1.msra.mxu0 0.0
        %2970 = vmatprep.subr.mxu0 0.0
        %2971 = vmatpush1.msra.mxu0 0.0
        %2972 = vmatprep.subr.mxu0 0.0
        %2973 = vmatpush1.msra.mxu0 0.0
        %2974 = vmatprep.subr.mxu0 0.0
        %2975 = vmatpush1.msra.mxu0 0.0
        %2976 = vmatprep.subr.mxu0 0.0
        %2977 = vmatpush1.msra.mxu0 0.0
        %2978 = vmatprep.subr.mxu0 0.0
        %2979 = vmatpush1.msra.mxu0 0.0
        %2980 = vmatprep.subr.mxu0 0.0
        %2981 = vmatpush1.msra.mxu0 0.0
        %2982 = vmatprep.subr.mxu0 0.0
        %2983 = vmatpush1.msra.mxu0 0.0
        %2984 = vmatprep.subr.mxu0 0.0
        %2985 = vmatpush1.msra.mxu0 0.0
        %2986 = vmatprep.subr.mxu0 0.0
        %2987 = vmatpush1.msra.mxu0 0.0
        %2988 = vmatprep.subr.mxu0 0.0
        %2989 = vmatpush1.msra.mxu0 0.0
        %2990 = vmatprep.subr.mxu0 0.0
        %2991 = vmatpush1.msra.mxu0 0.0
        %2992 = vmatprep.subr.mxu0 0.0
        %2993 = vmatpush1.msra.mxu0 0.0
        %2994 = vmatprep.subr.mxu0 0.0
        %v2995 = vand.u32 %v2794, 4294901760
        %v2996 = vsub.f32 %v2794, %v2995
        %2997 = vmatpush1.msra.mxu0 %v2996
        %2998 = vmatprep.subr.mxu0 0.0
        %2999 = vmatpush2.msra.mxu0 0.0
        %3000 = vmatprep.subr.mxu0 0.0
        %3001 = vmatpush2.msra.mxu0 0.0
        %3002 = vmatprep.subr.mxu0 0.0
        %3003 = vmatpush2.msra.mxu0 0.0
        %3004 = vmatprep.subr.mxu0 0.0
        %3005 = vmatpush2.msra.mxu0 0.0
        %3006 = vmatprep.subr.mxu0 0.0
        %3007 = vmatpush2.msra.mxu0 0.0
        %3008 = vmatprep.subr.mxu0 0.0
        %3009 = vmatpush2.msra.mxu0 0.0
        %3010 = vmatprep.subr.mxu0 0.0
        %3011 = vmatpush2.msra.mxu0 0.0
        %3012 = vmatprep.subr.mxu0 0.0
        %3013 = vmatpush2.msra.mxu0 0.0
        %3014 = vmatprep.subr.mxu0 0.0
        %3015 = vmatpush2.msra.mxu0 0.0
        %3016 = vmatprep.subr.mxu0 0.0
        %3017 = vmatpush2.msra.mxu0 0.0
        %3018 = vmatprep.subr.mxu0 0.0
        %3019 = vmatpush2.msra.mxu0 0.0
        %3020 = vmatprep.subr.mxu0 0.0
        %3021 = vmatpush2.msra.mxu0 0.0
        %3022 = vmatprep.subr.mxu0 0.0
        %3023 = vmatpush2.msra.mxu0 0.0
        %3024 = vmatprep.subr.mxu0 0.0
        %3025 = vmatpush2.msra.mxu0 0.0
        %3026 = vmatprep.subr.mxu0 0.0
        %3027 = vmatpush2.msra.mxu0 0.0
        %3028 = vmatprep.subr.mxu0 0.0
        %3029 = vmatpush2.msra.mxu0 0.0
        %3030 = vmatprep.mubr.f32.mxu0 0.0
        %v3031 = vand.u32 %v2788, 4294901760
        %v3032 = vsub.f32 %v2788, %v3031
        %3033 = vmatmul.mubr.f32.gmra.mxu0 %v3032
        %v3034 = vpop.f32.mrf.mxu0
        %v3035 = vadd.f32 %v2955, %v3034
        %v3036 = vpop.f32.mrf.mxu0
        %3037 = vmatprep.mubr.f32.mxu0 0.0
        %v3038 = vand.u32 %v2791, 4294901760
        %v3039 = vsub.f32 %v2791, %v3038
        %3040 = vmatmul.mubr.f32.gmra.mxu0 %v3039
        %v3041 = vpop.f32.mrf.mxu0
        %v3042 = vadd.f32 %v2961, %v3041
        %v3043 = vpop.f32.mrf.mxu0
        %3044 = vdwg.mxu0
        %3045 = vmatprep.subr.mxu0 0.0
        %3046 = vmatpush1.msra.mxu0 0.0
        %3047 = vmatprep.subr.mxu0 0.0
        %3048 = vmatpush1.msra.mxu0 0.0
        %3049 = vmatprep.subr.mxu0 0.0
        %3050 = vmatpush1.msra.mxu0 0.0
        %3051 = vmatprep.subr.mxu0 0.0
        %3052 = vmatpush1.msra.mxu0 0.0
        %3053 = vmatprep.subr.mxu0 0.0
        %3054 = vmatpush1.msra.mxu0 0.0
        %3055 = vmatprep.subr.mxu0 0.0
        %3056 = vmatpush1.msra.mxu0 0.0
        %3057 = vmatprep.subr.mxu0 0.0
        %3058 = vmatpush1.msra.mxu0 0.0
        %3059 = vmatprep.subr.mxu0 0.0
        %3060 = vmatpush1.msra.mxu0 0.0
        %3061 = vmatprep.subr.mxu0 0.0
        %3062 = vmatpush1.msra.mxu0 0.0
        %3063 = vmatprep.subr.mxu0 0.0
        %3064 = vmatpush1.msra.mxu0 0.0
        %3065 = vmatprep.subr.mxu0 0.0
        %3066 = vmatpush1.msra.mxu0 0.0
        %3067 = vmatprep.subr.mxu0 0.0
        %3068 = vmatpush1.msra.mxu0 0.0
        %3069 = vmatprep.subr.mxu0 0.0
        %3070 = vmatpush1.msra.mxu0 0.0
        %3071 = vmatprep.subr.mxu0 0.0
        %3072 = vmatpush1.msra.mxu0 0.0
        %3073 = vmatprep.subr.mxu0 0.0
        %3074 = vmatpush1.msra.mxu0 0.0
        %3075 = vmatprep.subr.mxu0 0.0
        %v3076 = vand.u32 %v2794, 4294901760
        %3077 = vmatpush1.msra.mxu0 %v3076
        %3078 = vmatprep.subr.mxu0 0.0
        %3079 = vmatpush2.msra.mxu0 0.0
        %3080 = vmatprep.subr.mxu0 0.0
        %3081 = vmatpush2.msra.mxu0 0.0
        %3082 = vmatprep.subr.mxu0 0.0
        %3083 = vmatpush2.msra.mxu0 0.0
        %3084 = vmatprep.subr.mxu0 0.0
        %3085 = vmatpush2.msra.mxu0 0.0
        %3086 = vmatprep.subr.mxu0 0.0
        %3087 = vmatpush2.msra.mxu0 0.0
        %3088 = vmatprep.subr.mxu0 0.0
        %3089 = vmatpush2.msra.mxu0 0.0
        %3090 = vmatprep.subr.mxu0 0.0
        %3091 = vmatpush2.msra.mxu0 0.0
        %3092 = vmatprep.subr.mxu0 0.0
        %3093 = vmatpush2.msra.mxu0 0.0
        %3094 = vmatprep.subr.mxu0 0.0
        %3095 = vmatpush2.msra.mxu0 0.0
        %3096 = vmatprep.subr.mxu0 0.0
        %3097 = vmatpush2.msra.mxu0 0.0
        %3098 = vmatprep.subr.mxu0 0.0
        %3099 = vmatpush2.msra.mxu0 0.0
        %3100 = vmatprep.subr.mxu0 0.0
        %3101 = vmatpush2.msra.mxu0 0.0
        %3102 = vmatprep.subr.mxu0 0.0
        %3103 = vmatpush2.msra.mxu0 0.0
        %3104 = vmatprep.subr.mxu0 0.0
        %3105 = vmatpush2.msra.mxu0 0.0
        %3106 = vmatprep.subr.mxu0 0.0
        %3107 = vmatpush2.msra.mxu0 0.0
        %3108 = vmatprep.subr.mxu0 0.0
        %3109 = vmatpush2.msra.mxu0 0.0
        %3110 = vmatprep.mubr.f32.mxu0 0.0
        %v3111 = vand.u32 %v2788, 4294901760
        %v3112 = vsub.f32 %v2788, %v3111
        %v3113 = vand.u32 %v3112, 4294901760
        %3114 = vmatmul.mubr.f32.gmra.mxu0 %v3113
        %v3115 = vpop.f32.mrf.mxu0
        %v3116 = vadd.f32 %v3035, %v3115
        %v3117 = vpop.f32.mrf.mxu0
        %3118 = vmatprep.mubr.f32.mxu0 0.0
        %v3119 = vand.u32 %v2791, 4294901760
        %v3120 = vsub.f32 %v2791, %v3119
        %v3121 = vand.u32 %v3120, 4294901760
        %3122 = vmatmul.mubr.f32.gmra.mxu0 %v3121
        %v3123 = vpop.f32.mrf.mxu0
        %v3124 = vadd.f32 %v3042, %v3123
        %v3125 = vpop.f32.mrf.mxu0
        %3126 = vdwg.mxu0
        %3127 = vmatprep.subr.mxu0 0.0
        %3128 = vmatpush1.msra.mxu0 0.0
        %3129 = vmatprep.subr.mxu0 0.0
        %3130 = vmatpush1.msra.mxu0 0.0
        %3131 = vmatprep.subr.mxu0 0.0
        %3132 = vmatpush1.msra.mxu0 0.0
        %3133 = vmatprep.subr.mxu0 0.0
        %3134 = vmatpush1.msra.mxu0 0.0
        %3135 = vmatprep.subr.mxu0 0.0
        %3136 = vmatpush1.msra.mxu0 0.0
        %3137 = vmatprep.subr.mxu0 0.0
        %3138 = vmatpush1.msra.mxu0 0.0
        %3139 = vmatprep.subr.mxu0 0.0
        %3140 = vmatpush1.msra.mxu0 0.0
        %3141 = vmatprep.subr.mxu0 0.0
        %3142 = vmatpush1.msra.mxu0 0.0
        %3143 = vmatprep.subr.mxu0 0.0
        %3144 = vmatpush1.msra.mxu0 0.0
        %3145 = vmatprep.subr.mxu0 0.0
        %3146 = vmatpush1.msra.mxu0 0.0
        %3147 = vmatprep.subr.mxu0 0.0
        %3148 = vmatpush1.msra.mxu0 0.0
        %3149 = vmatprep.subr.mxu0 0.0
        %3150 = vmatpush1.msra.mxu0 0.0
        %3151 = vmatprep.subr.mxu0 0.0
        %3152 = vmatpush1.msra.mxu0 0.0
        %3153 = vmatprep.subr.mxu0 0.0
        %3154 = vmatpush1.msra.mxu0 0.0
        %3155 = vmatprep.subr.mxu0 0.0
        %3156 = vmatpush1.msra.mxu0 0.0
        %3157 = vmatprep.subr.mxu0 0.0
        %v3158 = vand.u32 %v2794, 4294901760
        %v3159 = vsub.f32 %v2794, %v3158
        %v3160 = vand.u32 %v3159, 4294901760
        %3161 = vmatpush1.msra.mxu0 %v3160
        %3162 = vmatprep.subr.mxu0 0.0
        %3163 = vmatpush2.msra.mxu0 0.0
        %3164 = vmatprep.subr.mxu0 0.0
        %3165 = vmatpush2.msra.mxu0 0.0
        %3166 = vmatprep.subr.mxu0 0.0
        %3167 = vmatpush2.msra.mxu0 0.0
        %3168 = vmatprep.subr.mxu0 0.0
        %3169 = vmatpush2.msra.mxu0 0.0
        %3170 = vmatprep.subr.mxu0 0.0
        %3171 = vmatpush2.msra.mxu0 0.0
        %3172 = vmatprep.subr.mxu0 0.0
        %3173 = vmatpush2.msra.mxu0 0.0
        %3174 = vmatprep.subr.mxu0 0.0
        %3175 = vmatpush2.msra.mxu0 0.0
        %3176 = vmatprep.subr.mxu0 0.0
        %3177 = vmatpush2.msra.mxu0 0.0
        %3178 = vmatprep.subr.mxu0 0.0
        %3179 = vmatpush2.msra.mxu0 0.0
        %3180 = vmatprep.subr.mxu0 0.0
        %3181 = vmatpush2.msra.mxu0 0.0
        %3182 = vmatprep.subr.mxu0 0.0
        %3183 = vmatpush2.msra.mxu0 0.0
        %3184 = vmatprep.subr.mxu0 0.0
        %3185 = vmatpush2.msra.mxu0 0.0
        %3186 = vmatprep.subr.mxu0 0.0
        %3187 = vmatpush2.msra.mxu0 0.0
        %3188 = vmatprep.subr.mxu0 0.0
        %3189 = vmatpush2.msra.mxu0 0.0
        %3190 = vmatprep.subr.mxu0 0.0
        %3191 = vmatpush2.msra.mxu0 0.0
        %3192 = vmatprep.subr.mxu0 0.0
        %3193 = vmatpush2.msra.mxu0 0.0
        %3194 = vmatprep.mubr.f32.mxu0 0.0
        %v3195 = vand.u32 %v2788, 4294901760
        %3196 = vmatmul.mubr.f32.gmra.mxu0 %v3195
        %v3197 = vpop.f32.mrf.mxu0
        %v3198 = vadd.f32 %v3116, %v3197
        %v3199 = vpop.f32.mrf.mxu0
        %3200 = vmatprep.mubr.f32.mxu0 0.0
        %v3201 = vand.u32 %v2791, 4294901760
        %3202 = vmatmul.mubr.f32.gmra.mxu0 %v3201
        %v3203 = vpop.f32.mrf.mxu0
        %v3204 = vadd.f32 %v3124, %v3203
        %v3205 = vpop.f32.mrf.mxu0
        %3206 = vdwg.mxu0
        %3207 = vmatprep.subr.mxu0 0.0
        %3208 = vmatpush1.msra.mxu0 0.0
        %3209 = vmatprep.subr.mxu0 0.0
        %3210 = vmatpush1.msra.mxu0 0.0
        %3211 = vmatprep.subr.mxu0 0.0
        %3212 = vmatpush1.msra.mxu0 0.0
        %3213 = vmatprep.subr.mxu0 0.0
        %3214 = vmatpush1.msra.mxu0 0.0
        %3215 = vmatprep.subr.mxu0 0.0
        %3216 = vmatpush1.msra.mxu0 0.0
        %3217 = vmatprep.subr.mxu0 0.0
        %3218 = vmatpush1.msra.mxu0 0.0
        %3219 = vmatprep.subr.mxu0 0.0
        %3220 = vmatpush1.msra.mxu0 0.0
        %3221 = vmatprep.subr.mxu0 0.0
        %3222 = vmatpush1.msra.mxu0 0.0
        %3223 = vmatprep.subr.mxu0 0.0
        %3224 = vmatpush1.msra.mxu0 0.0
        %3225 = vmatprep.subr.mxu0 0.0
        %3226 = vmatpush1.msra.mxu0 0.0
        %3227 = vmatprep.subr.mxu0 0.0
        %3228 = vmatpush1.msra.mxu0 0.0
        %3229 = vmatprep.subr.mxu0 0.0
        %3230 = vmatpush1.msra.mxu0 0.0
        %3231 = vmatprep.subr.mxu0 0.0
        %3232 = vmatpush1.msra.mxu0 0.0
        %3233 = vmatprep.subr.mxu0 0.0
        %3234 = vmatpush1.msra.mxu0 0.0
        %3235 = vmatprep.subr.mxu0 0.0
        %3236 = vmatpush1.msra.mxu0 0.0
        %3237 = vmatprep.subr.mxu0 0.0
        %v3238 = vand.u32 %v2794, 4294901760
        %3239 = vmatpush1.msra.mxu0 %v3238
        %3240 = vmatprep.subr.mxu0 0.0
        %3241 = vmatpush2.msra.mxu0 0.0
        %3242 = vmatprep.subr.mxu0 0.0
        %3243 = vmatpush2.msra.mxu0 0.0
        %3244 = vmatprep.subr.mxu0 0.0
        %3245 = vmatpush2.msra.mxu0 0.0
        %3246 = vmatprep.subr.mxu0 0.0
        %3247 = vmatpush2.msra.mxu0 0.0
        %3248 = vmatprep.subr.mxu0 0.0
        %3249 = vmatpush2.msra.mxu0 0.0
        %3250 = vmatprep.subr.mxu0 0.0
        %3251 = vmatpush2.msra.mxu0 0.0
        %3252 = vmatprep.subr.mxu0 0.0
        %3253 = vmatpush2.msra.mxu0 0.0
        %3254 = vmatprep.subr.mxu0 0.0
        %3255 = vmatpush2.msra.mxu0 0.0
        %3256 = vmatprep.subr.mxu0 0.0
        %3257 = vmatpush2.msra.mxu0 0.0
        %3258 = vmatprep.subr.mxu0 0.0
        %3259 = vmatpush2.msra.mxu0 0.0
        %3260 = vmatprep.subr.mxu0 0.0
        %3261 = vmatpush2.msra.mxu0 0.0
        %3262 = vmatprep.subr.mxu0 0.0
        %3263 = vmatpush2.msra.mxu0 0.0
        %3264 = vmatprep.subr.mxu0 0.0
        %3265 = vmatpush2.msra.mxu0 0.0
        %3266 = vmatprep.subr.mxu0 0.0
        %3267 = vmatpush2.msra.mxu0 0.0
        %3268 = vmatprep.subr.mxu0 0.0
        %3269 = vmatpush2.msra.mxu0 0.0
        %3270 = vmatprep.subr.mxu0 0.0
        %3271 = vmatpush2.msra.mxu0 0.0
        %3272 = vmatprep.mubr.f32.mxu0 0.0
        %v3273 = vand.u32 %v2788, 4294901760
        %3274 = vmatmul.mubr.f32.gmra.mxu0 %v3273
        %v3275 = vpop.f32.mrf.mxu0
        %v3276 = vadd.f32 %v3198, %v3275
        %v3277 = vpop.f32.mrf.mxu0
        %3278 = vmatprep.mubr.f32.mxu0 0.0
        %v3279 = vand.u32 %v2791, 4294901760
        %3280 = vmatmul.mubr.f32.gmra.mxu0 %v3279
        %v3281 = vpop.f32.mrf.mxu0
        %v3282 = vadd.f32 %v3204, %v3281
        %v3283 = vpop.f32.mrf.mxu0
        %3284 = vdwg.mxu0
        %v3285 = vxor.u32 %v3276, 2147483648
        %v3286 = vxor.u32 %v3282, 2147483648
        %v3287 = vmul.f32 %v3285, 1.442695
        %v3288 = vpow.pop %v3287
        %v3289 = vmul.f32 %v3286, 1.442695
        %v3290 = vpow.pop %v3289
        %v3291 = vadd.f32 %v3288, 1.0
        %v3292 = vadd.f32 %v3290, 1.0
        %v3293 = vrcp.pop %v3291
        %v3294 = vmul.f32 1.0, %v3293
        %v3295 = vrcp.pop %v3292
        %v3296 = vmul.f32 1.0, %v3295
        %v3297 = vld [vmem:[%s376] sm:$0xff]
        %v3298 = vld [vmem:[%s376 + $0x8] sm:$0xff]
        %v3299 = vld [vmem:[%s376 + $0x10] sm:$0xff]
        %v3300 = vld [vmem:[%s376 + $0x18] sm:$0xff]
        %v3301 = vld [vmem:[%s376 + $0x20] sm:$0xff]
        %v3302 = vld [vmem:[%s376 + $0x28] sm:$0xff]
        %v3303 = vld [vmem:[%s376 + $0x30] sm:$0xff]
        %v3304 = vld [vmem:[%s376 + $0x38] sm:$0xff]
        %3306 = vset.pattern.permute.xlu0 0
        %3307 = vperm.xlu0 %3306, %v3294
        %v3308 = vpop.permute.xlu0 %3307
        %3311 = vset.pattern.permute.xlu0 0
        %3312 = vperm.xlu0 %3311, %v3296
        %v3313 = vpop.permute.xlu0 %3312
        %v3315 = vmul.f32 %v3297, %v3308
        %v3316 = vmul.f32 %v3298, %v3308
        %v3317 = vmul.f32 %v3299, %v3308
        %v3318 = vmul.f32 %v3300, %v3308
        %v3319 = vmul.f32 %v3301, %v3313
        %v3320 = vmul.f32 %v3302, %v3313
        %v3321 = vmul.f32 %v3303, %v3313
        %v3322 = vmul.f32 %v3304, %v3313
        %s3323 = scalar_lea.vmem %s376, 64 [#allocation2]
        %v3324 = vld [vmem:[%s3323] sm:$0xff]
        %v3325 = vld [vmem:[%s3323 + $0x8] sm:$0xff]
        %v3326 = vld [vmem:[%s3323 + $0x10] sm:$0xff]
        %v3327 = vld [vmem:[%s3323 + $0x18] sm:$0xff]
        %v3328 = vld [vmem:[%s3323 + $0x20] sm:$0xff]
        %v3329 = vld [vmem:[%s3323 + $0x28] sm:$0xff]
        %v3330 = vld [vmem:[%s3323 + $0x30] sm:$0xff]
        %v3331 = vld [vmem:[%s3323 + $0x38] sm:$0xff]
        %3332 = vset.pattern.permute.xlu0 1
        %3333 = vperm.xlu0 %3332, %v3294
        %v3334 = vpop.permute.xlu0 %3333
        %3336 = vset.pattern.permute.xlu0 1
        %3337 = vperm.xlu0 %3336, %v3296
        %v3338 = vpop.permute.xlu0 %3337
        %v3340 = vmul.f32 %v3324, %v3334
        %v3341 = vmul.f32 %v3325, %v3334
        %v3342 = vmul.f32 %v3326, %v3334
        %v3343 = vmul.f32 %v3327, %v3334
        %v3344 = vmul.f32 %v3328, %v3338
        %v3345 = vmul.f32 %v3329, %v3338
        %v3346 = vmul.f32 %v3330, %v3338
        %v3347 = vmul.f32 %v3331, %v3338
        %v3348 = vadd.f32 %v3315, %v3340
        %v3349 = vadd.f32 %v3316, %v3341
        %v3350 = vadd.f32 %v3317, %v3342
        %v3351 = vadd.f32 %v3318, %v3343
        %v3352 = vadd.f32 %v3319, %v3344
        %v3353 = vadd.f32 %v3320, %v3345
        %v3354 = vadd.f32 %v3321, %v3346
        %v3355 = vadd.f32 %v3322, %v3347
        %s3356 = scalar_lea.vmem %s376, 128 [#allocation2]
        %v3357 = vld [vmem:[%s3356] sm:$0xff]
        %v3358 = vld [vmem:[%s3356 + $0x8] sm:$0xff]
        %v3359 = vld [vmem:[%s3356 + $0x10] sm:$0xff]
        %v3360 = vld [vmem:[%s3356 + $0x18] sm:$0xff]
        %v3361 = vld [vmem:[%s3356 + $0x20] sm:$0xff]
        %v3362 = vld [vmem:[%s3356 + $0x28] sm:$0xff]
        %v3363 = vld [vmem:[%s3356 + $0x30] sm:$0xff]
        %v3364 = vld [vmem:[%s3356 + $0x38] sm:$0xff]
        %3365 = vset.pattern.permute.xlu0 2
        %3366 = vperm.xlu0 %3365, %v3294
        %v3367 = vpop.permute.xlu0 %3366
        %3369 = vset.pattern.permute.xlu0 2
        %3370 = vperm.xlu0 %3369, %v3296
        %v3371 = vpop.permute.xlu0 %3370
        %v3373 = vmul.f32 %v3357, %v3367
        %v3374 = vmul.f32 %v3358, %v3367
        %v3375 = vmul.f32 %v3359, %v3367
        %v3376 = vmul.f32 %v3360, %v3367
        %v3377 = vmul.f32 %v3361, %v3371
        %v3378 = vmul.f32 %v3362, %v3371
        %v3379 = vmul.f32 %v3363, %v3371
        %v3380 = vmul.f32 %v3364, %v3371
        %v3381 = vadd.f32 %v3348, %v3373
        %v3382 = vadd.f32 %v3349, %v3374
        %v3383 = vadd.f32 %v3350, %v3375
        %v3384 = vadd.f32 %v3351, %v3376
        %v3385 = vadd.f32 %v3352, %v3377
        %v3386 = vadd.f32 %v3353, %v3378
        %v3387 = vadd.f32 %v3354, %v3379
        %v3388 = vadd.f32 %v3355, %v3380
        %s3389 = scalar_lea.vmem %s376, 192 [#allocation2]
        %v3390 = vld [vmem:[%s3389] sm:$0xff]
        %v3391 = vld [vmem:[%s3389 + $0x8] sm:$0xff]
        %v3392 = vld [vmem:[%s3389 + $0x10] sm:$0xff]
        %v3393 = vld [vmem:[%s3389 + $0x18] sm:$0xff]
        %v3394 = vld [vmem:[%s3389 + $0x20] sm:$0xff]
        %v3395 = vld [vmem:[%s3389 + $0x28] sm:$0xff]
        %v3396 = vld [vmem:[%s3389 + $0x30] sm:$0xff]
        %v3397 = vld [vmem:[%s3389 + $0x38] sm:$0xff]
        %3398 = vset.pattern.permute.xlu0 3
        %3399 = vperm.xlu0 %3398, %v3294
        %v3400 = vpop.permute.xlu0 %3399
        %3402 = vset.pattern.permute.xlu0 3
        %3403 = vperm.xlu0 %3402, %v3296
        %v3404 = vpop.permute.xlu0 %3403
        %v3406 = vmul.f32 %v3390, %v3400
        %v3407 = vmul.f32 %v3391, %v3400
        %v3408 = vmul.f32 %v3392, %v3400
        %v3409 = vmul.f32 %v3393, %v3400
        %v3410 = vmul.f32 %v3394, %v3404
        %v3411 = vmul.f32 %v3395, %v3404
        %v3412 = vmul.f32 %v3396, %v3404
        %v3413 = vmul.f32 %v3397, %v3404
        %v3414 = vadd.f32 %v3381, %v3406
        %v3415 = vadd.f32 %v3382, %v3407
        %v3416 = vadd.f32 %v3383, %v3408
        %v3417 = vadd.f32 %v3384, %v3409
        %v3418 = vadd.f32 %v3385, %v3410
        %v3419 = vadd.f32 %v3386, %v3411
        %v3420 = vadd.f32 %v3387, %v3412
        %v3421 = vadd.f32 %v3388, %v3413
        %s3422 = scalar_lea.vmem %s376, 256 [#allocation2]
        %v3423 = vld [vmem:[%s3422] sm:$0xff]
        %v3424 = vld [vmem:[%s3422 + $0x8] sm:$0xff]
        %v3425 = vld [vmem:[%s3422 + $0x10] sm:$0xff]
        %v3426 = vld [vmem:[%s3422 + $0x18] sm:$0xff]
        %v3427 = vld [vmem:[%s3422 + $0x20] sm:$0xff]
        %v3428 = vld [vmem:[%s3422 + $0x28] sm:$0xff]
        %v3429 = vld [vmem:[%s3422 + $0x30] sm:$0xff]
        %v3430 = vld [vmem:[%s3422 + $0x38] sm:$0xff]
        %3431 = vset.pattern.permute.xlu0 4
        %3432 = vperm.xlu0 %3431, %v3294
        %v3433 = vpop.permute.xlu0 %3432
        %3435 = vset.pattern.permute.xlu0 4
        %3436 = vperm.xlu0 %3435, %v3296
        %v3437 = vpop.permute.xlu0 %3436
        %v3439 = vmul.f32 %v3423, %v3433
        %v3440 = vmul.f32 %v3424, %v3433
        %v3441 = vmul.f32 %v3425, %v3433
        %v3442 = vmul.f32 %v3426, %v3433
        %v3443 = vmul.f32 %v3427, %v3437
        %v3444 = vmul.f32 %v3428, %v3437
        %v3445 = vmul.f32 %v3429, %v3437
        %v3446 = vmul.f32 %v3430, %v3437
        %v3447 = vadd.f32 %v3414, %v3439
        %v3448 = vadd.f32 %v3415, %v3440
        %v3449 = vadd.f32 %v3416, %v3441
        %v3450 = vadd.f32 %v3417, %v3442
        %v3451 = vadd.f32 %v3418, %v3443
        %v3452 = vadd.f32 %v3419, %v3444
        %v3453 = vadd.f32 %v3420, %v3445
        %v3454 = vadd.f32 %v3421, %v3446
        %s3455 = scalar_lea.vmem %s376, 320 [#allocation2]
        %v3456 = vld [vmem:[%s3455] sm:$0xff]
        %v3457 = vld [vmem:[%s3455 + $0x8] sm:$0xff]
        %v3458 = vld [vmem:[%s3455 + $0x10] sm:$0xff]
        %v3459 = vld [vmem:[%s3455 + $0x18] sm:$0xff]
        %v3460 = vld [vmem:[%s3455 + $0x20] sm:$0xff]
        %v3461 = vld [vmem:[%s3455 + $0x28] sm:$0xff]
        %v3462 = vld [vmem:[%s3455 + $0x30] sm:$0xff]
        %v3463 = vld [vmem:[%s3455 + $0x38] sm:$0xff]
        %3464 = vset.pattern.permute.xlu0 5
        %3465 = vperm.xlu0 %3464, %v3294
        %v3466 = vpop.permute.xlu0 %3465
        %3468 = vset.pattern.permute.xlu0 5
        %3469 = vperm.xlu0 %3468, %v3296
        %v3470 = vpop.permute.xlu0 %3469
        %v3472 = vmul.f32 %v3456, %v3466
        %v3473 = vmul.f32 %v3457, %v3466
        %v3474 = vmul.f32 %v3458, %v3466
        %v3475 = vmul.f32 %v3459, %v3466
        %v3476 = vmul.f32 %v3460, %v3470
        %v3477 = vmul.f32 %v3461, %v3470
        %v3478 = vmul.f32 %v3462, %v3470
        %v3479 = vmul.f32 %v3463, %v3470
        %v3480 = vadd.f32 %v3447, %v3472
        %v3481 = vadd.f32 %v3448, %v3473
        %v3482 = vadd.f32 %v3449, %v3474
        %v3483 = vadd.f32 %v3450, %v3475
        %v3484 = vadd.f32 %v3451, %v3476
        %v3485 = vadd.f32 %v3452, %v3477
        %v3486 = vadd.f32 %v3453, %v3478
        %v3487 = vadd.f32 %v3454, %v3479
        %3488 = vst [vmem:[%s419] sm:$0xff] %v3480
        %3489 = vst [vmem:[%s419 + $0x8] sm:$0xff] %v3481
        %3490 = vst [vmem:[%s419 + $0x10] sm:$0xff] %v3482
        %3491 = vst.msk [vmem:[%s419 + $0x18] sm:$0xff] %vm436, %v3483
        %3492 = vst [vmem:[%s419 + $0x20] sm:$0xff] %v3484
        %3493 = vst [vmem:[%s419 + $0x28] sm:$0xff] %v3485
        %3494 = vst [vmem:[%s419 + $0x30] sm:$0xff] %v3486
        %3495 = vst.msk [vmem:[%s419 + $0x38] sm:$0xff] %vm436, %v3487
        %s3496 = sand.u32 %s277, 1
        %s3497 = scalar_lea.sflag [#allocation4], %s3496
        %s3498 = sand.u32 %s277, 1
        %s3499 = smul.addr %s3498, 64
        %s3500 = scalar_lea.vmem [#allocation5], %s3499
        // Predicated region
        $region69: #{tpu_custom_call.1} parent=63 // pred_check
          %p3501 = pneg %p287
        $region70: #{tpu_custom_call.1} parent=63 // pred_check_branch
          %3503 = sbr.rel (%p3501) target = $region72
        $region71: #{tpu_custom_call.1} parent=63 // pred_region
          %s3505 = ssub.s32 1024, 1024
          %3506 = vsyncadd %s3497, %s3505
          %s3507 = smul.addr %s28, 8
          %s3508 = smul.addr %s3507, 128
          %s3509 = scalar_lea.hbm %s11, %s3508
          %s3510 = sshll.u32 %s3500, 4
          %s3511 = int_to_ptr.vmem [resolvable:$true] %s3510
          %3516 = dma.vmem_to_hbm [thread:$0]  %s3511, 1024, %s3509, %s3497, 512, 512, 32
        $region72: #{tpu_custom_call.1} parent=63 // pred_fallthru
          _
      $region64: #{tpu_custom_call.1} parent=5 // pred_fallthru
        _
      %p3517 = scmp.le.s32.totalorder 2, %s23
      // Predicated region
      $region73: #{tpu_custom_call.1} parent=5 // pred_check
        %p3518 = pneg %p3517
      $region74: #{tpu_custom_call.1} parent=5 // pred_check_branch
        %3520 = sbr.rel (%p3518) target = $region76
      $region75: #{tpu_custom_call.1} parent=5 // pred_region
        %s3521 = ssub.s32 %s23, 2
        // Predicated region
        $region77: #{tpu_custom_call.1} parent=75 // pred_check
          %p3522 = pneg %p293
        $region78: #{tpu_custom_call.1} parent=75 // pred_check_branch
          %3524 = sbr.rel (%p3522) target = $region80
        $region79: #{tpu_custom_call.1} parent=75 // pred_region
          %s3525 = sand.u32 %s278, 1
          %s3526 = scalar_lea.sflag [#allocation4], %s3525
          %s3527 = sand.u32 %s278, 1
          %s3528 = smul.addr %s3527, 64
          %s3529 = scalar_lea.vmem [#allocation5], %s3528
          %3530 = dma.done %s3526, 1024
        $region80: #{tpu_custom_call.1} parent=75 // pred_fallthru
          _
      $region76: #{tpu_custom_call.1} parent=5 // pred_fallthru
        _
    $region6: #{tpu_custom_call.1} parent=1 // loop_footer
      %s27 = sadd.s32 1, %s23
    $region7: #{tpu_custom_call.1} parent=1 // loop_footer_branch
      %22 = sbr.rel target = $region3
    $region8: #{tpu_custom_call.1} parent=1 // loop_exit
      _
    %3531 = vsyncpa [#allocation3], 1
    %s3532 = scalar_lea.sflag [#allocation3], 1
    %3533 = vsyncpa %s3532, 1
    %3534 = vsyncpa [#allocation4], 1
    %s3535 = scalar_lea.sflag [#allocation4], 1
    %3536 = vsyncpa %s3535, 1

</llo_original>
